<compile_context>
chip_gen: v6e
topology: v6e:2x2x1
jax: 0.10.0
libtpu: 0.0.40
codegen_flags: <defaults>
</compile_context>

<pallas_src>
import jax
import jax.numpy as jnp
import numpy as np
from jax.experimental import pallas as pl
from jax.experimental.pallas import tpu as pltpu


# ----------------------------------------------------------------------------
# Fused kernel: conv1 -> relu -> pool1 -> conv2 -> relu -> pool2 -> fc1(+fc2)
# ----------------------------------------------------------------------------
def _simple_cnn_kernel(x_ref, a1_ref, b1_ref, a2_ref, b2_ref, g_ref, b3_ref,
                       out_ref):
    tb = out_ref.shape[0]          # batch tile (multiple of 16)
    cdt = a1_ref.dtype             # MXU operand dtype (bf16)

    x = x_ref[...]                 # (30*tb, 32) bf16: rows = h*tb + b, lanes = padded W

    # ---- conv1: ONE K=96 GEMM (3 kh bands lane-concatenated; A1 rows stacked) ----
    x_cat = jnp.concatenate(
        [x[0:28 * tb], x[tb:29 * tb], x[2 * tb:30 * tb]], axis=-1)   # (28*tb, 96)
    acc1 = jnp.dot(x_cat, a1_ref[...], preferred_element_type=jnp.float32)
    y1 = jnp.maximum(acc1 + b1_ref[...], 0.0)        # (28*tb, 224), lanes=(W=28,C=8)

    # ---- pool1 ------------------------------------------------------------------
    # W-max: 8-lane wrap-around shift pairs W index j with j+1.  NOTE: lane j=27
    # wraps around to j=0 and holds garbage — this is fine ONLY because A2 (below)
    # selects even-j lanes exclusively; keep that invariant if the layout changes.
    y1s = jnp.concatenate([y1[:, 8:], y1[:, :8]], axis=-1)
    y1m = jnp.maximum(y1, y1s)
    # H-max: pairwise max of adjacent tb-row blocks (tile-aligned reshape), cast to
    # bf16 immediately so all downstream copies move half the bytes.
    y1r = y1m.reshape(14, 2 * tb, 224)
    p1 = jnp.maximum(y1r[:, :tb, :], y1r[:, tb:, :]).astype(cdt)
    p1 = p1.reshape(14 * tb, 224)                    # (14*tb, 224) bf16

    # ---- conv2: ONE K=672 GEMM --------------------------------------------------
    # H zero-padding for conv2 is realized by the zero block at the top of the
    # kh=0 band / bottom of the kh=2 band; pool1's W-decimation is folded into A2.
    zblk = jnp.zeros((tb, 224), cdt)
    band0 = jnp.concatenate([zblk, p1[0:13 * tb]], axis=0)           # rows  -1..12
    band2 = jnp.concatenate([p1[tb:14 * tb], zblk], axis=0)          # rows   1..14
    m1cat = jnp.concatenate([band0, p1, band2], axis=-1)             # (14*tb, 672)
    acc2 = jnp.dot(m1cat, a2_ref[...], preferred_element_type=jnp.float32)
    y2 = jnp.maximum(acc2 + b2_ref[...], 0.0)                        # (14*tb, 112)

    # ---- pool2 (same wrap-around trick; odd-j2 lanes are dead in G) --------------
    y2s = jnp.concatenate([y2[:, 8:], y2[:, :8]], axis=-1)
    y2m = jnp.maximum(y2, y2s)
    y2r = y2m.reshape(7, 2 * tb, 112)
    p2 = jnp.maximum(y2r[:, :tb, :], y2r[:, tb:, :]).astype(cdt)     # (7, tb, 112)
    flat = jnp.concatenate([p2[u] for u in range(7)], axis=-1)       # (tb, 784) bf16

    # ---- fc1 with fc2 fused as an extra column of G, lane-padded output ---------
    out_ref[...] = (jnp.dot(flat, g_ref[...],
                            preferred_element_type=jnp.float32) + b3_ref[...])


# ----------------------------------------------------------------------------
# One-time parameter folding (pure JAX glue on tiny weight tensors)
# ----------------------------------------------------------------------------
def _prep_params(params, compute_dtype=jnp.bfloat16):
    w1 = params["conv1_w"]          # (8, 1, 3, 3)
    b1 = params["conv1_b"]          # (8,)
    w2 = params["conv2_w"]          # (8, 8, 3, 3)
    b2 = params["conv2_b"]          # (8,)
    fc1_w = params["fc1_w"]         # (F, 392)
    fc1_b = params["fc1_b"]         # (F,)
    fc2_w = params["fc2_w"]         # (1, F)
    fc2_b = params["fc2_b"]         # (1,)
    F = fc1_w.shape[0]
    Fp = 128 * ((F + 1 + 127) // 128)   # fc1 feats + fused fc2 column, lane-padded

    # A1[kh*32 + s, j*8 + co] = w1[co, 0, kh, s - j]  for 0 <= s - j <= 2
    s = np.arange(32)[None, :, None]
    j = np.arange(28)[None, None, :]
    kw = np.arange(3)[:, None, None]
    sel1 = (s == j + kw).astype(np.float32)                           # (3, 32, 28)
    A1 = jnp.einsum("wsj,chw->hsjc", sel1, w1[:, 0, :, :]).reshape(96, 224)

    # A2[kh*224 + j*8 + ci, j2*8 + c2] = sum_kw [j == 2*(j2+kw-1), 0<=j2+kw-1<=13]
    #                                    * w2[c2, ci, kh, kw]
    # (the even-j selection also decimates pool1 and kills the wrap-around odd lanes)
    jj = np.arange(28)[None, :, None]
    j2 = np.arange(14)[None, None, :]
    t = j2 + kw - 1
    sel2 = ((jj == 2 * t) & (t >= 0) & (t <= 13)).astype(np.float32)  # (3, 28, 14)
    A2 = jnp.einsum("wjk,dchw->hjckd", sel2, w2).reshape(672, 112)

    # G[u*112 + j2*8 + c, f] = fc1_w[f, c*49 + u*7 + j2//2]  (j2 even, else 0)
    selv = (np.arange(14)[:, None] == 2 * np.arange(7)[None, :]).astype(np.float32)
    fc1_r = fc1_w.reshape(F, 8, 7, 7)
    G = jnp.einsum("jv,fcuv->ujcf", selv, fc1_r).reshape(784, F)

    # Fuse fc2:  out = flat @ (G @ fc2_w^T) + (fc1_b . fc2_w + fc2_b).
    g_fc2 = G @ fc2_w.reshape(F, 1)                                   # (784, 1)
    Gext = jnp.concatenate(
        [G, g_fc2, jnp.zeros((784, Fp - F - 1), G.dtype)], axis=1)    # (784, Fp)
    bias_fc2 = jnp.dot(fc1_b, fc2_w.reshape(F)) + fc2_b.reshape(())
    bias_ext = jnp.concatenate(
        [fc1_b, bias_fc2[None], jnp.zeros((Fp - F - 1,), fc1_b.dtype)]
    ).reshape(1, Fp).astype(jnp.float32)

    b1l = jnp.tile(b1, 28).reshape(1, 224).astype(jnp.float32)
    b2l = jnp.tile(b2, 14).reshape(1, 112).astype(jnp.float32)

    return (A1.astype(compute_dtype), b1l,
            A2.astype(compute_dtype), b2l,
            Gext.astype(compute_dtype), bias_ext)


def _pick_batch_tile(B, batch_tile):
    batch_tile = max(16, 16 * (batch_tile // 16))
    bpad16 = 16 * ((B + 15) // 16)
    tb = max(16, min(batch_tile, bpad16))
    # v7x megacore: prefer >= 2 grid steps so dimension_semantics=("parallel",)
    # can shard the batch over both TensorCores (no-op on v5e/v6e: 1 TC).
    if bpad16 > 16 and bpad16 // tb < 2:
        tb = 16 * ((bpad16 // 2 + 15) // 16)
    return tb


# ----------------------------------------------------------------------------
# Public forward: NCHW f32 in, (out, extracted_features) out — same as torch.
# ----------------------------------------------------------------------------
def simple_cnn_forward(x_nchw, params, *, batch_tile=128):
    B = x_nchw.shape[0]
    F = params["fc1_w"].shape[0]

    A1, b1l, A2, b2l, Gext, bias_ext = _prep_params(params)
    Fp = Gext.shape[1]

    TB = _pick_batch_tile(B, batch_tile)
    n_tiles = (B + TB - 1) // TB
    Bpad = n_tiles * TB

    # NCHW -> per-tile "h-major" bf16 slab: row = h*TB + b_local, lanes = zero-padded W.
    x2 = x_nchw[:, 0].astype(jnp.bfloat16)                           # (B, 28, 28)
    xp = jnp.pad(x2, ((0, Bpad - B), (1, 1), (1, 3)))                # (Bpad, 30, 32)
    xt = (xp.reshape(n_tiles, TB, 30, 32)
            .transpose(0, 2, 1, 3)
            .reshape(n_tiles * 30 * TB, 32))

    const = lambda i: (0, 0)
    comb = pl.pallas_call(
        _simple_cnn_kernel,
        out_shape=jax.ShapeDtypeStruct((Bpad, Fp), jnp.float32),
        grid=(n_tiles,),
        in_specs=[
            pl.BlockSpec((30 * TB, 32), lambda i: (i, 0)),   # input batch tile (bf16)
            pl.BlockSpec((96, 224), const),                  # A1 (3 kh bands stacked)
            pl.BlockSpec((1, 224), const),                   # conv1 bias over lanes
            pl.BlockSpec((672, 112), const),                 # A2 (pool1-decim + conv2)
            pl.BlockSpec((1, 112), const),                   # conv2 bias over lanes
            pl.BlockSpec((784, Fp), const),                  # pool2-decim+flatten+fc1(+fc2)
            pl.BlockSpec((1, Fp), const),                    # fused fc1/fc2 bias
        ],
        out_specs=pl.BlockSpec((TB, Fp), lambda i: (i, 0)),  # lane-dense fused output
        compiler_params=pltpu.CompilerParams(
            dimension_semantics=("parallel",),
            vmem_limit_bytes=(32 if TB <= 128 else 80) * 1024 * 1024),
    )(xt, A1, b1l, A2, b2l, Gext, bias_ext)

    out = comb[:B, F:F + 1]          # fc2 output
    feat = comb[:B, :F]              # fc1 "extracted_features"
    return out, feat


# ----------------------------------------------------------------------------
# Pure-JAX reference (sanity check, f32 throughout)
# ----------------------------------------------------------------------------
def reference_forward(x_nchw, params):
    dn = ("NCHW", "OIHW", "NCHW")

    def block(y, w, b):
        y = jax.lax.conv_general_dilated(y, w, (1, 1), ((1, 1), (1, 1)),
                                         dimension_numbers=dn)
        y = jax.nn.relu(y + b.reshape(1, -1, 1, 1))
        return jax.lax.reduce_window(y, -jnp.inf, jax.lax.max,
                                     (1, 1, 2, 2), (1, 1, 2, 2), "VALID")

    y = block(x_nchw, params["conv1_w"], params["conv1_b"])
    y = block(y, params["conv2_w"], params["conv2_b"])
    flat = y.reshape(y.shape[0], -1)
    feat = flat @ params["fc1_w"].T + params["fc1_b"]
    out = feat @ params["fc2_w"].T + params["fc2_b"]
    return out, feat


# ----------------------------------------------------------------------------
if __name__ == "__main__":
    n_features = 32
    key = jax.random.PRNGKey(0)
    ks = jax.random.split(key, 9)
    params = {
        "conv1_w": 0.1 * jax.random.normal(ks[0], (8, 1, 3, 3), jnp.float32),
        "conv1_b": 0.1 * jax.random.normal(ks[1], (8,), jnp.float32),
        "conv2_w": 0.1 * jax.random.normal(ks[2], (8, 8, 3, 3), jnp.float32),
        "conv2_b": 0.1 * jax.random.normal(ks[3], (8,), jnp.float32),
        "fc1_w": 0.05 * jax.random.normal(ks[4], (n_features, 8 * 7 * 7), jnp.float32),
        "fc1_b": 0.05 * jax.random.normal(ks[5], (n_features,), jnp.float32),
        "fc2_w": 0.05 * jax.random.normal(ks[6], (1, n_features), jnp.float32),
        "fc2_b": 0.05 * jax.random.normal(ks[7], (1,), jnp.float32),
    }
    x = jax.random.normal(ks[8], (2, 1, 28, 28), jnp.float32)

    fwd = jax.jit(simple_cnn_forward)
    out, feat = fwd(x, params)
    jax.block_until_ready((out, feat))

    assert out.shape == (2, 1) and feat.shape == (2, n_features)
    ref_out, ref_feat = reference_forward(x, params)
    # Tolerances account for intentional bf16 MXU operands vs. the f32 reference.
    assert jnp.allclose(out, ref_out, atol=2e-2, rtol=2e-2), \
        f"out mismatch: {jnp.max(jnp.abs(out - ref_out))}"
    assert jnp.allclose(feat, ref_feat, atol=2e-2, rtol=2e-2), \
        f"feat mismatch: {jnp.max(jnp.abs(feat - ref_feat))}"

    print("KERNEL_OK")
</pallas_src>

<mosaic_0001>
module attributes {stable_mosaic.version = 11 : i64} {
  func.func @_simple_cnn_kernel(%arg0: i32, %arg1: memref<480x32xbf16, #tpu.memory_space<vmem>>, %arg2: memref<96x224xbf16, #tpu.memory_space<vmem>>, %arg3: memref<1x224xf32, #tpu.memory_space<vmem>>, %arg4: memref<672x112xbf16, #tpu.memory_space<vmem>>, %arg5: memref<1x112xf32, #tpu.memory_space<vmem>>, %arg6: memref<784x128xbf16, #tpu.memory_space<vmem>>, %arg7: memref<1x128xf32, #tpu.memory_space<vmem>>, %arg8: memref<16x128xf32, #tpu.memory_space<vmem>>) attributes {dimension_semantics = [#tpu.dimension_semantics<parallel>], iteration_bounds = array<i64: 1>, scalar_prefetch = 0 : i64, scratch_operands = 0 : i64, tpu.core_type = #tpu.core_type<tc>, window_params = [{transform_indices = @transform_0, window_bounds = array<i64: 480, 32>}, {pipeline_mode = #tpu.pipeline_mode<synchronous>, transform_indices = @transform_1, window_bounds = array<i64: 96, 224>}, {pipeline_mode = #tpu.pipeline_mode<synchronous>, transform_indices = @transform_2, window_bounds = array<i64: 1, 224>}, {pipeline_mode = #tpu.pipeline_mode<synchronous>, transform_indices = @transform_3, window_bounds = array<i64: 672, 112>}, {pipeline_mode = #tpu.pipeline_mode<synchronous>, transform_indices = @transform_4, window_bounds = array<i64: 1, 112>}, {pipeline_mode = #tpu.pipeline_mode<synchronous>, transform_indices = @transform_5, window_bounds = array<i64: 784, 128>}, {pipeline_mode = #tpu.pipeline_mode<synchronous>, transform_indices = @transform_6, window_bounds = array<i64: 1, 128>}, {transform_indices = @transform_7, window_bounds = array<i64: 16, 128>}]} {
    %c0 = arith.constant 0 : index
    %c0_0 = arith.constant 0 : index
    %0 = vector.load %arg1[%c0, %c0_0] : memref<480x32xbf16, #tpu.memory_space<vmem>>, vector<480x32xbf16>
    %1 = vector.extract_strided_slice %0 {offsets = [0, 0], sizes = [448, 32], strides = [1, 1]} : vector<480x32xbf16> to vector<448x32xbf16>
    %2 = vector.extract_strided_slice %0 {offsets = [16, 0], sizes = [448, 32], strides = [1, 1]} : vector<480x32xbf16> to vector<448x32xbf16>
    %3 = vector.extract_strided_slice %0 {offsets = [32, 0], sizes = [448, 32], strides = [1, 1]} : vector<480x32xbf16> to vector<448x32xbf16>
    %4 = tpu.concatenate %1, %2, %3 in 1 : vector<448x32xbf16>, vector<448x32xbf16>, vector<448x32xbf16> -> vector<448x96xbf16>
    %c0_1 = arith.constant 0 : index
    %c0_2 = arith.constant 0 : index
    %5 = vector.load %arg2[%c0_1, %c0_2] : memref<96x224xbf16, #tpu.memory_space<vmem>>, vector<96x224xbf16>
    %cst = arith.constant dense<0.000000e+00> : vector<448x224xf32>
    %6 = tpu.matmul %4, %5, %cst {dimension_numbers = #tpu.dot_dimension_numbers<[1], [0], [0], [1], [0, 0, 1, 1], [], []>} : vector<448x96xbf16>, vector<96x224xbf16>, vector<448x224xf32> -> vector<448x224xf32>
    %c0_3 = arith.constant 0 : index
    %c0_4 = arith.constant 0 : index
    %7 = vector.load %arg3[%c0_3, %c0_4] : memref<1x224xf32, #tpu.memory_space<vmem>>, vector<1x224xf32>
    %8 = vector.broadcast %7 : vector<1x224xf32> to vector<448x224xf32>
    %9 = arith.addf %6, %8 : vector<448x224xf32>
    %cst_5 = arith.constant 0.000000e+00 : f32
    %10 = vector.broadcast %cst_5 : f32 to vector<448x224xf32>
    %11 = arith.maximumf %9, %10 : vector<448x224xf32>
    %12 = vector.extract_strided_slice %11 {offsets = [0, 8], sizes = [448, 216], strides = [1, 1]} : vector<448x224xf32> to vector<448x216xf32>
    %13 = vector.extract_strided_slice %11 {offsets = [0, 0], sizes = [448, 8], strides = [1, 1]} : vector<448x224xf32> to vector<448x8xf32>
    %14 = tpu.concatenate %12, %13 in 1 : vector<448x216xf32>, vector<448x8xf32> -> vector<448x224xf32>
    %15 = arith.maximumf %11, %14 : vector<448x224xf32>
    %16 = vector.shape_cast %15 : vector<448x224xf32> to vector<14x32x224xf32>
    %17 = vector.extract_strided_slice %16 {offsets = [0, 0, 0], sizes = [14, 16, 224], strides = [1, 1, 1]} : vector<14x32x224xf32> to vector<14x16x224xf32>
    %18 = vector.extract_strided_slice %16 {offsets = [0, 16, 0], sizes = [14, 16, 224], strides = [1, 1, 1]} : vector<14x32x224xf32> to vector<14x16x224xf32>
    %19 = arith.maximumf %17, %18 : vector<14x16x224xf32>
    %20 = arith.truncf %19 : vector<14x16x224xf32> to vector<14x16x224xbf16>
    %21 = vector.shape_cast %20 : vector<14x16x224xbf16> to vector<224x224xbf16>
    %cst_6 = arith.constant 0.000000e+00 : bf16
    %22 = vector.broadcast %cst_6 : bf16 to vector<16x224xbf16>
    %23 = vector.extract_strided_slice %21 {offsets = [0, 0], sizes = [208, 224], strides = [1, 1]} : vector<224x224xbf16> to vector<208x224xbf16>
    %24 = tpu.concatenate %22, %23 in 0 : vector<16x224xbf16>, vector<208x224xbf16> -> vector<224x224xbf16>
    %25 = vector.extract_strided_slice %21 {offsets = [16, 0], sizes = [208, 224], strides = [1, 1]} : vector<224x224xbf16> to vector<208x224xbf16>
    %26 = tpu.concatenate %25, %22 in 0 : vector<208x224xbf16>, vector<16x224xbf16> -> vector<224x224xbf16>
    %27 = tpu.concatenate %24, %21, %26 in 1 : vector<224x224xbf16>, vector<224x224xbf16>, vector<224x224xbf16> -> vector<224x672xbf16>
    %c0_7 = arith.constant 0 : index
    %c0_8 = arith.constant 0 : index
    %28 = vector.load %arg4[%c0_7, %c0_8] : memref<672x112xbf16, #tpu.memory_space<vmem>>, vector<672x112xbf16>
    %cst_9 = arith.constant dense<0.000000e+00> : vector<224x112xf32>
    %29 = tpu.matmul %27, %28, %cst_9 {dimension_numbers = #tpu.dot_dimension_numbers<[1], [0], [0], [1], [0, 0, 1, 1], [], []>} : vector<224x672xbf16>, vector<672x112xbf16>, vector<224x112xf32> -> vector<224x112xf32>
    %c0_10 = arith.constant 0 : index
    %c0_11 = arith.constant 0 : index
    %30 = vector.load %arg5[%c0_10, %c0_11] : memref<1x112xf32, #tpu.memory_space<vmem>>, vector<1x112xf32>
    %31 = vector.broadcast %30 : vector<1x112xf32> to vector<224x112xf32>
    %32 = arith.addf %29, %31 : vector<224x112xf32>
    %cst_12 = arith.constant 0.000000e+00 : f32
    %33 = vector.broadcast %cst_12 : f32 to vector<224x112xf32>
    %34 = arith.maximumf %32, %33 : vector<224x112xf32>
    %35 = vector.extract_strided_slice %34 {offsets = [0, 8], sizes = [224, 104], strides = [1, 1]} : vector<224x112xf32> to vector<224x104xf32>
    %36 = vector.extract_strided_slice %34 {offsets = [0, 0], sizes = [224, 8], strides = [1, 1]} : vector<224x112xf32> to vector<224x8xf32>
    %37 = tpu.concatenate %35, %36 in 1 : vector<224x104xf32>, vector<224x8xf32> -> vector<224x112xf32>
    %38 = arith.maximumf %34, %37 : vector<224x112xf32>
    %39 = vector.shape_cast %38 : vector<224x112xf32> to vector<7x32x112xf32>
    %40 = vector.extract_strided_slice %39 {offsets = [0, 0, 0], sizes = [7, 16, 112], strides = [1, 1, 1]} : vector<7x32x112xf32> to vector<7x16x112xf32>
    %41 = vector.extract_strided_slice %39 {offsets = [0, 16, 0], sizes = [7, 16, 112], strides = [1, 1, 1]} : vector<7x32x112xf32> to vector<7x16x112xf32>
    %42 = arith.maximumf %40, %41 : vector<7x16x112xf32>
    %43 = arith.truncf %42 : vector<7x16x112xf32> to vector<7x16x112xbf16>
    %44 = vector.extract_strided_slice %43 {offsets = [0, 0, 0], sizes = [1, 16, 112], strides = [1, 1, 1]} : vector<7x16x112xbf16> to vector<1x16x112xbf16>
    %45 = vector.shape_cast %44 : vector<1x16x112xbf16> to vector<16x112xbf16>
    %46 = vector.extract_strided_slice %43 {offsets = [1, 0, 0], sizes = [1, 16, 112], strides = [1, 1, 1]} : vector<7x16x112xbf16> to vector<1x16x112xbf16>
    %47 = vector.shape_cast %46 : vector<1x16x112xbf16> to vector<16x112xbf16>
    %48 = vector.extract_strided_slice %43 {offsets = [2, 0, 0], sizes = [1, 16, 112], strides = [1, 1, 1]} : vector<7x16x112xbf16> to vector<1x16x112xbf16>
    %49 = vector.shape_cast %48 : vector<1x16x112xbf16> to vector<16x112xbf16>
    %50 = vector.extract_strided_slice %43 {offsets = [3, 0, 0], sizes = [1, 16, 112], strides = [1, 1, 1]} : vector<7x16x112xbf16> to vector<1x16x112xbf16>
    %51 = vector.shape_cast %50 : vector<1x16x112xbf16> to vector<16x112xbf16>
    %52 = vector.extract_strided_slice %43 {offsets = [4, 0, 0], sizes = [1, 16, 112], strides = [1, 1, 1]} : vector<7x16x112xbf16> to vector<1x16x112xbf16>
    %53 = vector.shape_cast %52 : vector<1x16x112xbf16> to vector<16x112xbf16>
    %54 = vector.extract_strided_slice %43 {offsets = [5, 0, 0], sizes = [1, 16, 112], strides = [1, 1, 1]} : vector<7x16x112xbf16> to vector<1x16x112xbf16>
    %55 = vector.shape_cast %54 : vector<1x16x112xbf16> to vector<16x112xbf16>
    %56 = vector.extract_strided_slice %43 {offsets = [6, 0, 0], sizes = [1, 16, 112], strides = [1, 1, 1]} : vector<7x16x112xbf16> to vector<1x16x112xbf16>
    %57 = vector.shape_cast %56 : vector<1x16x112xbf16> to vector<16x112xbf16>
    %58 = tpu.concatenate %45, %47, %49, %51, %53, %55, %57 in 1 : vector<16x112xbf16>, vector<16x112xbf16>, vector<16x112xbf16>, vector<16x112xbf16>, vector<16x112xbf16>, vector<16x112xbf16>, vector<16x112xbf16> -> vector<16x784xbf16>
    %c0_13 = arith.constant 0 : index
    %c0_14 = arith.constant 0 : index
    %59 = vector.load %arg6[%c0_13, %c0_14] : memref<784x128xbf16, #tpu.memory_space<vmem>>, vector<784x128xbf16>
    %cst_15 = arith.constant dense<0.000000e+00> : vector<16x128xf32>
    %60 = tpu.matmul %58, %59, %cst_15 {dimension_numbers = #tpu.dot_dimension_numbers<[1], [0], [0], [1], [0, 0, 1, 1], [], []>} : vector<16x784xbf16>, vector<784x128xbf16>, vector<16x128xf32> -> vector<16x128xf32>
    %c0_16 = arith.constant 0 : index
    %c0_17 = arith.constant 0 : index
    %61 = vector.load %arg7[%c0_16, %c0_17] : memref<1x128xf32, #tpu.memory_space<vmem>>, vector<1x128xf32>
    %62 = vector.broadcast %61 : vector<1x128xf32> to vector<16x128xf32>
    %63 = arith.addf %60, %62 : vector<16x128xf32>
    %c0_18 = arith.constant 0 : index
    %c0_19 = arith.constant 0 : index
    %64 = vector.load %arg8[%c0_18, %c0_19] : memref<16x128xf32, #tpu.memory_space<vmem>>, vector<16x128xf32>
    tpu.vector_store %arg8[%c0_18, %c0_19], %63 {strides = array<i32>} : memref<16x128xf32, #tpu.memory_space<vmem>>, vector<16x128xf32>,
    return
  }
  func.func @transform_0(%arg0: i32) -> (i32, i32) {
    %c0_i32 = arith.constant 0 : i32
    %c0_i32_0 = arith.constant 0 : i32
    return %arg0, %c0_i32 : i32, i32
  }
  func.func @transform_1(%arg0: i32) -> (i32, i32) {
    %c0_i32 = arith.constant 0 : i32
    %c0_i32_0 = arith.constant 0 : i32
    %c0_i32_1 = arith.constant 0 : i32
    return %c0_i32, %c0_i32_0 : i32, i32
  }
  func.func @transform_2(%arg0: i32) -> (i32, i32) {
    %c0_i32 = arith.constant 0 : i32
    %c0_i32_0 = arith.constant 0 : i32
    %c0_i32_1 = arith.constant 0 : i32
    return %c0_i32, %c0_i32_0 : i32, i32
  }
  func.func @transform_3(%arg0: i32) -> (i32, i32) {
    %c0_i32 = arith.constant 0 : i32
    %c0_i32_0 = arith.constant 0 : i32
    %c0_i32_1 = arith.constant 0 : i32
    return %c0_i32, %c0_i32_0 : i32, i32
  }
  func.func @transform_4(%arg0: i32) -> (i32, i32) {
    %c0_i32 = arith.constant 0 : i32
    %c0_i32_0 = arith.constant 0 : i32
    %c0_i32_1 = arith.constant 0 : i32
    return %c0_i32, %c0_i32_0 : i32, i32
  }
  func.func @transform_5(%arg0: i32) -> (i32, i32) {
    %c0_i32 = arith.constant 0 : i32
    %c0_i32_0 = arith.constant 0 : i32
    %c0_i32_1 = arith.constant 0 : i32
    return %c0_i32, %c0_i32_0 : i32, i32
  }
  func.func @transform_6(%arg0: i32) -> (i32, i32) {
    %c0_i32 = arith.constant 0 : i32
    %c0_i32_0 = arith.constant 0 : i32
    %c0_i32_1 = arith.constant 0 : i32
    return %c0_i32, %c0_i32_0 : i32, i32
  }
  func.func @transform_7(%arg0: i32) -> (i32, i32) {
    %c0_i32 = arith.constant 0 : i32
    %c0_i32_0 = arith.constant 0 : i32
    return %arg0, %c0_i32 : i32, i32
  }
}

</mosaic_0001>

<llo_original>
// kernel: tile.13
$region0: #{tile.13}
  #allocation2 [shape = 's32[1]{0}', space=sflag, size = 0x4, scoped, tag = 'scoped memory for tile.13']
  %s0 = inlined_call_operand.hbm [shape: f32[8], index: 0, kind: input, shape index: {}]
  %s1 = inlined_call_operand.vmem [shape: f32[28,8], index: 1, kind: output, shape index: {}]
  $region1: #{tile.13} parent=0
    #allocation0 [shape = 'u8[512]{0}', space=vmem, size = 0x400, scoped, tag = 'operand span for operand 0']
    #allocation1 [shape = 's32[1]{0}', space=sflag, size = 0x4, scoped, tag = 'scoped memory for tile.13']
    %2 = vsyncpa [#allocation1], 0
    // Predicated region
    $region2: #{tile.13} parent=1 // pred_check
      _
    $region3: #{tile.13} parent=1 // pred_check_branch
      %4 = sbr.rel (0) target = $region5
    $region4: #{tile.13} parent=1 // pred_region
      %s6 = ssub.s32 16, 16
      %7 = vsyncadd [#allocation1], %s6
      %s9 = sshll.u32 [#allocation0], 4
      %s10 = int_to_ptr.vmem [resolvable:$true] %s9
      %12 = dma.hbm_to_vmem [thread:$0]  %s0, 16, %s10, [#allocation1]
    $region5: #{tile.13} parent=1 // pred_fallthru
      _
    // Predicated region
    $region6: #{tile.13} parent=1 // pred_check
      _
    $region7: #{tile.13} parent=1 // pred_check_branch
      %14 = sbr.rel (0) target = $region9
    $region8: #{tile.13} parent=1 // pred_region
      %15 = dma.done [#allocation1], 16
    $region9: #{tile.13} parent=1 // pred_fallthru
      _
    %v16 = vld [vmem:[#allocation0] ss:$0 sm:$0xff]
    %17 = vst [vmem:[%s1] sm:$0xff] %v16
    %s18 = scalar_lea.vmem %s1, 8
    %19 = vst [vmem:[%s18] sm:$0xff] %v16
    %s20 = scalar_lea.vmem %s1, 16
    %21 = vst [vmem:[%s20] sm:$0xff] %v16
    %s22 = scalar_lea.vmem %s1, 24
    %23 = vst [vmem:[%s22] sm:$0xff] %v16
    %24 = vsyncpa [#allocation1], 1

// kernel: tile.14
$region0: #{tile.14}
  %s0 = inlined_call_operand.vmem [shape: f32[28,8], index: 0, kind: input, shape index: {}]
  %s1 = inlined_call_operand.vmem [shape: f32[1,224], index: 1, kind: output, shape index: {}]
  $region1: #{tile.14} parent=0
    #allocation0 [shape = 'u8[8192]{0}', space=vmem, size = 0x2000, scoped, tag = 'scoped mem for output reshape']
    %s2 = smov 3
    %v3 = vld [vmem:[%s0] ss:$16 sm:%s2]
    %vm4 = vcmask 64512
    %5 = vst.msk [vmem:[#allocation0] ss:$8 sm:$0x3] %vm4, %v3
    %s6 = scalar_lea.vmem %s0, 15
    %v7 = vld [vmem:[%s6] sm:$0x1]
    %8 = vrot.lane.b32.xlu0 %v7, 120
    %v9 = vpop.permute.xlu0 %8
    %vm10 = vcmask 1048512
    %11 = vst.msk [vmem:[#allocation0] sm:$0x1] %vm10, %v9
    %s12 = scalar_lea.vmem %s0, 14
    %v13 = vld [vmem:[%s12] sm:$0x1]
    %14 = vrot.lane.b32.xlu0 %v13, 112
    %v15 = vpop.permute.xlu0 %14
    %vm16 = vcmask 982912
    %17 = vst.msk [vmem:[#allocation0] sm:$0x1] %vm16, %v15
    %s18 = scalar_lea.vmem %s0, 13
    %v19 = vld [vmem:[%s18] sm:$0x1]
    %20 = vrot.lane.b32.xlu0 %v19, 104
    %v21 = vpop.permute.xlu0 %20
    %vm22 = vcmask 917312
    %23 = vst.msk [vmem:[#allocation0] sm:$0x1] %vm22, %v21
    %s24 = scalar_lea.vmem %s0, 12
    %v25 = vld [vmem:[%s24] sm:$0x1]
    %26 = vrot.lane.b32.xlu0 %v25, 96
    %v27 = vpop.permute.xlu0 %26
    %vm28 = vcmask 851712
    %29 = vst.msk [vmem:[#allocation0] sm:$0x1] %vm28, %v27
    %s30 = scalar_lea.vmem %s0, 11
    %s31 = smov 3
    %v32 = vld [vmem:[%s30] ss:$16 sm:%s31]
    %33 = vrot.lane.b32.xlu0 %v32, 88
    %v34 = vpop.permute.xlu0 %33
    %vm35 = vcmask 786112
    %36 = vst.msk [vmem:[#allocation0] ss:$8 sm:$0x3] %vm35, %v34
    %s37 = scalar_lea.vmem %s0, 10
    %s38 = smov 3
    %v39 = vld [vmem:[%s37] ss:$16 sm:%s38]
    %40 = vrot.lane.b32.xlu0 %v39, 80
    %v41 = vpop.permute.xlu0 %40
    %vm42 = vcmask 720512
    %43 = vst.msk [vmem:[#allocation0] ss:$8 sm:$0x3] %vm42, %v41
    %s44 = scalar_lea.vmem %s0, 9
    %s45 = smov 3
    %v46 = vld [vmem:[%s44] ss:$16 sm:%s45]
    %47 = vrot.lane.b32.xlu0 %v46, 72
    %v48 = vpop.permute.xlu0 %47
    %vm49 = vcmask 654912
    %50 = vst.msk [vmem:[#allocation0] ss:$8 sm:$0x3] %vm49, %v48
    %s51 = scalar_lea.vmem %s0, 8
    %s52 = smov 3
    %v53 = vld [vmem:[%s51] ss:$16 sm:%s52]
    %54 = vrot.lane.b32.xlu0 %v53, 64
    %v55 = vpop.permute.xlu0 %54
    %vm56 = vcmask 589312
    %57 = vst.msk [vmem:[#allocation0] ss:$8 sm:$0x3] %vm56, %v55
    %s58 = scalar_lea.vmem %s0, 7
    %s59 = smov 3
    %v60 = vld [vmem:[%s58] ss:$16 sm:%s59]
    %61 = vrot.lane.b32.xlu0 %v60, 56
    %v62 = vpop.permute.xlu0 %61
    %vm63 = vcmask 523712
    %64 = vst.msk [vmem:[#allocation0] ss:$8 sm:$0x3] %vm63, %v62
    %s65 = scalar_lea.vmem %s0, 6
    %s66 = smov 3
    %v67 = vld [vmem:[%s65] ss:$16 sm:%s66]
    %68 = vrot.lane.b32.xlu0 %v67, 48
    %v69 = vpop.permute.xlu0 %68
    %vm70 = vcmask 458112
    %71 = vst.msk [vmem:[#allocation0] ss:$8 sm:$0x3] %vm70, %v69
    %s72 = scalar_lea.vmem %s0, 5
    %s73 = smov 3
    %v74 = vld [vmem:[%s72] ss:$16 sm:%s73]
    %75 = vrot.lane.b32.xlu0 %v74, 40
    %v76 = vpop.permute.xlu0 %75
    %vm77 = vcmask 392512
    %78 = vst.msk [vmem:[#allocation0] ss:$8 sm:$0x3] %vm77, %v76
    %s79 = scalar_lea.vmem %s0, 4
    %s80 = smov 3
    %v81 = vld [vmem:[%s79] ss:$16 sm:%s80]
    %82 = vrot.lane.b32.xlu0 %v81, 32
    %v83 = vpop.permute.xlu0 %82
    %vm84 = vcmask 326912
    %85 = vst.msk [vmem:[#allocation0] ss:$8 sm:$0x3] %vm84, %v83
    %s86 = scalar_lea.vmem %s0, 3
    %s87 = smov 3
    %v88 = vld [vmem:[%s86] ss:$16 sm:%s87]
    %89 = vrot.lane.b32.xlu0 %v88, 24
    %v90 = vpop.permute.xlu0 %89
    %vm91 = vcmask 261312
    %92 = vst.msk [vmem:[#allocation0] ss:$8 sm:$0x3] %vm91, %v90
    %s93 = scalar_lea.vmem %s0, 2
    %s94 = smov 3
    %v95 = vld [vmem:[%s93] ss:$16 sm:%s94]
    %96 = vrot.lane.b32.xlu0 %v95, 16
    %v97 = vpop.permute.xlu0 %96
    %vm98 = vcmask 195712
    %99 = vst.msk [vmem:[#allocation0] ss:$8 sm:$0x3] %vm98, %v97
    %s100 = scalar_lea.vmem %s0, 1
    %s101 = smov 3
    %v102 = vld [vmem:[%s100] ss:$16 sm:%s101]
    %103 = vrot.lane.b32.xlu0 %v102, 8
    %v104 = vpop.permute.xlu0 %103
    %vm105 = vcmask 130112
    %106 = vst.msk [vmem:[#allocation0] ss:$8 sm:$0x3] %vm105, %v104
    %s108 = sshll.u32 1, 1
    %s109 = ssub.s32 %s108, 1
    %v111 = vld [vmem:[#allocation0] sm:%s109]
    %s112 = sshll.u32 1, 1
    %s113 = ssub.s32 %s112, 1
    %114 = vst [vmem:[%s1] sm:%s113] %v111
    %s115 = scalar_lea.vmem [#allocation0], 8
    %v116 = vld [vmem:[%s115] sm:%s109]
    %s117 = sshll.u32 1, 1
    %s118 = ssub.s32 %s117, 1
    %s119 = scalar_lea.vmem %s1, 1
    %120 = vst [vmem:[%s119] sm:%s118] %v116

// kernel: tile.18
$region0: #{tile.18}
  #allocation0 [shape = 's32[1]{0}', space=sflag, size = 0x4, scoped, tag = 'scoped memory for tile.18']
  %s0 = inlined_call_operand.vmem [shape: f32[8], index: 0, kind: input, shape index: {}]
  %s1 = inlined_call_operand.vmem [shape: f32[14,8], index: 1, kind: output, shape index: {}]
  // Predicated region
  $region2: #{tile.18} parent=0 // pred_check
    _
  $region3: #{tile.18} parent=0 // pred_check_branch
    %3 = sbr.rel (0) target = $region5
  $region4: #{tile.18} parent=0 // pred_region
    _
  $region5: #{tile.18} parent=0 // pred_fallthru
    _
  %v4 = vld [vmem:[%s0] ss:$0 sm:$0xff]
  %5 = vst [vmem:[%s1] sm:$0xff] %v4
  %s6 = scalar_lea.vmem %s1, 8
  %7 = vst [vmem:[%s6] sm:$0xff] %v4

// kernel: tile.19
$region0: #{tile.19}
  %s0 = inlined_call_operand.vmem [shape: f32[14,8], index: 0, kind: input, shape index: {}]
  %s1 = inlined_call_operand.vmem [shape: f32[1,112], index: 1, kind: output, shape index: {}]
  $region1: #{tile.19} parent=0
    #allocation0 [shape = 'u8[4096]{0}', space=vmem, size = 0x1000, scoped, tag = 'scoped mem for output reshape']
    %v2 = vld [vmem:[%s0] sm:$0x1]
    %vm3 = vcmask 64512
    %4 = vst.msk [vmem:[#allocation0] sm:$0x1] %vm3, %v2
    %s5 = scalar_lea.vmem %s0, 13
    %v6 = vld [vmem:[%s5] sm:$0x1]
    %7 = vrot.lane.b32.xlu0 %v6, 104
    %v8 = vpop.permute.xlu0 %7
    %vm9 = vcmask 917312
    %10 = vst.msk [vmem:[#allocation0] sm:$0x1] %vm9, %v8
    %s11 = scalar_lea.vmem %s0, 12
    %v12 = vld [vmem:[%s11] sm:$0x1]
    %13 = vrot.lane.b32.xlu0 %v12, 96
    %v14 = vpop.permute.xlu0 %13
    %vm15 = vcmask 851712
    %16 = vst.msk [vmem:[#allocation0] sm:$0x1] %vm15, %v14
    %s17 = scalar_lea.vmem %s0, 11
    %v18 = vld [vmem:[%s17] sm:$0x1]
    %19 = vrot.lane.b32.xlu0 %v18, 88
    %v20 = vpop.permute.xlu0 %19
    %vm21 = vcmask 786112
    %22 = vst.msk [vmem:[#allocation0] sm:$0x1] %vm21, %v20
    %s23 = scalar_lea.vmem %s0, 10
    %v24 = vld [vmem:[%s23] sm:$0x1]
    %25 = vrot.lane.b32.xlu0 %v24, 80
    %v26 = vpop.permute.xlu0 %25
    %vm27 = vcmask 720512
    %28 = vst.msk [vmem:[#allocation0] sm:$0x1] %vm27, %v26
    %s29 = scalar_lea.vmem %s0, 9
    %v30 = vld [vmem:[%s29] sm:$0x1]
    %31 = vrot.lane.b32.xlu0 %v30, 72
    %v32 = vpop.permute.xlu0 %31
    %vm33 = vcmask 654912
    %34 = vst.msk [vmem:[#allocation0] sm:$0x1] %vm33, %v32
    %s35 = scalar_lea.vmem %s0, 8
    %v36 = vld [vmem:[%s35] sm:$0x1]
    %37 = vrot.lane.b32.xlu0 %v36, 64
    %v38 = vpop.permute.xlu0 %37
    %vm39 = vcmask 589312
    %40 = vst.msk [vmem:[#allocation0] sm:$0x1] %vm39, %v38
    %s41 = scalar_lea.vmem %s0, 7
    %v42 = vld [vmem:[%s41] sm:$0x1]
    %43 = vrot.lane.b32.xlu0 %v42, 56
    %v44 = vpop.permute.xlu0 %43
    %vm45 = vcmask 523712
    %46 = vst.msk [vmem:[#allocation0] sm:$0x1] %vm45, %v44
    %s47 = scalar_lea.vmem %s0, 6
    %v48 = vld [vmem:[%s47] sm:$0x1]
    %49 = vrot.lane.b32.xlu0 %v48, 48
    %v50 = vpop.permute.xlu0 %49
    %vm51 = vcmask 458112
    %52 = vst.msk [vmem:[#allocation0] sm:$0x1] %vm51, %v50
    %s53 = scalar_lea.vmem %s0, 5
    %v54 = vld [vmem:[%s53] sm:$0x1]
    %55 = vrot.lane.b32.xlu0 %v54, 40
    %v56 = vpop.permute.xlu0 %55
    %vm57 = vcmask 392512
    %58 = vst.msk [vmem:[#allocation0] sm:$0x1] %vm57, %v56
    %s59 = scalar_lea.vmem %s0, 4
    %v60 = vld [vmem:[%s59] sm:$0x1]
    %61 = vrot.lane.b32.xlu0 %v60, 32
    %v62 = vpop.permute.xlu0 %61
    %vm63 = vcmask 326912
    %64 = vst.msk [vmem:[#allocation0] sm:$0x1] %vm63, %v62
    %s65 = scalar_lea.vmem %s0, 3
    %v66 = vld [vmem:[%s65] sm:$0x1]
    %67 = vrot.lane.b32.xlu0 %v66, 24
    %v68 = vpop.permute.xlu0 %67
    %vm69 = vcmask 261312
    %70 = vst.msk [vmem:[#allocation0] sm:$0x1] %vm69, %v68
    %s71 = scalar_lea.vmem %s0, 2
    %v72 = vld [vmem:[%s71] sm:$0x1]
    %73 = vrot.lane.b32.xlu0 %v72, 16
    %v74 = vpop.permute.xlu0 %73
    %vm75 = vcmask 195712
    %76 = vst.msk [vmem:[#allocation0] sm:$0x1] %vm75, %v74
    %s77 = scalar_lea.vmem %s0, 1
    %v78 = vld [vmem:[%s77] sm:$0x1]
    %79 = vrot.lane.b32.xlu0 %v78, 8
    %v80 = vpop.permute.xlu0 %79
    %vm81 = vcmask 130112
    %82 = vst.msk [vmem:[#allocation0] sm:$0x1] %vm81, %v80
    %s84 = sshll.u32 1, 1
    %s85 = ssub.s32 %s84, 1
    %v87 = vld [vmem:[#allocation0] sm:%s85]
    %s88 = sshll.u32 1, 1
    %s89 = ssub.s32 %s88, 1
    %90 = vst [vmem:[%s1] sm:%s89] %v87

// kernel: simple_cnn_forward.1
$region0: #{simple_cnn_forward.1}
  #allocation0 [shape = 'u32[]', space=smem, size = 0x4, offset = 0x4, fixed_abs, tag = 'smem constant byte address 0x4 - core index']
  #allocation1 [shape = 'u32[144,128]{1,0:T(1,128)}', space=vmem, size = 0x12000, scoped, tag = 'internal scratch']
  %s0 = inlined_call_operand.vmem [shape: bf16[480,32], index: 0, kind: input, shape index: {}]
  %s1 = inlined_call_operand.vmem [shape: bf16[96,224], index: 1, kind: input, shape index: {}]
  %s2 = inlined_call_operand.vmem [shape: f32[1,224], index: 2, kind: input, shape index: {}]
  %s3 = inlined_call_operand.vmem [shape: bf16[672,112], index: 3, kind: input, shape index: {}]
  %s4 = inlined_call_operand.vmem [shape: f32[1,112], index: 4, kind: input, shape index: {}]
  %s5 = inlined_call_operand.vmem [shape: bf16[784,128], index: 5, kind: input, shape index: {}]
  %s6 = inlined_call_operand.vmem [shape: f32[1,128], index: 6, kind: input, shape index: {}]
  %s7 = inlined_call_operand.vmem [shape: f32[16,128], index: 7, kind: output, shape index: {}]
  %s8 = sld [smem:[#allocation0]]
  $region38: #{simple_cnn_forward.1} parent=0
    _
  %s10 = ssub.s32 1, %s8
  %s11 = scalar_select 0, %s10, %s8
  // Predicated region
  $region2: #{simple_cnn_forward.1} parent=0 // pred_check
    _
  $region3: #{simple_cnn_forward.1} parent=0 // pred_check_branch
    %13 = sbr.rel (0) target = $region5
  $region4: #{simple_cnn_forward.1} parent=0 // pred_region
    _
  $region5: #{simple_cnn_forward.1} parent=0 // pred_fallthru
    _
  // Predicated region
  $region6: #{simple_cnn_forward.1} parent=0 // pred_check
    _
  $region7: #{simple_cnn_forward.1} parent=0 // pred_check_branch
    %15 = sbr.rel (0) target = $region9
  $region8: #{simple_cnn_forward.1} parent=0 // pred_region
    _
  $region9: #{simple_cnn_forward.1} parent=0 // pred_fallthru
    _
  // Predicated region
  $region10: #{simple_cnn_forward.1} parent=0 // pred_check
    _
  $region11: #{simple_cnn_forward.1} parent=0 // pred_check_branch
    %17 = sbr.rel (0) target = $region13
  $region12: #{simple_cnn_forward.1} parent=0 // pred_region
    _
  $region13: #{simple_cnn_forward.1} parent=0 // pred_fallthru
    _
  // Predicated region
  $region14: #{simple_cnn_forward.1} parent=0 // pred_check
    _
  $region15: #{simple_cnn_forward.1} parent=0 // pred_check_branch
    %19 = sbr.rel (0) target = $region17
  $region16: #{simple_cnn_forward.1} parent=0 // pred_region
    _
  $region17: #{simple_cnn_forward.1} parent=0 // pred_fallthru
    _
  // Predicated region
  $region18: #{simple_cnn_forward.1} parent=0 // pred_check
    _
  $region19: #{simple_cnn_forward.1} parent=0 // pred_check_branch
    %21 = sbr.rel (0) target = $region21
  $region20: #{simple_cnn_forward.1} parent=0 // pred_region
    _
  $region21: #{simple_cnn_forward.1} parent=0 // pred_fallthru
    _
  // Predicated region
  $region22: #{simple_cnn_forward.1} parent=0 // pred_check
    _
  $region23: #{simple_cnn_forward.1} parent=0 // pred_check_branch
    %23 = sbr.rel (0) target = $region25
  $region24: #{simple_cnn_forward.1} parent=0 // pred_region
    _
  $region25: #{simple_cnn_forward.1} parent=0 // pred_fallthru
    _
  // Predicated region
  $region26: #{simple_cnn_forward.1} parent=0 // pred_check
    _
  $region27: #{simple_cnn_forward.1} parent=0 // pred_check_branch
    %25 = sbr.rel (0) target = $region29
  $region28: #{simple_cnn_forward.1} parent=0 // pred_region
    _
  $region29: #{simple_cnn_forward.1} parent=0 // pred_fallthru
    _
  %v27 = vld [vmem:[%s0] sm:$0xf]
  %v28 = vld [vmem:[%s0 + $0x4] sm:$0xf]
  %v29 = vld [vmem:[%s0 + $0x8] sm:$0xf]
  %v30 = vld [vmem:[%s0 + $0xc] sm:$0xf]
  %v31 = vld [vmem:[%s0 + $0x10] sm:$0xf]
  %v32 = vld [vmem:[%s0 + $0x14] sm:$0xf]
  %v33 = vld [vmem:[%s0 + $0x18] sm:$0xf]
  %v34 = vld [vmem:[%s0 + $0x1c] sm:$0xf]
  %v35 = vld [vmem:[%s0 + $0x20] sm:$0xf]
  %v36 = vld [vmem:[%s0 + $0x24] sm:$0xf]
  %v37 = vld [vmem:[%s0 + $0x28] sm:$0xf]
  %v38 = vld [vmem:[%s0 + $0x2c] sm:$0xf]
  %v39 = vld [vmem:[%s0 + $0x30] sm:$0xf]
  %v40 = vld [vmem:[%s0 + $0x34] sm:$0xf]
  %v41 = vld [vmem:[%s0 + $0x38] sm:$0xf]
  %v42 = vld [vmem:[%s0 + $0x3c] sm:$0xf]
  %v43 = vld [vmem:[%s0 + $0x40] sm:$0xf]
  %v44 = vld [vmem:[%s0 + $0x44] sm:$0xf]
  %v45 = vld [vmem:[%s0 + $0x48] sm:$0xf]
  %v46 = vld [vmem:[%s0 + $0x4c] sm:$0xf]
  %v47 = vld [vmem:[%s0 + $0x50] sm:$0xf]
  %v48 = vld [vmem:[%s0 + $0x54] sm:$0xf]
  %v49 = vld [vmem:[%s0 + $0x58] sm:$0xf]
  %v50 = vld [vmem:[%s0 + $0x5c] sm:$0xf]
  %v51 = vld [vmem:[%s0 + $0x60] sm:$0xf]
  %v52 = vld [vmem:[%s0 + $0x64] sm:$0xf]
  %v53 = vld [vmem:[%s0 + $0x68] sm:$0xf]
  %v54 = vld [vmem:[%s0 + $0x6c] sm:$0xf]
  %v55 = vld [vmem:[%s0 + $0x70] sm:$0xf]
  %v56 = vld [vmem:[%s0 + $0x74] sm:$0xf]
  %v57 = vld [vmem:[%s0 + $0x78] sm:$0xf]
  %v58 = vld [vmem:[%s0 + $0x7c] sm:$0xf]
  %v59 = vld [vmem:[%s0 + $0x80] sm:$0xf]
  %v60 = vld [vmem:[%s0 + $0x84] sm:$0xf]
  %v61 = vld [vmem:[%s0 + $0x88] sm:$0xf]
  %v62 = vld [vmem:[%s0 + $0x8c] sm:$0xf]
  %v63 = vld [vmem:[%s0 + $0x90] sm:$0xf]
  %v64 = vld [vmem:[%s0 + $0x94] sm:$0xf]
  %v65 = vld [vmem:[%s0 + $0x98] sm:$0xf]
  %v66 = vld [vmem:[%s0 + $0x9c] sm:$0xf]
  %v67 = vld [vmem:[%s0 + $0xa0] sm:$0xf]
  %v68 = vld [vmem:[%s0 + $0xa4] sm:$0xf]
  %v69 = vld [vmem:[%s0 + $0xa8] sm:$0xf]
  %v70 = vld [vmem:[%s0 + $0xac] sm:$0xf]
  %v71 = vld [vmem:[%s0 + $0xb0] sm:$0xf]
  %v72 = vld [vmem:[%s0 + $0xb4] sm:$0xf]
  %v73 = vld [vmem:[%s0 + $0xb8] sm:$0xf]
  %v74 = vld [vmem:[%s0 + $0xbc] sm:$0xf]
  %v75 = vld [vmem:[%s0 + $0xc0] sm:$0xf]
  %v76 = vld [vmem:[%s0 + $0xc4] sm:$0xf]
  %v77 = vld [vmem:[%s0 + $0xc8] sm:$0xf]
  %v78 = vld [vmem:[%s0 + $0xcc] sm:$0xf]
  %v79 = vld [vmem:[%s0 + $0xd0] sm:$0xf]
  %v80 = vld [vmem:[%s0 + $0xd4] sm:$0xf]
  %v81 = vld [vmem:[%s0 + $0xd8] sm:$0xf]
  %v82 = vld [vmem:[%s0 + $0xdc] sm:$0xf]
  %v83 = vld [vmem:[%s0 + $0xe0] sm:$0xf]
  %v84 = vld [vmem:[%s0 + $0xe4] sm:$0xf]
  %v85 = vld [vmem:[%s0 + $0xe8] sm:$0xf]
  %v86 = vld [vmem:[%s0 + $0xec] sm:$0xf]
  %v143 = vunpack.c.l.b16 %v27
  %v144 = vunpack.c.l.b16 %v28
  %v145 = vunpack.c.l.b16 %v29
  %v146 = vunpack.c.l.b16 %v30
  %v147 = vunpack.c.l.b16 %v31
  %v148 = vunpack.c.l.b16 %v32
  %v149 = vunpack.c.l.b16 %v33
  %v150 = vunpack.c.l.b16 %v34
  %v151 = vunpack.c.l.b16 %v35
  %v152 = vunpack.c.l.b16 %v36
  %v153 = vunpack.c.l.b16 %v37
  %v154 = vunpack.c.l.b16 %v38
  %v155 = vunpack.c.l.b16 %v39
  %v156 = vunpack.c.l.b16 %v40
  %v157 = vunpack.c.l.b16 %v41
  %v158 = vunpack.c.l.b16 %v42
  %v159 = vunpack.c.l.b16 %v43
  %v160 = vunpack.c.l.b16 %v44
  %v161 = vunpack.c.l.b16 %v45
  %v162 = vunpack.c.l.b16 %v46
  %v163 = vunpack.c.l.b16 %v47
  %v164 = vunpack.c.l.b16 %v48
  %v165 = vunpack.c.l.b16 %v49
  %v166 = vunpack.c.l.b16 %v50
  %v167 = vunpack.c.l.b16 %v51
  %v168 = vunpack.c.l.b16 %v52
  %v169 = vunpack.c.l.b16 %v53
  %v170 = vunpack.c.l.b16 %v54
  %v171 = vunpack.c.l.b16 %v55
  %v172 = vunpack.c.l.b16 %v56
  %v173 = vunpack.c.l.b16 %v57
  %v174 = vunpack.c.l.b16 %v58
  %v175 = vunpack.c.l.b16 %v59
  %v176 = vunpack.c.l.b16 %v60
  %v177 = vunpack.c.l.b16 %v61
  %v178 = vunpack.c.l.b16 %v62
  %v179 = vunpack.c.l.b16 %v63
  %v180 = vunpack.c.l.b16 %v64
  %v181 = vunpack.c.l.b16 %v65
  %v182 = vunpack.c.l.b16 %v66
  %v183 = vunpack.c.l.b16 %v67
  %v184 = vunpack.c.l.b16 %v68
  %v185 = vunpack.c.l.b16 %v69
  %v186 = vunpack.c.l.b16 %v70
  %v187 = vunpack.c.l.b16 %v71
  %v188 = vunpack.c.l.b16 %v72
  %v189 = vunpack.c.l.b16 %v73
  %v190 = vunpack.c.l.b16 %v74
  %v191 = vunpack.c.l.b16 %v75
  %v192 = vunpack.c.l.b16 %v76
  %v193 = vunpack.c.l.b16 %v77
  %v194 = vunpack.c.l.b16 %v78
  %v195 = vunpack.c.l.b16 %v79
  %v196 = vunpack.c.l.b16 %v80
  %v197 = vunpack.c.l.b16 %v81
  %v198 = vunpack.c.l.b16 %v82
  %v199 = vpack.c.b16 %v144, %v143
  %v200 = vpack.c.b16 %v146, %v145
  %v201 = vpack.c.b16 %v148, %v147
  %v202 = vpack.c.b16 %v150, %v149
  %v203 = vpack.c.b16 %v152, %v151
  %v204 = vpack.c.b16 %v154, %v153
  %v205 = vpack.c.b16 %v156, %v155
  %v206 = vpack.c.b16 %v158, %v157
  %v207 = vpack.c.b16 %v160, %v159
  %v208 = vpack.c.b16 %v162, %v161
  %v209 = vpack.c.b16 %v164, %v163
  %v210 = vpack.c.b16 %v166, %v165
  %v211 = vpack.c.b16 %v168, %v167
  %v212 = vpack.c.b16 %v170, %v169
  %v213 = vpack.c.b16 %v172, %v171
  %v214 = vpack.c.b16 %v174, %v173
  %v215 = vpack.c.b16 %v176, %v175
  %v216 = vpack.c.b16 %v178, %v177
  %v217 = vpack.c.b16 %v180, %v179
  %v218 = vpack.c.b16 %v182, %v181
  %v219 = vpack.c.b16 %v184, %v183
  %v220 = vpack.c.b16 %v186, %v185
  %v221 = vpack.c.b16 %v188, %v187
  %v222 = vpack.c.b16 %v190, %v189
  %v223 = vpack.c.b16 %v192, %v191
  %v224 = vpack.c.b16 %v194, %v193
  %v225 = vpack.c.b16 %v196, %v195
  %v226 = vpack.c.b16 %v198, %v197
  %v229 = vunpack.c.l.b16 %v83
  %v230 = vunpack.c.l.b16 %v84
  %v231 = vpack.c.b16 %v230, %v229
  %232 = vrot.lane.b32.xlu0 %v200, 32
  %v233 = vpop.permute.xlu0 %232
  %234 = vrot.lane.b32.xlu0 %v201, 32
  %v235 = vpop.permute.xlu0 %234
  %236 = vrot.lane.b32.xlu0 %v202, 32
  %v237 = vpop.permute.xlu0 %236
  %238 = vrot.lane.b32.xlu0 %v203, 32
  %v239 = vpop.permute.xlu0 %238
  %240 = vrot.lane.b32.xlu0 %v204, 32
  %v241 = vpop.permute.xlu0 %240
  %242 = vrot.lane.b32.xlu0 %v205, 32
  %v243 = vpop.permute.xlu0 %242
  %244 = vrot.lane.b32.xlu0 %v206, 32
  %v245 = vpop.permute.xlu0 %244
  %246 = vrot.lane.b32.xlu0 %v207, 32
  %v247 = vpop.permute.xlu0 %246
  %248 = vrot.lane.b32.xlu0 %v208, 32
  %v249 = vpop.permute.xlu0 %248
  %250 = vrot.lane.b32.xlu0 %v209, 32
  %v251 = vpop.permute.xlu0 %250
  %252 = vrot.lane.b32.xlu0 %v210, 32
  %v253 = vpop.permute.xlu0 %252
  %254 = vrot.lane.b32.xlu0 %v211, 32
  %v255 = vpop.permute.xlu0 %254
  %256 = vrot.lane.b32.xlu0 %v212, 32
  %v257 = vpop.permute.xlu0 %256
  %258 = vrot.lane.b32.xlu0 %v213, 32
  %v259 = vpop.permute.xlu0 %258
  %260 = vrot.lane.b32.xlu0 %v214, 32
  %v261 = vpop.permute.xlu0 %260
  %262 = vrot.lane.b32.xlu0 %v215, 32
  %v263 = vpop.permute.xlu0 %262
  %264 = vrot.lane.b32.xlu0 %v216, 32
  %v265 = vpop.permute.xlu0 %264
  %266 = vrot.lane.b32.xlu0 %v217, 32
  %v267 = vpop.permute.xlu0 %266
  %268 = vrot.lane.b32.xlu0 %v218, 32
  %v269 = vpop.permute.xlu0 %268
  %270 = vrot.lane.b32.xlu0 %v219, 32
  %v271 = vpop.permute.xlu0 %270
  %272 = vrot.lane.b32.xlu0 %v220, 32
  %v273 = vpop.permute.xlu0 %272
  %274 = vrot.lane.b32.xlu0 %v221, 32
  %v275 = vpop.permute.xlu0 %274
  %276 = vrot.lane.b32.xlu0 %v222, 32
  %v277 = vpop.permute.xlu0 %276
  %278 = vrot.lane.b32.xlu0 %v223, 32
  %v279 = vpop.permute.xlu0 %278
  %280 = vrot.lane.b32.xlu0 %v224, 32
  %v281 = vpop.permute.xlu0 %280
  %282 = vrot.lane.b32.xlu0 %v225, 32
  %v283 = vpop.permute.xlu0 %282
  %284 = vrot.lane.b32.xlu0 %v226, 32
  %v285 = vpop.permute.xlu0 %284
  %286 = vrot.lane.b32.xlu0 %v231, 32
  %v287 = vpop.permute.xlu0 %286
  %v290 = vunpack.c.l.b16 %v85
  %v291 = vunpack.c.l.b16 %v86
  %v292 = vpack.c.b16 %v291, %v290
  %293 = vrot.lane.b32.xlu0 %v201, 64
  %v294 = vpop.permute.xlu0 %293
  %295 = vrot.lane.b32.xlu0 %v202, 64
  %v296 = vpop.permute.xlu0 %295
  %297 = vrot.lane.b32.xlu0 %v203, 64
  %v298 = vpop.permute.xlu0 %297
  %299 = vrot.lane.b32.xlu0 %v204, 64
  %v300 = vpop.permute.xlu0 %299
  %301 = vrot.lane.b32.xlu0 %v205, 64
  %v302 = vpop.permute.xlu0 %301
  %303 = vrot.lane.b32.xlu0 %v206, 64
  %v304 = vpop.permute.xlu0 %303
  %305 = vrot.lane.b32.xlu0 %v207, 64
  %v306 = vpop.permute.xlu0 %305
  %307 = vrot.lane.b32.xlu0 %v208, 64
  %v308 = vpop.permute.xlu0 %307
  %309 = vrot.lane.b32.xlu0 %v209, 64
  %v310 = vpop.permute.xlu0 %309
  %311 = vrot.lane.b32.xlu0 %v210, 64
  %v312 = vpop.permute.xlu0 %311
  %313 = vrot.lane.b32.xlu0 %v211, 64
  %v314 = vpop.permute.xlu0 %313
  %315 = vrot.lane.b32.xlu0 %v212, 64
  %v316 = vpop.permute.xlu0 %315
  %317 = vrot.lane.b32.xlu0 %v213, 64
  %v318 = vpop.permute.xlu0 %317
  %319 = vrot.lane.b32.xlu0 %v214, 64
  %v320 = vpop.permute.xlu0 %319
  %321 = vrot.lane.b32.xlu0 %v215, 64
  %v322 = vpop.permute.xlu0 %321
  %323 = vrot.lane.b32.xlu0 %v216, 64
  %v324 = vpop.permute.xlu0 %323
  %325 = vrot.lane.b32.xlu0 %v217, 64
  %v326 = vpop.permute.xlu0 %325
  %327 = vrot.lane.b32.xlu0 %v218, 64
  %v328 = vpop.permute.xlu0 %327
  %329 = vrot.lane.b32.xlu0 %v219, 64
  %v330 = vpop.permute.xlu0 %329
  %331 = vrot.lane.b32.xlu0 %v220, 64
  %v332 = vpop.permute.xlu0 %331
  %333 = vrot.lane.b32.xlu0 %v221, 64
  %v334 = vpop.permute.xlu0 %333
  %335 = vrot.lane.b32.xlu0 %v222, 64
  %v336 = vpop.permute.xlu0 %335
  %337 = vrot.lane.b32.xlu0 %v223, 64
  %v338 = vpop.permute.xlu0 %337
  %339 = vrot.lane.b32.xlu0 %v224, 64
  %v340 = vpop.permute.xlu0 %339
  %341 = vrot.lane.b32.xlu0 %v225, 64
  %v342 = vpop.permute.xlu0 %341
  %343 = vrot.lane.b32.xlu0 %v226, 64
  %v344 = vpop.permute.xlu0 %343
  %345 = vrot.lane.b32.xlu0 %v231, 64
  %v346 = vpop.permute.xlu0 %345
  %347 = vrot.lane.b32.xlu0 %v292, 64
  %v348 = vpop.permute.xlu0 %347
  %vm349 = vcmask 261120
  %v352 = vsel %vm349, %v199, %v233
  %v355 = vsel %vm349, %v200, %v235
  %v358 = vsel %vm349, %v201, %v237
  %v361 = vsel %vm349, %v202, %v239
  %v364 = vsel %vm349, %v203, %v241
  %v367 = vsel %vm349, %v204, %v243
  %v370 = vsel %vm349, %v205, %v245
  %v373 = vsel %vm349, %v206, %v247
  %v376 = vsel %vm349, %v207, %v249
  %v379 = vsel %vm349, %v208, %v251
  %v382 = vsel %vm349, %v209, %v253
  %v385 = vsel %vm349, %v210, %v255
  %v388 = vsel %vm349, %v211, %v257
  %v391 = vsel %vm349, %v212, %v259
  %v394 = vsel %vm349, %v213, %v261
  %v397 = vsel %vm349, %v214, %v263
  %v400 = vsel %vm349, %v215, %v265
  %v403 = vsel %vm349, %v216, %v267
  %v406 = vsel %vm349, %v217, %v269
  %v409 = vsel %vm349, %v218, %v271
  %v412 = vsel %vm349, %v219, %v273
  %v415 = vsel %vm349, %v220, %v275
  %v418 = vsel %vm349, %v221, %v277
  %v421 = vsel %vm349, %v222, %v279
  %v424 = vsel %vm349, %v223, %v281
  %v427 = vsel %vm349, %v224, %v283
  %v430 = vsel %vm349, %v225, %v285
  %v433 = vsel %vm349, %v226, %v287
  %vm434 = vcmask 523264
  %v436 = vsel %vm434, %v352, %v294
  %v438 = vsel %vm434, %v355, %v296
  %v440 = vsel %vm434, %v358, %v298
  %v442 = vsel %vm434, %v361, %v300
  %v444 = vsel %vm434, %v364, %v302
  %v446 = vsel %vm434, %v367, %v304
  %v448 = vsel %vm434, %v370, %v306
  %v450 = vsel %vm434, %v373, %v308
  %v452 = vsel %vm434, %v376, %v310
  %v454 = vsel %vm434, %v379, %v312
  %v456 = vsel %vm434, %v382, %v314
  %v458 = vsel %vm434, %v385, %v316
  %v460 = vsel %vm434, %v388, %v318
  %v462 = vsel %vm434, %v391, %v320
  %v464 = vsel %vm434, %v394, %v322
  %v466 = vsel %vm434, %v397, %v324
  %v468 = vsel %vm434, %v400, %v326
  %v470 = vsel %vm434, %v403, %v328
  %v472 = vsel %vm434, %v406, %v330
  %v474 = vsel %vm434, %v409, %v332
  %v476 = vsel %vm434, %v412, %v334
  %v478 = vsel %vm434, %v415, %v336
  %v480 = vsel %vm434, %v418, %v338
  %v482 = vsel %vm434, %v421, %v340
  %v484 = vsel %vm434, %v424, %v342
  %v486 = vsel %vm434, %v427, %v344
  %v488 = vsel %vm434, %v430, %v346
  %v490 = vsel %vm434, %v433, %v348
  %v491 = vld [vmem:[%s1] sm:$0xff]
  %v492 = vld [vmem:[%s1 + $0x8] sm:$0xff]
  %v493 = vld [vmem:[%s1 + $0x10] sm:$0xff]
  %v494 = vld [vmem:[%s1 + $0x18] sm:$0xff]
  %v495 = vld [vmem:[%s1 + $0x20] sm:$0xff]
  %v496 = vld [vmem:[%s1 + $0x28] sm:$0xff]
  %v497 = vld [vmem:[%s1 + $0x30] sm:$0xff]
  %v498 = vld [vmem:[%s1 + $0x38] sm:$0xff]
  %v499 = vld [vmem:[%s1 + $0x40] sm:$0xff]
  %v500 = vld [vmem:[%s1 + $0x48] sm:$0xff]
  %v501 = vld [vmem:[%s1 + $0x50] sm:$0xff]
  %v502 = vld [vmem:[%s1 + $0x58] sm:$0xff]
  %v503 = vld [vmem:[%s2] sm:$0x3]
  %v505 = vlaneseq
  %v506 = vshrl.u32 %v505, 7
  %v507 = vsub.s32 0, %v506
  %v508 = vrot.slane %v503, %v507
  %v509 = vlaneseq
  %v510 = vshrl.u32 %v509, 7
  %v511 = vsub.s32 1, %v510
  %v512 = vrot.slane %v503, %v511
  %v527 = vunpack.c.l.b16 %v491
  %v528 = vunpack.c.h.b16 %v491
  %v529 = vunpack.c.l.b16 %v492
  %v530 = vunpack.c.h.b16 %v492
  %v531 = vunpack.c.l.b16 %v493
  %v532 = vunpack.c.h.b16 %v493
  %v533 = vunpack.c.l.b16 %v494
  %v534 = vunpack.c.h.b16 %v494
  %v535 = vunpack.c.l.b16 %v495
  %v536 = vunpack.c.h.b16 %v495
  %v537 = vunpack.c.l.b16 %v496
  %v538 = vunpack.c.h.b16 %v496
  %v539 = vunpack.c.l.b16 %v497
  %v540 = vunpack.c.h.b16 %v497
  %v541 = vunpack.c.l.b16 %v498
  %v542 = vunpack.c.h.b16 %v498
  %v543 = vunpack.c.l.b16 %v499
  %v544 = vunpack.c.h.b16 %v499
  %v545 = vunpack.c.l.b16 %v500
  %v546 = vunpack.c.h.b16 %v500
  %v547 = vunpack.c.l.b16 %v501
  %v548 = vunpack.c.h.b16 %v501
  %v549 = vunpack.c.l.b16 %v502
  %v550 = vunpack.c.h.b16 %v502
  %v551 = vpack.c.b16 %v529, %v527
  %v552 = vpack.c.b16 %v530, %v528
  %v553 = vpack.c.b16 %v533, %v531
  %v554 = vpack.c.b16 %v534, %v532
  %v555 = vpack.c.b16 %v537, %v535
  %v556 = vpack.c.b16 %v538, %v536
  %v557 = vpack.c.b16 %v541, %v539
  %v558 = vpack.c.b16 %v542, %v540
  %v559 = vpack.c.b16 %v545, %v543
  %v560 = vpack.c.b16 %v546, %v544
  %v561 = vpack.c.b16 %v549, %v547
  %v562 = vpack.c.b16 %v550, %v548
  %vm575 = vcmask 785408
  %v576 = vsel %vm575, %v436, 0
  %v578 = vsel %vm575, %v438, 0
  %v580 = vsel %vm575, %v440, 0
  %v582 = vsel %vm575, %v442, 0
  %v584 = vsel %vm575, %v444, 0
  %v586 = vsel %vm575, %v446, 0
  %v588 = vsel %vm575, %v448, 0
  %v590 = vsel %vm575, %v450, 0
  %v592 = vsel %vm575, %v452, 0
  %v594 = vsel %vm575, %v454, 0
  %v596 = vsel %vm575, %v456, 0
  %v598 = vsel %vm575, %v458, 0
  %v600 = vsel %vm575, %v460, 0
  %v602 = vsel %vm575, %v462, 0
  %v604 = vsel %vm575, %v464, 0
  %v606 = vsel %vm575, %v466, 0
  %v608 = vsel %vm575, %v468, 0
  %v610 = vsel %vm575, %v470, 0
  %v612 = vsel %vm575, %v472, 0
  %v614 = vsel %vm575, %v474, 0
  %v616 = vsel %vm575, %v476, 0
  %v618 = vsel %vm575, %v478, 0
  %v620 = vsel %vm575, %v480, 0
  %v622 = vsel %vm575, %v482, 0
  %v624 = vsel %vm575, %v484, 0
  %v626 = vsel %vm575, %v486, 0
  %v628 = vsel %vm575, %v488, 0
  %v630 = vsel %vm575, %v490, 0
  %632 = vmatprep.subr.bf16.mxu0 0
  %633 = vmatpush1.bf16.msra.mxu0 0
  %634 = vmatprep.subr.bf16.mxu0 0
  %635 = vmatpush1.bf16.msra.mxu0 0
  %636 = vmatprep.subr.bf16.mxu0 %v562
  %637 = vmatpush1.bf16.msra.mxu0 %v561
  %638 = vmatprep.subr.bf16.mxu0 %v560
  %639 = vmatpush1.bf16.msra.mxu0 %v559
  %640 = vmatprep.subr.bf16.mxu0 %v558
  %641 = vmatpush1.bf16.msra.mxu0 %v557
  %642 = vmatprep.subr.bf16.mxu0 %v556
  %643 = vmatpush1.bf16.msra.mxu0 %v555
  %644 = vmatprep.subr.bf16.mxu0 %v554
  %645 = vmatpush1.bf16.msra.mxu0 %v553
  %646 = vmatprep.subr.bf16.mxu0 %v552
  %647 = vmatpush1.bf16.msra.mxu0 %v551
  %648 = vmatprep.subr.bf16.mxu0 0
  %649 = vmatpush2.bf16.msra.mxu0 0
  %650 = vmatprep.subr.bf16.mxu0 0
  %651 = vmatpush2.bf16.msra.mxu0 0
  %652 = vmatprep.subr.bf16.mxu0 0
  %653 = vmatpush2.bf16.msra.mxu0 0
  %654 = vmatprep.subr.bf16.mxu0 0
  %655 = vmatpush2.bf16.msra.mxu0 0
  %656 = vmatprep.subr.bf16.mxu0 0
  %657 = vmatpush2.bf16.msra.mxu0 0
  %658 = vmatprep.subr.bf16.mxu0 0
  %659 = vmatpush2.bf16.msra.mxu0 0
  %660 = vmatprep.subr.bf16.mxu0 0
  %661 = vmatpush2.bf16.msra.mxu0 0
  %662 = vmatprep.subr.bf16.mxu0 0
  %663 = vmatpush2.bf16.msra.mxu0 0
  %664 = vmatprep.mubr.bf16.mxu0 0
  %665 = vmatmul.mubr.bf16.gmra.mxu0 %v576
  %v666 = vpop.f32.mrf.mxu0
  %v667 = vadd.f32 %v508, %v666
  %v668 = vpop.f32.mrf.mxu0
  %v669 = vadd.f32 %v512, %v668
  %v670 = vpop.f32.mrf.mxu0
  %v671 = vadd.f32 %v508, %v670
  %v672 = vpop.f32.mrf.mxu0
  %v673 = vadd.f32 %v512, %v672
  %674 = vmatprep.mubr.bf16.mxu0 0
  %675 = vmatmul.mubr.bf16.gmra.mxu0 %v578
  %v676 = vpop.f32.mrf.mxu0
  %v677 = vadd.f32 %v508, %v676
  %v678 = vpop.f32.mrf.mxu0
  %v679 = vadd.f32 %v512, %v678
  %v680 = vpop.f32.mrf.mxu0
  %v681 = vadd.f32 %v508, %v680
  %v682 = vpop.f32.mrf.mxu0
  %v683 = vadd.f32 %v512, %v682
  %684 = vmatprep.mubr.bf16.mxu0 0
  %685 = vmatmul.mubr.bf16.gmra.mxu0 %v580
  %v686 = vpop.f32.mrf.mxu0
  %v687 = vadd.f32 %v508, %v686
  %v688 = vpop.f32.mrf.mxu0
  %v689 = vadd.f32 %v512, %v688
  %v690 = vpop.f32.mrf.mxu0
  %v691 = vadd.f32 %v508, %v690
  %v692 = vpop.f32.mrf.mxu0
  %v693 = vadd.f32 %v512, %v692
  %694 = vmatprep.mubr.bf16.mxu0 0
  %695 = vmatmul.mubr.bf16.gmra.mxu0 %v582
  %v696 = vpop.f32.mrf.mxu0
  %v697 = vadd.f32 %v508, %v696
  %v698 = vpop.f32.mrf.mxu0
  %v699 = vadd.f32 %v512, %v698
  %v700 = vpop.f32.mrf.mxu0
  %v701 = vadd.f32 %v508, %v700
  %v702 = vpop.f32.mrf.mxu0
  %v703 = vadd.f32 %v512, %v702
  %704 = vmatprep.mubr.bf16.mxu0 0
  %705 = vmatmul.mubr.bf16.gmra.mxu0 %v584
  %v706 = vpop.f32.mrf.mxu0
  %v707 = vadd.f32 %v508, %v706
  %v708 = vpop.f32.mrf.mxu0
  %v709 = vadd.f32 %v512, %v708
  %v710 = vpop.f32.mrf.mxu0
  %v711 = vadd.f32 %v508, %v710
  %v712 = vpop.f32.mrf.mxu0
  %v713 = vadd.f32 %v512, %v712
  %714 = vmatprep.mubr.bf16.mxu0 0
  %715 = vmatmul.mubr.bf16.gmra.mxu0 %v586
  %v716 = vpop.f32.mrf.mxu0
  %v717 = vadd.f32 %v508, %v716
  %v718 = vpop.f32.mrf.mxu0
  %v719 = vadd.f32 %v512, %v718
  %v720 = vpop.f32.mrf.mxu0
  %v721 = vadd.f32 %v508, %v720
  %v722 = vpop.f32.mrf.mxu0
  %v723 = vadd.f32 %v512, %v722
  %724 = vmatprep.mubr.bf16.mxu0 0
  %725 = vmatmul.mubr.bf16.gmra.mxu0 %v588
  %v726 = vpop.f32.mrf.mxu0
  %v727 = vadd.f32 %v508, %v726
  %v728 = vpop.f32.mrf.mxu0
  %v729 = vadd.f32 %v512, %v728
  %v730 = vpop.f32.mrf.mxu0
  %v731 = vadd.f32 %v508, %v730
  %v732 = vpop.f32.mrf.mxu0
  %v733 = vadd.f32 %v512, %v732
  %734 = vmatprep.mubr.bf16.mxu0 0
  %735 = vmatmul.mubr.bf16.gmra.mxu0 %v590
  %v736 = vpop.f32.mrf.mxu0
  %v737 = vadd.f32 %v508, %v736
  %v738 = vpop.f32.mrf.mxu0
  %v739 = vadd.f32 %v512, %v738
  %v740 = vpop.f32.mrf.mxu0
  %v741 = vadd.f32 %v508, %v740
  %v742 = vpop.f32.mrf.mxu0
  %v743 = vadd.f32 %v512, %v742
  %744 = vmatprep.mubr.bf16.mxu0 0
  %745 = vmatmul.mubr.bf16.gmra.mxu0 %v592
  %v746 = vpop.f32.mrf.mxu0
  %v747 = vadd.f32 %v508, %v746
  %v748 = vpop.f32.mrf.mxu0
  %v749 = vadd.f32 %v512, %v748
  %v750 = vpop.f32.mrf.mxu0
  %v751 = vadd.f32 %v508, %v750
  %v752 = vpop.f32.mrf.mxu0
  %v753 = vadd.f32 %v512, %v752
  %754 = vmatprep.mubr.bf16.mxu0 0
  %755 = vmatmul.mubr.bf16.gmra.mxu0 %v594
  %v756 = vpop.f32.mrf.mxu0
  %v757 = vadd.f32 %v508, %v756
  %v758 = vpop.f32.mrf.mxu0
  %v759 = vadd.f32 %v512, %v758
  %v760 = vpop.f32.mrf.mxu0
  %v761 = vadd.f32 %v508, %v760
  %v762 = vpop.f32.mrf.mxu0
  %v763 = vadd.f32 %v512, %v762
  %764 = vmatprep.mubr.bf16.mxu0 0
  %765 = vmatmul.mubr.bf16.gmra.mxu0 %v596
  %v766 = vpop.f32.mrf.mxu0
  %v767 = vadd.f32 %v508, %v766
  %v768 = vpop.f32.mrf.mxu0
  %v769 = vadd.f32 %v512, %v768
  %v770 = vpop.f32.mrf.mxu0
  %v771 = vadd.f32 %v508, %v770
  %v772 = vpop.f32.mrf.mxu0
  %v773 = vadd.f32 %v512, %v772
  %774 = vmatprep.mubr.bf16.mxu0 0
  %775 = vmatmul.mubr.bf16.gmra.mxu0 %v598
  %v776 = vpop.f32.mrf.mxu0
  %v777 = vadd.f32 %v508, %v776
  %v778 = vpop.f32.mrf.mxu0
  %v779 = vadd.f32 %v512, %v778
  %v780 = vpop.f32.mrf.mxu0
  %v781 = vadd.f32 %v508, %v780
  %v782 = vpop.f32.mrf.mxu0
  %v783 = vadd.f32 %v512, %v782
  %784 = vmatprep.mubr.bf16.mxu0 0
  %785 = vmatmul.mubr.bf16.gmra.mxu0 %v600
  %v786 = vpop.f32.mrf.mxu0
  %v787 = vadd.f32 %v508, %v786
  %v788 = vpop.f32.mrf.mxu0
  %v789 = vadd.f32 %v512, %v788
  %v790 = vpop.f32.mrf.mxu0
  %v791 = vadd.f32 %v508, %v790
  %v792 = vpop.f32.mrf.mxu0
  %v793 = vadd.f32 %v512, %v792
  %794 = vmatprep.mubr.bf16.mxu0 0
  %795 = vmatmul.mubr.bf16.gmra.mxu0 %v602
  %v796 = vpop.f32.mrf.mxu0
  %v797 = vadd.f32 %v508, %v796
  %v798 = vpop.f32.mrf.mxu0
  %v799 = vadd.f32 %v512, %v798
  %v800 = vpop.f32.mrf.mxu0
  %v801 = vadd.f32 %v508, %v800
  %v802 = vpop.f32.mrf.mxu0
  %v803 = vadd.f32 %v512, %v802
  %804 = vmatprep.mubr.bf16.mxu0 0
  %805 = vmatmul.mubr.bf16.gmra.mxu0 %v604
  %v806 = vpop.f32.mrf.mxu0
  %v807 = vadd.f32 %v508, %v806
  %v808 = vpop.f32.mrf.mxu0
  %v809 = vadd.f32 %v512, %v808
  %v810 = vpop.f32.mrf.mxu0
  %v811 = vadd.f32 %v508, %v810
  %v812 = vpop.f32.mrf.mxu0
  %v813 = vadd.f32 %v512, %v812
  %814 = vmatprep.mubr.bf16.mxu0 0
  %815 = vmatmul.mubr.bf16.gmra.mxu0 %v606
  %v816 = vpop.f32.mrf.mxu0
  %v817 = vadd.f32 %v508, %v816
  %v818 = vpop.f32.mrf.mxu0
  %v819 = vadd.f32 %v512, %v818
  %v820 = vpop.f32.mrf.mxu0
  %v821 = vadd.f32 %v508, %v820
  %v822 = vpop.f32.mrf.mxu0
  %v823 = vadd.f32 %v512, %v822
  %824 = vmatprep.mubr.bf16.mxu0 0
  %825 = vmatmul.mubr.bf16.gmra.mxu0 %v608
  %v826 = vpop.f32.mrf.mxu0
  %v827 = vadd.f32 %v508, %v826
  %v828 = vpop.f32.mrf.mxu0
  %v829 = vadd.f32 %v512, %v828
  %v830 = vpop.f32.mrf.mxu0
  %v831 = vadd.f32 %v508, %v830
  %v832 = vpop.f32.mrf.mxu0
  %v833 = vadd.f32 %v512, %v832
  %834 = vmatprep.mubr.bf16.mxu0 0
  %835 = vmatmul.mubr.bf16.gmra.mxu0 %v610
  %v836 = vpop.f32.mrf.mxu0
  %v837 = vadd.f32 %v508, %v836
  %v838 = vpop.f32.mrf.mxu0
  %v839 = vadd.f32 %v512, %v838
  %v840 = vpop.f32.mrf.mxu0
  %v841 = vadd.f32 %v508, %v840
  %v842 = vpop.f32.mrf.mxu0
  %v843 = vadd.f32 %v512, %v842
  %844 = vmatprep.mubr.bf16.mxu0 0
  %845 = vmatmul.mubr.bf16.gmra.mxu0 %v612
  %v846 = vpop.f32.mrf.mxu0
  %v847 = vadd.f32 %v508, %v846
  %v848 = vpop.f32.mrf.mxu0
  %v849 = vadd.f32 %v512, %v848
  %v850 = vpop.f32.mrf.mxu0
  %v851 = vadd.f32 %v508, %v850
  %v852 = vpop.f32.mrf.mxu0
  %v853 = vadd.f32 %v512, %v852
  %854 = vmatprep.mubr.bf16.mxu0 0
  %855 = vmatmul.mubr.bf16.gmra.mxu0 %v614
  %v856 = vpop.f32.mrf.mxu0
  %v857 = vadd.f32 %v508, %v856
  %v858 = vpop.f32.mrf.mxu0
  %v859 = vadd.f32 %v512, %v858
  %v860 = vpop.f32.mrf.mxu0
  %v861 = vadd.f32 %v508, %v860
  %v862 = vpop.f32.mrf.mxu0
  %v863 = vadd.f32 %v512, %v862
  %864 = vmatprep.mubr.bf16.mxu0 0
  %865 = vmatmul.mubr.bf16.gmra.mxu0 %v616
  %v866 = vpop.f32.mrf.mxu0
  %v867 = vadd.f32 %v508, %v866
  %v868 = vpop.f32.mrf.mxu0
  %v869 = vadd.f32 %v512, %v868
  %v870 = vpop.f32.mrf.mxu0
  %v871 = vadd.f32 %v508, %v870
  %v872 = vpop.f32.mrf.mxu0
  %v873 = vadd.f32 %v512, %v872
  %874 = vmatprep.mubr.bf16.mxu0 0
  %875 = vmatmul.mubr.bf16.gmra.mxu0 %v618
  %v876 = vpop.f32.mrf.mxu0
  %v877 = vadd.f32 %v508, %v876
  %v878 = vpop.f32.mrf.mxu0
  %v879 = vadd.f32 %v512, %v878
  %v880 = vpop.f32.mrf.mxu0
  %v881 = vadd.f32 %v508, %v880
  %v882 = vpop.f32.mrf.mxu0
  %v883 = vadd.f32 %v512, %v882
  %884 = vmatprep.mubr.bf16.mxu0 0
  %885 = vmatmul.mubr.bf16.gmra.mxu0 %v620
  %v886 = vpop.f32.mrf.mxu0
  %v887 = vadd.f32 %v508, %v886
  %v888 = vpop.f32.mrf.mxu0
  %v889 = vadd.f32 %v512, %v888
  %v890 = vpop.f32.mrf.mxu0
  %v891 = vadd.f32 %v508, %v890
  %v892 = vpop.f32.mrf.mxu0
  %v893 = vadd.f32 %v512, %v892
  %894 = vmatprep.mubr.bf16.mxu0 0
  %895 = vmatmul.mubr.bf16.gmra.mxu0 %v622
  %v896 = vpop.f32.mrf.mxu0
  %v897 = vadd.f32 %v508, %v896
  %v898 = vpop.f32.mrf.mxu0
  %v899 = vadd.f32 %v512, %v898
  %v900 = vpop.f32.mrf.mxu0
  %v901 = vadd.f32 %v508, %v900
  %v902 = vpop.f32.mrf.mxu0
  %v903 = vadd.f32 %v512, %v902
  %904 = vmatprep.mubr.bf16.mxu0 0
  %905 = vmatmul.mubr.bf16.gmra.mxu0 %v624
  %v906 = vpop.f32.mrf.mxu0
  %v907 = vadd.f32 %v508, %v906
  %v908 = vpop.f32.mrf.mxu0
  %v909 = vadd.f32 %v512, %v908
  %v910 = vpop.f32.mrf.mxu0
  %v911 = vadd.f32 %v508, %v910
  %v912 = vpop.f32.mrf.mxu0
  %v913 = vadd.f32 %v512, %v912
  %914 = vmatprep.mubr.bf16.mxu0 0
  %915 = vmatmul.mubr.bf16.gmra.mxu0 %v626
  %v916 = vpop.f32.mrf.mxu0
  %v917 = vadd.f32 %v508, %v916
  %v918 = vpop.f32.mrf.mxu0
  %v919 = vadd.f32 %v512, %v918
  %v920 = vpop.f32.mrf.mxu0
  %v921 = vadd.f32 %v508, %v920
  %v922 = vpop.f32.mrf.mxu0
  %v923 = vadd.f32 %v512, %v922
  %924 = vmatprep.mubr.bf16.mxu0 0
  %925 = vmatmul.mubr.bf16.gmra.mxu0 %v628
  %v926 = vpop.f32.mrf.mxu0
  %v927 = vadd.f32 %v508, %v926
  %v928 = vpop.f32.mrf.mxu0
  %v929 = vadd.f32 %v512, %v928
  %v930 = vpop.f32.mrf.mxu0
  %v931 = vadd.f32 %v508, %v930
  %v932 = vpop.f32.mrf.mxu0
  %v933 = vadd.f32 %v512, %v932
  %934 = vmatprep.mubr.bf16.mxu0 0
  %935 = vmatmul.mubr.bf16.gmra.mxu0 %v630
  %v936 = vpop.f32.mrf.mxu0
  %v937 = vadd.f32 %v508, %v936
  %v938 = vpop.f32.mrf.mxu0
  %v939 = vadd.f32 %v512, %v938
  %v940 = vpop.f32.mrf.mxu0
  %v941 = vadd.f32 %v508, %v940
  %v942 = vpop.f32.mrf.mxu0
  %v943 = vadd.f32 %v512, %v942
  %944 = vdwg.mxu0
  %v945 = vmax.f32 %v667, 0.0
  %v946 = vmax.f32 %v669, 0.0
  %v947 = vmax.f32 %v671, 0.0
  %v948 = vmax.f32 %v673, 0.0
  %v949 = vmax.f32 %v677, 0.0
  %v950 = vmax.f32 %v679, 0.0
  %v951 = vmax.f32 %v681, 0.0
  %v952 = vmax.f32 %v683, 0.0
  %v953 = vmax.f32 %v687, 0.0
  %v954 = vmax.f32 %v689, 0.0
  %v955 = vmax.f32 %v691, 0.0
  %v956 = vmax.f32 %v693, 0.0
  %v957 = vmax.f32 %v697, 0.0
  %v958 = vmax.f32 %v699, 0.0
  %v959 = vmax.f32 %v701, 0.0
  %v960 = vmax.f32 %v703, 0.0
  %v961 = vmax.f32 %v707, 0.0
  %v962 = vmax.f32 %v709, 0.0
  %v963 = vmax.f32 %v711, 0.0
  %v964 = vmax.f32 %v713, 0.0
  %v965 = vmax.f32 %v717, 0.0
  %v966 = vmax.f32 %v719, 0.0
  %v967 = vmax.f32 %v721, 0.0
  %v968 = vmax.f32 %v723, 0.0
  %v969 = vmax.f32 %v727, 0.0
  %v970 = vmax.f32 %v729, 0.0
  %v971 = vmax.f32 %v731, 0.0
  %v972 = vmax.f32 %v733, 0.0
  %v973 = vmax.f32 %v737, 0.0
  %v974 = vmax.f32 %v739, 0.0
  %v975 = vmax.f32 %v741, 0.0
  %v976 = vmax.f32 %v743, 0.0
  %v977 = vmax.f32 %v747, 0.0
  %v978 = vmax.f32 %v749, 0.0
  %v979 = vmax.f32 %v751, 0.0
  %v980 = vmax.f32 %v753, 0.0
  %v981 = vmax.f32 %v757, 0.0
  %v982 = vmax.f32 %v759, 0.0
  %v983 = vmax.f32 %v761, 0.0
  %v984 = vmax.f32 %v763, 0.0
  %v985 = vmax.f32 %v767, 0.0
  %v986 = vmax.f32 %v769, 0.0
  %v987 = vmax.f32 %v771, 0.0
  %v988 = vmax.f32 %v773, 0.0
  %v989 = vmax.f32 %v777, 0.0
  %v990 = vmax.f32 %v779, 0.0
  %v991 = vmax.f32 %v781, 0.0
  %v992 = vmax.f32 %v783, 0.0
  %v993 = vmax.f32 %v787, 0.0
  %v994 = vmax.f32 %v789, 0.0
  %v995 = vmax.f32 %v791, 0.0
  %v996 = vmax.f32 %v793, 0.0
  %v997 = vmax.f32 %v797, 0.0
  %v998 = vmax.f32 %v799, 0.0
  %v999 = vmax.f32 %v801, 0.0
  %v1000 = vmax.f32 %v803, 0.0
  %v1001 = vmax.f32 %v807, 0.0
  %v1002 = vmax.f32 %v809, 0.0
  %v1003 = vmax.f32 %v811, 0.0
  %v1004 = vmax.f32 %v813, 0.0
  %v1005 = vmax.f32 %v817, 0.0
  %v1006 = vmax.f32 %v819, 0.0
  %v1007 = vmax.f32 %v821, 0.0
  %v1008 = vmax.f32 %v823, 0.0
  %v1009 = vmax.f32 %v827, 0.0
  %v1010 = vmax.f32 %v829, 0.0
  %v1011 = vmax.f32 %v831, 0.0
  %v1012 = vmax.f32 %v833, 0.0
  %v1013 = vmax.f32 %v837, 0.0
  %v1014 = vmax.f32 %v839, 0.0
  %v1015 = vmax.f32 %v841, 0.0
  %v1016 = vmax.f32 %v843, 0.0
  %v1017 = vmax.f32 %v847, 0.0
  %v1018 = vmax.f32 %v849, 0.0
  %v1019 = vmax.f32 %v851, 0.0
  %v1020 = vmax.f32 %v853, 0.0
  %v1021 = vmax.f32 %v857, 0.0
  %v1022 = vmax.f32 %v859, 0.0
  %v1023 = vmax.f32 %v861, 0.0
  %v1024 = vmax.f32 %v863, 0.0
  %v1025 = vmax.f32 %v867, 0.0
  %v1026 = vmax.f32 %v869, 0.0
  %v1027 = vmax.f32 %v871, 0.0
  %v1028 = vmax.f32 %v873, 0.0
  %v1029 = vmax.f32 %v877, 0.0
  %v1030 = vmax.f32 %v879, 0.0
  %v1031 = vmax.f32 %v881, 0.0
  %v1032 = vmax.f32 %v883, 0.0
  %v1033 = vmax.f32 %v887, 0.0
  %v1034 = vmax.f32 %v889, 0.0
  %v1035 = vmax.f32 %v891, 0.0
  %v1036 = vmax.f32 %v893, 0.0
  %v1037 = vmax.f32 %v897, 0.0
  %v1038 = vmax.f32 %v899, 0.0
  %v1039 = vmax.f32 %v901, 0.0
  %v1040 = vmax.f32 %v903, 0.0
  %v1041 = vmax.f32 %v907, 0.0
  %v1042 = vmax.f32 %v909, 0.0
  %v1043 = vmax.f32 %v911, 0.0
  %v1044 = vmax.f32 %v913, 0.0
  %v1045 = vmax.f32 %v917, 0.0
  %v1046 = vmax.f32 %v919, 0.0
  %v1047 = vmax.f32 %v921, 0.0
  %v1048 = vmax.f32 %v923, 0.0
  %v1049 = vmax.f32 %v927, 0.0
  %v1050 = vmax.f32 %v929, 0.0
  %v1051 = vmax.f32 %v931, 0.0
  %v1052 = vmax.f32 %v933, 0.0
  %v1053 = vmax.f32 %v937, 0.0
  %v1054 = vmax.f32 %v939, 0.0
  %v1055 = vmax.f32 %v941, 0.0
  %v1056 = vmax.f32 %v943, 0.0
  %1169 = vrot.lane.b32.xlu0 %v945, 120
  %v1170 = vpop.permute.xlu0 %1169
  %1171 = vrot.lane.b32.xlu0 %v946, 120
  %v1172 = vpop.permute.xlu0 %1171
  %1173 = vrot.lane.b32.xlu0 %v947, 120
  %v1174 = vpop.permute.xlu0 %1173
  %1175 = vrot.lane.b32.xlu0 %v948, 120
  %v1176 = vpop.permute.xlu0 %1175
  %1177 = vrot.lane.b32.xlu0 %v949, 120
  %v1178 = vpop.permute.xlu0 %1177
  %1179 = vrot.lane.b32.xlu0 %v950, 120
  %v1180 = vpop.permute.xlu0 %1179
  %1181 = vrot.lane.b32.xlu0 %v951, 120
  %v1182 = vpop.permute.xlu0 %1181
  %1183 = vrot.lane.b32.xlu0 %v952, 120
  %v1184 = vpop.permute.xlu0 %1183
  %1185 = vrot.lane.b32.xlu0 %v953, 120
  %v1186 = vpop.permute.xlu0 %1185
  %1187 = vrot.lane.b32.xlu0 %v954, 120
  %v1188 = vpop.permute.xlu0 %1187
  %1189 = vrot.lane.b32.xlu0 %v955, 120
  %v1190 = vpop.permute.xlu0 %1189
  %1191 = vrot.lane.b32.xlu0 %v956, 120
  %v1192 = vpop.permute.xlu0 %1191
  %1193 = vrot.lane.b32.xlu0 %v957, 120
  %v1194 = vpop.permute.xlu0 %1193
  %1195 = vrot.lane.b32.xlu0 %v958, 120
  %v1196 = vpop.permute.xlu0 %1195
  %1197 = vrot.lane.b32.xlu0 %v959, 120
  %v1198 = vpop.permute.xlu0 %1197
  %1199 = vrot.lane.b32.xlu0 %v960, 120
  %v1200 = vpop.permute.xlu0 %1199
  %1201 = vrot.lane.b32.xlu0 %v961, 120
  %v1202 = vpop.permute.xlu0 %1201
  %1203 = vrot.lane.b32.xlu0 %v962, 120
  %v1204 = vpop.permute.xlu0 %1203
  %1205 = vrot.lane.b32.xlu0 %v963, 120
  %v1206 = vpop.permute.xlu0 %1205
  %1207 = vrot.lane.b32.xlu0 %v964, 120
  %v1208 = vpop.permute.xlu0 %1207
  %1209 = vrot.lane.b32.xlu0 %v965, 120
  %v1210 = vpop.permute.xlu0 %1209
  %1211 = vrot.lane.b32.xlu0 %v966, 120
  %v1212 = vpop.permute.xlu0 %1211
  %1213 = vrot.lane.b32.xlu0 %v967, 120
  %v1214 = vpop.permute.xlu0 %1213
  %1215 = vrot.lane.b32.xlu0 %v968, 120
  %v1216 = vpop.permute.xlu0 %1215
  %1217 = vrot.lane.b32.xlu0 %v969, 120
  %v1218 = vpop.permute.xlu0 %1217
  %1219 = vrot.lane.b32.xlu0 %v970, 120
  %v1220 = vpop.permute.xlu0 %1219
  %1221 = vrot.lane.b32.xlu0 %v971, 120
  %v1222 = vpop.permute.xlu0 %1221
  %1223 = vrot.lane.b32.xlu0 %v972, 120
  %v1224 = vpop.permute.xlu0 %1223
  %1225 = vrot.lane.b32.xlu0 %v973, 120
  %v1226 = vpop.permute.xlu0 %1225
  %1227 = vrot.lane.b32.xlu0 %v974, 120
  %v1228 = vpop.permute.xlu0 %1227
  %1229 = vrot.lane.b32.xlu0 %v975, 120
  %v1230 = vpop.permute.xlu0 %1229
  %1231 = vrot.lane.b32.xlu0 %v976, 120
  %v1232 = vpop.permute.xlu0 %1231
  %1233 = vrot.lane.b32.xlu0 %v977, 120
  %v1234 = vpop.permute.xlu0 %1233
  %1235 = vrot.lane.b32.xlu0 %v978, 120
  %v1236 = vpop.permute.xlu0 %1235
  %1237 = vrot.lane.b32.xlu0 %v979, 120
  %v1238 = vpop.permute.xlu0 %1237
  %1239 = vrot.lane.b32.xlu0 %v980, 120
  %v1240 = vpop.permute.xlu0 %1239
  %1241 = vrot.lane.b32.xlu0 %v981, 120
  %v1242 = vpop.permute.xlu0 %1241
  %1243 = vrot.lane.b32.xlu0 %v982, 120
  %v1244 = vpop.permute.xlu0 %1243
  %1245 = vrot.lane.b32.xlu0 %v983, 120
  %v1246 = vpop.permute.xlu0 %1245
  %1247 = vrot.lane.b32.xlu0 %v984, 120
  %v1248 = vpop.permute.xlu0 %1247
  %1249 = vrot.lane.b32.xlu0 %v985, 120
  %v1250 = vpop.permute.xlu0 %1249
  %1251 = vrot.lane.b32.xlu0 %v986, 120
  %v1252 = vpop.permute.xlu0 %1251
  %1253 = vrot.lane.b32.xlu0 %v987, 120
  %v1254 = vpop.permute.xlu0 %1253
  %1255 = vrot.lane.b32.xlu0 %v988, 120
  %v1256 = vpop.permute.xlu0 %1255
  %1257 = vrot.lane.b32.xlu0 %v989, 120
  %v1258 = vpop.permute.xlu0 %1257
  %1259 = vrot.lane.b32.xlu0 %v990, 120
  %v1260 = vpop.permute.xlu0 %1259
  %1261 = vrot.lane.b32.xlu0 %v991, 120
  %v1262 = vpop.permute.xlu0 %1261
  %1263 = vrot.lane.b32.xlu0 %v992, 120
  %v1264 = vpop.permute.xlu0 %1263
  %1265 = vrot.lane.b32.xlu0 %v993, 120
  %v1266 = vpop.permute.xlu0 %1265
  %1267 = vrot.lane.b32.xlu0 %v994, 120
  %v1268 = vpop.permute.xlu0 %1267
  %1269 = vrot.lane.b32.xlu0 %v995, 120
  %v1270 = vpop.permute.xlu0 %1269
  %1271 = vrot.lane.b32.xlu0 %v996, 120
  %v1272 = vpop.permute.xlu0 %1271
  %1273 = vrot.lane.b32.xlu0 %v997, 120
  %v1274 = vpop.permute.xlu0 %1273
  %1275 = vrot.lane.b32.xlu0 %v998, 120
  %v1276 = vpop.permute.xlu0 %1275
  %1277 = vrot.lane.b32.xlu0 %v999, 120
  %v1278 = vpop.permute.xlu0 %1277
  %1279 = vrot.lane.b32.xlu0 %v1000, 120
  %v1280 = vpop.permute.xlu0 %1279
  %1281 = vrot.lane.b32.xlu0 %v1001, 120
  %v1282 = vpop.permute.xlu0 %1281
  %1283 = vrot.lane.b32.xlu0 %v1002, 120
  %v1284 = vpop.permute.xlu0 %1283
  %1285 = vrot.lane.b32.xlu0 %v1003, 120
  %v1286 = vpop.permute.xlu0 %1285
  %1287 = vrot.lane.b32.xlu0 %v1004, 120
  %v1288 = vpop.permute.xlu0 %1287
  %1289 = vrot.lane.b32.xlu0 %v1005, 120
  %v1290 = vpop.permute.xlu0 %1289
  %1291 = vrot.lane.b32.xlu0 %v1006, 120
  %v1292 = vpop.permute.xlu0 %1291
  %1293 = vrot.lane.b32.xlu0 %v1007, 120
  %v1294 = vpop.permute.xlu0 %1293
  %1295 = vrot.lane.b32.xlu0 %v1008, 120
  %v1296 = vpop.permute.xlu0 %1295
  %1297 = vrot.lane.b32.xlu0 %v1009, 120
  %v1298 = vpop.permute.xlu0 %1297
  %1299 = vrot.lane.b32.xlu0 %v1010, 120
  %v1300 = vpop.permute.xlu0 %1299
  %1301 = vrot.lane.b32.xlu0 %v1011, 120
  %v1302 = vpop.permute.xlu0 %1301
  %1303 = vrot.lane.b32.xlu0 %v1012, 120
  %v1304 = vpop.permute.xlu0 %1303
  %1305 = vrot.lane.b32.xlu0 %v1013, 120
  %v1306 = vpop.permute.xlu0 %1305
  %1307 = vrot.lane.b32.xlu0 %v1014, 120
  %v1308 = vpop.permute.xlu0 %1307
  %1309 = vrot.lane.b32.xlu0 %v1015, 120
  %v1310 = vpop.permute.xlu0 %1309
  %1311 = vrot.lane.b32.xlu0 %v1016, 120
  %v1312 = vpop.permute.xlu0 %1311
  %1313 = vrot.lane.b32.xlu0 %v1017, 120
  %v1314 = vpop.permute.xlu0 %1313
  %1315 = vrot.lane.b32.xlu0 %v1018, 120
  %v1316 = vpop.permute.xlu0 %1315
  %1317 = vrot.lane.b32.xlu0 %v1019, 120
  %v1318 = vpop.permute.xlu0 %1317
  %1319 = vrot.lane.b32.xlu0 %v1020, 120
  %v1320 = vpop.permute.xlu0 %1319
  %1321 = vrot.lane.b32.xlu0 %v1021, 120
  %v1322 = vpop.permute.xlu0 %1321
  %1323 = vrot.lane.b32.xlu0 %v1022, 120
  %v1324 = vpop.permute.xlu0 %1323
  %1325 = vrot.lane.b32.xlu0 %v1023, 120
  %v1326 = vpop.permute.xlu0 %1325
  %1327 = vrot.lane.b32.xlu0 %v1024, 120
  %v1328 = vpop.permute.xlu0 %1327
  %1329 = vrot.lane.b32.xlu0 %v1025, 120
  %v1330 = vpop.permute.xlu0 %1329
  %1331 = vrot.lane.b32.xlu0 %v1026, 120
  %v1332 = vpop.permute.xlu0 %1331
  %1333 = vrot.lane.b32.xlu0 %v1027, 120
  %v1334 = vpop.permute.xlu0 %1333
  %1335 = vrot.lane.b32.xlu0 %v1028, 120
  %v1336 = vpop.permute.xlu0 %1335
  %1337 = vrot.lane.b32.xlu0 %v1029, 120
  %v1338 = vpop.permute.xlu0 %1337
  %1339 = vrot.lane.b32.xlu0 %v1030, 120
  %v1340 = vpop.permute.xlu0 %1339
  %1341 = vrot.lane.b32.xlu0 %v1031, 120
  %v1342 = vpop.permute.xlu0 %1341
  %1343 = vrot.lane.b32.xlu0 %v1032, 120
  %v1344 = vpop.permute.xlu0 %1343
  %1345 = vrot.lane.b32.xlu0 %v1033, 120
  %v1346 = vpop.permute.xlu0 %1345
  %1347 = vrot.lane.b32.xlu0 %v1034, 120
  %v1348 = vpop.permute.xlu0 %1347
  %1349 = vrot.lane.b32.xlu0 %v1035, 120
  %v1350 = vpop.permute.xlu0 %1349
  %1351 = vrot.lane.b32.xlu0 %v1036, 120
  %v1352 = vpop.permute.xlu0 %1351
  %1353 = vrot.lane.b32.xlu0 %v1037, 120
  %v1354 = vpop.permute.xlu0 %1353
  %1355 = vrot.lane.b32.xlu0 %v1038, 120
  %v1356 = vpop.permute.xlu0 %1355
  %1357 = vrot.lane.b32.xlu0 %v1039, 120
  %v1358 = vpop.permute.xlu0 %1357
  %1359 = vrot.lane.b32.xlu0 %v1040, 120
  %v1360 = vpop.permute.xlu0 %1359
  %1361 = vrot.lane.b32.xlu0 %v1041, 120
  %v1362 = vpop.permute.xlu0 %1361
  %1363 = vrot.lane.b32.xlu0 %v1042, 120
  %v1364 = vpop.permute.xlu0 %1363
  %1365 = vrot.lane.b32.xlu0 %v1043, 120
  %v1366 = vpop.permute.xlu0 %1365
  %1367 = vrot.lane.b32.xlu0 %v1044, 120
  %v1368 = vpop.permute.xlu0 %1367
  %1369 = vrot.lane.b32.xlu0 %v1045, 120
  %v1370 = vpop.permute.xlu0 %1369
  %1371 = vrot.lane.b32.xlu0 %v1046, 120
  %v1372 = vpop.permute.xlu0 %1371
  %1373 = vrot.lane.b32.xlu0 %v1047, 120
  %v1374 = vpop.permute.xlu0 %1373
  %1375 = vrot.lane.b32.xlu0 %v1048, 120
  %v1376 = vpop.permute.xlu0 %1375
  %1377 = vrot.lane.b32.xlu0 %v1049, 120
  %v1378 = vpop.permute.xlu0 %1377
  %1379 = vrot.lane.b32.xlu0 %v1050, 120
  %v1380 = vpop.permute.xlu0 %1379
  %1381 = vrot.lane.b32.xlu0 %v1051, 120
  %v1382 = vpop.permute.xlu0 %1381
  %1383 = vrot.lane.b32.xlu0 %v1052, 120
  %v1384 = vpop.permute.xlu0 %1383
  %1385 = vrot.lane.b32.xlu0 %v1053, 120
  %v1386 = vpop.permute.xlu0 %1385
  %1387 = vrot.lane.b32.xlu0 %v1054, 120
  %v1388 = vpop.permute.xlu0 %1387
  %1389 = vrot.lane.b32.xlu0 %v1055, 120
  %v1390 = vpop.permute.xlu0 %1389
  %1391 = vrot.lane.b32.xlu0 %v1056, 120
  %v1392 = vpop.permute.xlu0 %1391
  %vm1393 = vcmask 982016
  %v1394 = vsel %vm1393, %v1170, %v1172
  %v1395 = vsel %vm1393, %v1174, %v1176
  %v1396 = vsel %vm1393, %v1178, %v1180
  %v1397 = vsel %vm1393, %v1182, %v1184
  %v1398 = vsel %vm1393, %v1186, %v1188
  %v1399 = vsel %vm1393, %v1190, %v1192
  %v1400 = vsel %vm1393, %v1194, %v1196
  %v1401 = vsel %vm1393, %v1198, %v1200
  %v1402 = vsel %vm1393, %v1202, %v1204
  %v1403 = vsel %vm1393, %v1206, %v1208
  %v1404 = vsel %vm1393, %v1210, %v1212
  %v1405 = vsel %vm1393, %v1214, %v1216
  %v1406 = vsel %vm1393, %v1218, %v1220
  %v1407 = vsel %vm1393, %v1222, %v1224
  %v1408 = vsel %vm1393, %v1226, %v1228
  %v1409 = vsel %vm1393, %v1230, %v1232
  %v1410 = vsel %vm1393, %v1234, %v1236
  %v1411 = vsel %vm1393, %v1238, %v1240
  %v1412 = vsel %vm1393, %v1242, %v1244
  %v1413 = vsel %vm1393, %v1246, %v1248
  %v1414 = vsel %vm1393, %v1250, %v1252
  %v1415 = vsel %vm1393, %v1254, %v1256
  %v1416 = vsel %vm1393, %v1258, %v1260
  %v1417 = vsel %vm1393, %v1262, %v1264
  %v1418 = vsel %vm1393, %v1266, %v1268
  %v1419 = vsel %vm1393, %v1270, %v1272
  %v1420 = vsel %vm1393, %v1274, %v1276
  %v1421 = vsel %vm1393, %v1278, %v1280
  %v1422 = vsel %vm1393, %v1282, %v1284
  %v1423 = vsel %vm1393, %v1286, %v1288
  %v1424 = vsel %vm1393, %v1290, %v1292
  %v1425 = vsel %vm1393, %v1294, %v1296
  %v1426 = vsel %vm1393, %v1298, %v1300
  %v1427 = vsel %vm1393, %v1302, %v1304
  %v1428 = vsel %vm1393, %v1306, %v1308
  %v1429 = vsel %vm1393, %v1310, %v1312
  %v1430 = vsel %vm1393, %v1314, %v1316
  %v1431 = vsel %vm1393, %v1318, %v1320
  %v1432 = vsel %vm1393, %v1322, %v1324
  %v1433 = vsel %vm1393, %v1326, %v1328
  %v1434 = vsel %vm1393, %v1330, %v1332
  %v1435 = vsel %vm1393, %v1334, %v1336
  %v1436 = vsel %vm1393, %v1338, %v1340
  %v1437 = vsel %vm1393, %v1342, %v1344
  %v1438 = vsel %vm1393, %v1346, %v1348
  %v1439 = vsel %vm1393, %v1350, %v1352
  %v1440 = vsel %vm1393, %v1354, %v1356
  %v1441 = vsel %vm1393, %v1358, %v1360
  %v1442 = vsel %vm1393, %v1362, %v1364
  %v1443 = vsel %vm1393, %v1366, %v1368
  %v1444 = vsel %vm1393, %v1370, %v1372
  %v1445 = vsel %vm1393, %v1374, %v1376
  %v1446 = vsel %vm1393, %v1378, %v1380
  %v1447 = vsel %vm1393, %v1382, %v1384
  %v1448 = vsel %vm1393, %v1386, %v1388
  %v1449 = vsel %vm1393, %v1390, %v1392
  %1562 = vrot.lane.b32.xlu0 %v945, 88
  %v1563 = vpop.permute.xlu0 %1562
  %1564 = vrot.lane.b32.xlu0 %v947, 88
  %v1565 = vpop.permute.xlu0 %1564
  %1566 = vrot.lane.b32.xlu0 %v949, 88
  %v1567 = vpop.permute.xlu0 %1566
  %1568 = vrot.lane.b32.xlu0 %v951, 88
  %v1569 = vpop.permute.xlu0 %1568
  %1570 = vrot.lane.b32.xlu0 %v953, 88
  %v1571 = vpop.permute.xlu0 %1570
  %1572 = vrot.lane.b32.xlu0 %v955, 88
  %v1573 = vpop.permute.xlu0 %1572
  %1574 = vrot.lane.b32.xlu0 %v957, 88
  %v1575 = vpop.permute.xlu0 %1574
  %1576 = vrot.lane.b32.xlu0 %v959, 88
  %v1577 = vpop.permute.xlu0 %1576
  %1578 = vrot.lane.b32.xlu0 %v961, 88
  %v1579 = vpop.permute.xlu0 %1578
  %1580 = vrot.lane.b32.xlu0 %v963, 88
  %v1581 = vpop.permute.xlu0 %1580
  %1582 = vrot.lane.b32.xlu0 %v965, 88
  %v1583 = vpop.permute.xlu0 %1582
  %1584 = vrot.lane.b32.xlu0 %v967, 88
  %v1585 = vpop.permute.xlu0 %1584
  %1586 = vrot.lane.b32.xlu0 %v969, 88
  %v1587 = vpop.permute.xlu0 %1586
  %1588 = vrot.lane.b32.xlu0 %v971, 88
  %v1589 = vpop.permute.xlu0 %1588
  %1590 = vrot.lane.b32.xlu0 %v973, 88
  %v1591 = vpop.permute.xlu0 %1590
  %1592 = vrot.lane.b32.xlu0 %v975, 88
  %v1593 = vpop.permute.xlu0 %1592
  %1594 = vrot.lane.b32.xlu0 %v977, 88
  %v1595 = vpop.permute.xlu0 %1594
  %1596 = vrot.lane.b32.xlu0 %v979, 88
  %v1597 = vpop.permute.xlu0 %1596
  %1598 = vrot.lane.b32.xlu0 %v981, 88
  %v1599 = vpop.permute.xlu0 %1598
  %1600 = vrot.lane.b32.xlu0 %v983, 88
  %v1601 = vpop.permute.xlu0 %1600
  %1602 = vrot.lane.b32.xlu0 %v985, 88
  %v1603 = vpop.permute.xlu0 %1602
  %1604 = vrot.lane.b32.xlu0 %v987, 88
  %v1605 = vpop.permute.xlu0 %1604
  %1606 = vrot.lane.b32.xlu0 %v989, 88
  %v1607 = vpop.permute.xlu0 %1606
  %1608 = vrot.lane.b32.xlu0 %v991, 88
  %v1609 = vpop.permute.xlu0 %1608
  %1610 = vrot.lane.b32.xlu0 %v993, 88
  %v1611 = vpop.permute.xlu0 %1610
  %1612 = vrot.lane.b32.xlu0 %v995, 88
  %v1613 = vpop.permute.xlu0 %1612
  %1614 = vrot.lane.b32.xlu0 %v997, 88
  %v1615 = vpop.permute.xlu0 %1614
  %1616 = vrot.lane.b32.xlu0 %v999, 88
  %v1617 = vpop.permute.xlu0 %1616
  %1618 = vrot.lane.b32.xlu0 %v1001, 88
  %v1619 = vpop.permute.xlu0 %1618
  %1620 = vrot.lane.b32.xlu0 %v1003, 88
  %v1621 = vpop.permute.xlu0 %1620
  %1622 = vrot.lane.b32.xlu0 %v1005, 88
  %v1623 = vpop.permute.xlu0 %1622
  %1624 = vrot.lane.b32.xlu0 %v1007, 88
  %v1625 = vpop.permute.xlu0 %1624
  %1626 = vrot.lane.b32.xlu0 %v1009, 88
  %v1627 = vpop.permute.xlu0 %1626
  %1628 = vrot.lane.b32.xlu0 %v1011, 88
  %v1629 = vpop.permute.xlu0 %1628
  %1630 = vrot.lane.b32.xlu0 %v1013, 88
  %v1631 = vpop.permute.xlu0 %1630
  %1632 = vrot.lane.b32.xlu0 %v1015, 88
  %v1633 = vpop.permute.xlu0 %1632
  %1634 = vrot.lane.b32.xlu0 %v1017, 88
  %v1635 = vpop.permute.xlu0 %1634
  %1636 = vrot.lane.b32.xlu0 %v1019, 88
  %v1637 = vpop.permute.xlu0 %1636
  %1638 = vrot.lane.b32.xlu0 %v1021, 88
  %v1639 = vpop.permute.xlu0 %1638
  %1640 = vrot.lane.b32.xlu0 %v1023, 88
  %v1641 = vpop.permute.xlu0 %1640
  %1642 = vrot.lane.b32.xlu0 %v1025, 88
  %v1643 = vpop.permute.xlu0 %1642
  %1644 = vrot.lane.b32.xlu0 %v1027, 88
  %v1645 = vpop.permute.xlu0 %1644
  %1646 = vrot.lane.b32.xlu0 %v1029, 88
  %v1647 = vpop.permute.xlu0 %1646
  %1648 = vrot.lane.b32.xlu0 %v1031, 88
  %v1649 = vpop.permute.xlu0 %1648
  %1650 = vrot.lane.b32.xlu0 %v1033, 88
  %v1651 = vpop.permute.xlu0 %1650
  %1652 = vrot.lane.b32.xlu0 %v1035, 88
  %v1653 = vpop.permute.xlu0 %1652
  %1654 = vrot.lane.b32.xlu0 %v1037, 88
  %v1655 = vpop.permute.xlu0 %1654
  %1656 = vrot.lane.b32.xlu0 %v1039, 88
  %v1657 = vpop.permute.xlu0 %1656
  %1658 = vrot.lane.b32.xlu0 %v1041, 88
  %v1659 = vpop.permute.xlu0 %1658
  %1660 = vrot.lane.b32.xlu0 %v1043, 88
  %v1661 = vpop.permute.xlu0 %1660
  %1662 = vrot.lane.b32.xlu0 %v1045, 88
  %v1663 = vpop.permute.xlu0 %1662
  %1664 = vrot.lane.b32.xlu0 %v1047, 88
  %v1665 = vpop.permute.xlu0 %1664
  %1666 = vrot.lane.b32.xlu0 %v1049, 88
  %v1667 = vpop.permute.xlu0 %1666
  %1668 = vrot.lane.b32.xlu0 %v1051, 88
  %v1669 = vpop.permute.xlu0 %1668
  %1670 = vrot.lane.b32.xlu0 %v1053, 88
  %v1671 = vpop.permute.xlu0 %1670
  %1672 = vrot.lane.b32.xlu0 %v1055, 88
  %v1673 = vpop.permute.xlu0 %1672
  %vm1730 = vcmask 719872
  %v1731 = vsel %vm1730, %v1172, %v1563
  %v1732 = vsel %vm1730, %v1176, %v1565
  %v1733 = vsel %vm1730, %v1180, %v1567
  %v1734 = vsel %vm1730, %v1184, %v1569
  %v1735 = vsel %vm1730, %v1188, %v1571
  %v1736 = vsel %vm1730, %v1192, %v1573
  %v1737 = vsel %vm1730, %v1196, %v1575
  %v1738 = vsel %vm1730, %v1200, %v1577
  %v1739 = vsel %vm1730, %v1204, %v1579
  %v1740 = vsel %vm1730, %v1208, %v1581
  %v1741 = vsel %vm1730, %v1212, %v1583
  %v1742 = vsel %vm1730, %v1216, %v1585
  %v1743 = vsel %vm1730, %v1220, %v1587
  %v1744 = vsel %vm1730, %v1224, %v1589
  %v1745 = vsel %vm1730, %v1228, %v1591
  %v1746 = vsel %vm1730, %v1232, %v1593
  %v1747 = vsel %vm1730, %v1236, %v1595
  %v1748 = vsel %vm1730, %v1240, %v1597
  %v1749 = vsel %vm1730, %v1244, %v1599
  %v1750 = vsel %vm1730, %v1248, %v1601
  %v1751 = vsel %vm1730, %v1252, %v1603
  %v1752 = vsel %vm1730, %v1256, %v1605
  %v1753 = vsel %vm1730, %v1260, %v1607
  %v1754 = vsel %vm1730, %v1264, %v1609
  %v1755 = vsel %vm1730, %v1268, %v1611
  %v1756 = vsel %vm1730, %v1272, %v1613
  %v1757 = vsel %vm1730, %v1276, %v1615
  %v1758 = vsel %vm1730, %v1280, %v1617
  %v1759 = vsel %vm1730, %v1284, %v1619
  %v1760 = vsel %vm1730, %v1288, %v1621
  %v1761 = vsel %vm1730, %v1292, %v1623
  %v1762 = vsel %vm1730, %v1296, %v1625
  %v1763 = vsel %vm1730, %v1300, %v1627
  %v1764 = vsel %vm1730, %v1304, %v1629
  %v1765 = vsel %vm1730, %v1308, %v1631
  %v1766 = vsel %vm1730, %v1312, %v1633
  %v1767 = vsel %vm1730, %v1316, %v1635
  %v1768 = vsel %vm1730, %v1320, %v1637
  %v1769 = vsel %vm1730, %v1324, %v1639
  %v1770 = vsel %vm1730, %v1328, %v1641
  %v1771 = vsel %vm1730, %v1332, %v1643
  %v1772 = vsel %vm1730, %v1336, %v1645
  %v1773 = vsel %vm1730, %v1340, %v1647
  %v1774 = vsel %vm1730, %v1344, %v1649
  %v1775 = vsel %vm1730, %v1348, %v1651
  %v1776 = vsel %vm1730, %v1352, %v1653
  %v1777 = vsel %vm1730, %v1356, %v1655
  %v1778 = vsel %vm1730, %v1360, %v1657
  %v1779 = vsel %vm1730, %v1364, %v1659
  %v1780 = vsel %vm1730, %v1368, %v1661
  %v1781 = vsel %vm1730, %v1372, %v1663
  %v1782 = vsel %vm1730, %v1376, %v1665
  %v1783 = vsel %vm1730, %v1380, %v1667
  %v1784 = vsel %vm1730, %v1384, %v1669
  %v1785 = vsel %vm1730, %v1388, %v1671
  %v1786 = vsel %vm1730, %v1392, %v1673
  %v1787 = vmax.f32 %v945, %v1394
  %v1788 = vmax.f32 %v946, %v1731
  %v1789 = vmax.f32 %v947, %v1395
  %v1790 = vmax.f32 %v948, %v1732
  %v1791 = vmax.f32 %v949, %v1396
  %v1792 = vmax.f32 %v950, %v1733
  %v1793 = vmax.f32 %v951, %v1397
  %v1794 = vmax.f32 %v952, %v1734
  %v1795 = vmax.f32 %v953, %v1398
  %v1796 = vmax.f32 %v954, %v1735
  %v1797 = vmax.f32 %v955, %v1399
  %v1798 = vmax.f32 %v956, %v1736
  %v1799 = vmax.f32 %v957, %v1400
  %v1800 = vmax.f32 %v958, %v1737
  %v1801 = vmax.f32 %v959, %v1401
  %v1802 = vmax.f32 %v960, %v1738
  %v1803 = vmax.f32 %v961, %v1402
  %v1804 = vmax.f32 %v962, %v1739
  %v1805 = vmax.f32 %v963, %v1403
  %v1806 = vmax.f32 %v964, %v1740
  %v1807 = vmax.f32 %v965, %v1404
  %v1808 = vmax.f32 %v966, %v1741
  %v1809 = vmax.f32 %v967, %v1405
  %v1810 = vmax.f32 %v968, %v1742
  %v1811 = vmax.f32 %v969, %v1406
  %v1812 = vmax.f32 %v970, %v1743
  %v1813 = vmax.f32 %v971, %v1407
  %v1814 = vmax.f32 %v972, %v1744
  %v1815 = vmax.f32 %v973, %v1408
  %v1816 = vmax.f32 %v974, %v1745
  %v1817 = vmax.f32 %v975, %v1409
  %v1818 = vmax.f32 %v976, %v1746
  %v1819 = vmax.f32 %v977, %v1410
  %v1820 = vmax.f32 %v978, %v1747
  %v1821 = vmax.f32 %v979, %v1411
  %v1822 = vmax.f32 %v980, %v1748
  %v1823 = vmax.f32 %v981, %v1412
  %v1824 = vmax.f32 %v982, %v1749
  %v1825 = vmax.f32 %v983, %v1413
  %v1826 = vmax.f32 %v984, %v1750
  %v1827 = vmax.f32 %v985, %v1414
  %v1828 = vmax.f32 %v986, %v1751
  %v1829 = vmax.f32 %v987, %v1415
  %v1830 = vmax.f32 %v988, %v1752
  %v1831 = vmax.f32 %v989, %v1416
  %v1832 = vmax.f32 %v990, %v1753
  %v1833 = vmax.f32 %v991, %v1417
  %v1834 = vmax.f32 %v992, %v1754
  %v1835 = vmax.f32 %v993, %v1418
  %v1836 = vmax.f32 %v994, %v1755
  %v1837 = vmax.f32 %v995, %v1419
  %v1838 = vmax.f32 %v996, %v1756
  %v1839 = vmax.f32 %v997, %v1420
  %v1840 = vmax.f32 %v998, %v1757
  %v1841 = vmax.f32 %v999, %v1421
  %v1842 = vmax.f32 %v1000, %v1758
  %v1843 = vmax.f32 %v1001, %v1422
  %v1844 = vmax.f32 %v1002, %v1759
  %v1845 = vmax.f32 %v1003, %v1423
  %v1846 = vmax.f32 %v1004, %v1760
  %v1847 = vmax.f32 %v1005, %v1424
  %v1848 = vmax.f32 %v1006, %v1761
  %v1849 = vmax.f32 %v1007, %v1425
  %v1850 = vmax.f32 %v1008, %v1762
  %v1851 = vmax.f32 %v1009, %v1426
  %v1852 = vmax.f32 %v1010, %v1763
  %v1853 = vmax.f32 %v1011, %v1427
  %v1854 = vmax.f32 %v1012, %v1764
  %v1855 = vmax.f32 %v1013, %v1428
  %v1856 = vmax.f32 %v1014, %v1765
  %v1857 = vmax.f32 %v1015, %v1429
  %v1858 = vmax.f32 %v1016, %v1766
  %v1859 = vmax.f32 %v1017, %v1430
  %v1860 = vmax.f32 %v1018, %v1767
  %v1861 = vmax.f32 %v1019, %v1431
  %v1862 = vmax.f32 %v1020, %v1768
  %v1863 = vmax.f32 %v1021, %v1432
  %v1864 = vmax.f32 %v1022, %v1769
  %v1865 = vmax.f32 %v1023, %v1433
  %v1866 = vmax.f32 %v1024, %v1770
  %v1867 = vmax.f32 %v1025, %v1434
  %v1868 = vmax.f32 %v1026, %v1771
  %v1869 = vmax.f32 %v1027, %v1435
  %v1870 = vmax.f32 %v1028, %v1772
  %v1871 = vmax.f32 %v1029, %v1436
  %v1872 = vmax.f32 %v1030, %v1773
  %v1873 = vmax.f32 %v1031, %v1437
  %v1874 = vmax.f32 %v1032, %v1774
  %v1875 = vmax.f32 %v1033, %v1438
  %v1876 = vmax.f32 %v1034, %v1775
  %v1877 = vmax.f32 %v1035, %v1439
  %v1878 = vmax.f32 %v1036, %v1776
  %v1879 = vmax.f32 %v1037, %v1440
  %v1880 = vmax.f32 %v1038, %v1777
  %v1881 = vmax.f32 %v1039, %v1441
  %v1882 = vmax.f32 %v1040, %v1778
  %v1883 = vmax.f32 %v1041, %v1442
  %v1884 = vmax.f32 %v1042, %v1779
  %v1885 = vmax.f32 %v1043, %v1443
  %v1886 = vmax.f32 %v1044, %v1780
  %v1887 = vmax.f32 %v1045, %v1444
  %v1888 = vmax.f32 %v1046, %v1781
  %v1889 = vmax.f32 %v1047, %v1445
  %v1890 = vmax.f32 %v1048, %v1782
  %v1891 = vmax.f32 %v1049, %v1446
  %v1892 = vmax.f32 %v1050, %v1783
  %v1893 = vmax.f32 %v1051, %v1447
  %v1894 = vmax.f32 %v1052, %v1784
  %v1895 = vmax.f32 %v1053, %v1448
  %v1896 = vmax.f32 %v1054, %v1785
  %v1897 = vmax.f32 %v1055, %v1449
  %v1898 = vmax.f32 %v1056, %v1786
  %v1899 = vmax.f32 %v1787, %v1791
  %v1900 = vmax.f32 %v1788, %v1792
  %v1901 = vmax.f32 %v1789, %v1793
  %v1902 = vmax.f32 %v1790, %v1794
  %v1903 = vmax.f32 %v1795, %v1799
  %v1904 = vmax.f32 %v1796, %v1800
  %v1905 = vmax.f32 %v1797, %v1801
  %v1906 = vmax.f32 %v1798, %v1802
  %v1907 = vmax.f32 %v1803, %v1807
  %v1908 = vmax.f32 %v1804, %v1808
  %v1909 = vmax.f32 %v1805, %v1809
  %v1910 = vmax.f32 %v1806, %v1810
  %v1911 = vmax.f32 %v1811, %v1815
  %v1912 = vmax.f32 %v1812, %v1816
  %v1913 = vmax.f32 %v1813, %v1817
  %v1914 = vmax.f32 %v1814, %v1818
  %v1915 = vmax.f32 %v1819, %v1823
  %v1916 = vmax.f32 %v1820, %v1824
  %v1917 = vmax.f32 %v1821, %v1825
  %v1918 = vmax.f32 %v1822, %v1826
  %v1919 = vmax.f32 %v1827, %v1831
  %v1920 = vmax.f32 %v1828, %v1832
  %v1921 = vmax.f32 %v1829, %v1833
  %v1922 = vmax.f32 %v1830, %v1834
  %v1923 = vmax.f32 %v1835, %v1839
  %v1924 = vmax.f32 %v1836, %v1840
  %v1925 = vmax.f32 %v1837, %v1841
  %v1926 = vmax.f32 %v1838, %v1842
  %v1927 = vmax.f32 %v1843, %v1847
  %v1928 = vmax.f32 %v1844, %v1848
  %v1929 = vmax.f32 %v1845, %v1849
  %v1930 = vmax.f32 %v1846, %v1850
  %v1931 = vmax.f32 %v1851, %v1855
  %v1932 = vmax.f32 %v1852, %v1856
  %v1933 = vmax.f32 %v1853, %v1857
  %v1934 = vmax.f32 %v1854, %v1858
  %v1935 = vmax.f32 %v1859, %v1863
  %v1936 = vmax.f32 %v1860, %v1864
  %v1937 = vmax.f32 %v1861, %v1865
  %v1938 = vmax.f32 %v1862, %v1866
  %v1939 = vmax.f32 %v1867, %v1871
  %v1940 = vmax.f32 %v1868, %v1872
  %v1941 = vmax.f32 %v1869, %v1873
  %v1942 = vmax.f32 %v1870, %v1874
  %v1943 = vmax.f32 %v1875, %v1879
  %v1944 = vmax.f32 %v1876, %v1880
  %v1945 = vmax.f32 %v1877, %v1881
  %v1946 = vmax.f32 %v1878, %v1882
  %v1947 = vmax.f32 %v1883, %v1887
  %v1948 = vmax.f32 %v1884, %v1888
  %v1949 = vmax.f32 %v1885, %v1889
  %v1950 = vmax.f32 %v1886, %v1890
  %v1951 = vmax.f32 %v1891, %v1895
  %v1952 = vmax.f32 %v1892, %v1896
  %v1953 = vmax.f32 %v1893, %v1897
  %v1954 = vmax.f32 %v1894, %v1898
  %v1955 = vpack.c.bf16 %v1901, %v1899
  %v1956 = vpack.c.bf16 %v1902, %v1900
  %v1957 = vpack.c.bf16 %v1905, %v1903
  %v1958 = vpack.c.bf16 %v1906, %v1904
  %v1959 = vpack.c.bf16 %v1909, %v1907
  %v1960 = vpack.c.bf16 %v1910, %v1908
  %v1961 = vpack.c.bf16 %v1913, %v1911
  %v1962 = vpack.c.bf16 %v1914, %v1912
  %v1963 = vpack.c.bf16 %v1917, %v1915
  %v1964 = vpack.c.bf16 %v1918, %v1916
  %v1965 = vpack.c.bf16 %v1921, %v1919
  %v1966 = vpack.c.bf16 %v1922, %v1920
  %v1967 = vpack.c.bf16 %v1925, %v1923
  %v1968 = vpack.c.bf16 %v1926, %v1924
  %v1969 = vpack.c.bf16 %v1929, %v1927
  %v1970 = vpack.c.bf16 %v1930, %v1928
  %v1971 = vpack.c.bf16 %v1933, %v1931
  %v1972 = vpack.c.bf16 %v1934, %v1932
  %v1973 = vpack.c.bf16 %v1937, %v1935
  %v1974 = vpack.c.bf16 %v1938, %v1936
  %v1975 = vpack.c.bf16 %v1941, %v1939
  %v1976 = vpack.c.bf16 %v1942, %v1940
  %v1977 = vpack.c.bf16 %v1945, %v1943
  %v1978 = vpack.c.bf16 %v1946, %v1944
  %v1979 = vpack.c.bf16 %v1949, %v1947
  %v1980 = vpack.c.bf16 %v1950, %v1948
  %v1981 = vpack.c.bf16 %v1953, %v1951
  %v1982 = vpack.c.bf16 %v1954, %v1952
  %2011 = vrot.lane.b32.xlu0 %v1955, 96
  %v2012 = vpop.permute.xlu0 %2011
  %2013 = vrot.lane.b32.xlu0 %v1956, 96
  %v2014 = vpop.permute.xlu0 %2013
  %2015 = vrot.lane.b32.xlu0 %v1957, 96
  %v2016 = vpop.permute.xlu0 %2015
  %2017 = vrot.lane.b32.xlu0 %v1958, 96
  %v2018 = vpop.permute.xlu0 %2017
  %2019 = vrot.lane.b32.xlu0 %v1959, 96
  %v2020 = vpop.permute.xlu0 %2019
  %2021 = vrot.lane.b32.xlu0 %v1960, 96
  %v2022 = vpop.permute.xlu0 %2021
  %2023 = vrot.lane.b32.xlu0 %v1961, 96
  %v2024 = vpop.permute.xlu0 %2023
  %2025 = vrot.lane.b32.xlu0 %v1962, 96
  %v2026 = vpop.permute.xlu0 %2025
  %2027 = vrot.lane.b32.xlu0 %v1963, 96
  %v2028 = vpop.permute.xlu0 %2027
  %2029 = vrot.lane.b32.xlu0 %v1964, 96
  %v2030 = vpop.permute.xlu0 %2029
  %2031 = vrot.lane.b32.xlu0 %v1965, 96
  %v2032 = vpop.permute.xlu0 %2031
  %2033 = vrot.lane.b32.xlu0 %v1966, 96
  %v2034 = vpop.permute.xlu0 %2033
  %2035 = vrot.lane.b32.xlu0 %v1967, 96
  %v2036 = vpop.permute.xlu0 %2035
  %2037 = vrot.lane.b32.xlu0 %v1968, 96
  %v2038 = vpop.permute.xlu0 %2037
  %2039 = vrot.lane.b32.xlu0 %v1969, 96
  %v2040 = vpop.permute.xlu0 %2039
  %2041 = vrot.lane.b32.xlu0 %v1970, 96
  %v2042 = vpop.permute.xlu0 %2041
  %2043 = vrot.lane.b32.xlu0 %v1971, 96
  %v2044 = vpop.permute.xlu0 %2043
  %2045 = vrot.lane.b32.xlu0 %v1972, 96
  %v2046 = vpop.permute.xlu0 %2045
  %2047 = vrot.lane.b32.xlu0 %v1973, 96
  %v2048 = vpop.permute.xlu0 %2047
  %2049 = vrot.lane.b32.xlu0 %v1974, 96
  %v2050 = vpop.permute.xlu0 %2049
  %2051 = vrot.lane.b32.xlu0 %v1975, 96
  %v2052 = vpop.permute.xlu0 %2051
  %2053 = vrot.lane.b32.xlu0 %v1976, 96
  %v2054 = vpop.permute.xlu0 %2053
  %2055 = vrot.lane.b32.xlu0 %v1977, 96
  %v2056 = vpop.permute.xlu0 %2055
  %2057 = vrot.lane.b32.xlu0 %v1978, 96
  %v2058 = vpop.permute.xlu0 %2057
  %2059 = vrot.lane.b32.xlu0 %v1979, 96
  %v2060 = vpop.permute.xlu0 %2059
  %2061 = vrot.lane.b32.xlu0 %v1980, 96
  %v2062 = vpop.permute.xlu0 %2061
  %2063 = vrot.lane.b32.xlu0 %v1981, 96
  %v2064 = vpop.permute.xlu0 %2063
  %2065 = vrot.lane.b32.xlu0 %v1982, 96
  %v2066 = vpop.permute.xlu0 %2065
  %vm2067 = vcmask 785408
  %v2068 = vsel %vm2067, %v2012, %v2014
  %v2069 = vsel %vm2067, %v2016, %v2018
  %v2070 = vsel %vm2067, %v2020, %v2022
  %v2071 = vsel %vm2067, %v2024, %v2026
  %v2072 = vsel %vm2067, %v2028, %v2030
  %v2073 = vsel %vm2067, %v2032, %v2034
  %v2074 = vsel %vm2067, %v2036, %v2038
  %v2075 = vsel %vm2067, %v2040, %v2042
  %v2076 = vsel %vm2067, %v2044, %v2046
  %v2077 = vsel %vm2067, %v2048, %v2050
  %v2078 = vsel %vm2067, %v2052, %v2054
  %v2079 = vsel %vm2067, %v2056, %v2058
  %v2080 = vsel %vm2067, %v2060, %v2062
  %v2081 = vsel %vm2067, %v2064, %v2066
  %2097 = vrot.lane.b32.xlu0 %v1957, 64
  %v2098 = vpop.permute.xlu0 %2097
  %2099 = vrot.lane.b32.xlu0 %v1958, 64
  %v2100 = vpop.permute.xlu0 %2099
  %2101 = vrot.lane.b32.xlu0 %v1959, 64
  %v2102 = vpop.permute.xlu0 %2101
  %2103 = vrot.lane.b32.xlu0 %v1960, 64
  %v2104 = vpop.permute.xlu0 %2103
  %2105 = vrot.lane.b32.xlu0 %v1961, 64
  %v2106 = vpop.permute.xlu0 %2105
  %2107 = vrot.lane.b32.xlu0 %v1962, 64
  %v2108 = vpop.permute.xlu0 %2107
  %2109 = vrot.lane.b32.xlu0 %v1963, 64
  %v2110 = vpop.permute.xlu0 %2109
  %2111 = vrot.lane.b32.xlu0 %v1964, 64
  %v2112 = vpop.permute.xlu0 %2111
  %2113 = vrot.lane.b32.xlu0 %v1965, 64
  %v2114 = vpop.permute.xlu0 %2113
  %2115 = vrot.lane.b32.xlu0 %v1966, 64
  %v2116 = vpop.permute.xlu0 %2115
  %2117 = vrot.lane.b32.xlu0 %v1967, 64
  %v2118 = vpop.permute.xlu0 %2117
  %2119 = vrot.lane.b32.xlu0 %v1968, 64
  %v2120 = vpop.permute.xlu0 %2119
  %2121 = vrot.lane.b32.xlu0 %v1969, 64
  %v2122 = vpop.permute.xlu0 %2121
  %2123 = vrot.lane.b32.xlu0 %v1970, 64
  %v2124 = vpop.permute.xlu0 %2123
  %2125 = vrot.lane.b32.xlu0 %v1971, 64
  %v2126 = vpop.permute.xlu0 %2125
  %2127 = vrot.lane.b32.xlu0 %v1972, 64
  %v2128 = vpop.permute.xlu0 %2127
  %2129 = vrot.lane.b32.xlu0 %v1973, 64
  %v2130 = vpop.permute.xlu0 %2129
  %2131 = vrot.lane.b32.xlu0 %v1974, 64
  %v2132 = vpop.permute.xlu0 %2131
  %2133 = vrot.lane.b32.xlu0 %v1975, 64
  %v2134 = vpop.permute.xlu0 %2133
  %2135 = vrot.lane.b32.xlu0 %v1976, 64
  %v2136 = vpop.permute.xlu0 %2135
  %2137 = vrot.lane.b32.xlu0 %v1977, 64
  %v2138 = vpop.permute.xlu0 %2137
  %2139 = vrot.lane.b32.xlu0 %v1978, 64
  %v2140 = vpop.permute.xlu0 %2139
  %2141 = vrot.lane.b32.xlu0 %v1979, 64
  %v2142 = vpop.permute.xlu0 %2141
  %2143 = vrot.lane.b32.xlu0 %v1980, 64
  %v2144 = vpop.permute.xlu0 %2143
  %2145 = vrot.lane.b32.xlu0 %v1981, 64
  %v2146 = vpop.permute.xlu0 %2145
  %2147 = vrot.lane.b32.xlu0 %v1982, 64
  %v2148 = vpop.permute.xlu0 %2147
  %2149 = vrot.lane.b32.xlu0 0, 64
  %v2150 = vpop.permute.xlu0 %2149
  %vm2151 = vcmask 523264
  %v2152 = vsel %vm2151, %v2098, %v2100
  %v2153 = vsel %vm2151, %v2102, %v2104
  %v2154 = vsel %vm2151, %v2106, %v2108
  %v2155 = vsel %vm2151, %v2110, %v2112
  %v2156 = vsel %vm2151, %v2114, %v2116
  %v2157 = vsel %vm2151, %v2118, %v2120
  %v2158 = vsel %vm2151, %v2122, %v2124
  %v2159 = vsel %vm2151, %v2126, %v2128
  %v2160 = vsel %vm2151, %v2130, %v2132
  %v2161 = vsel %vm2151, %v2134, %v2136
  %v2162 = vsel %vm2151, %v2138, %v2140
  %v2163 = vsel %vm2151, %v2142, %v2144
  %v2164 = vsel %vm2151, %v2146, %v2148
  %v2181 = vsel %vm575, 0, %v2012
  %v2185 = vsel %vm575, %v1956, %v2016
  %v2189 = vsel %vm575, %v1958, %v2020
  %v2193 = vsel %vm575, %v1960, %v2024
  %v2197 = vsel %vm575, %v1962, %v2028
  %v2201 = vsel %vm575, %v1964, %v2032
  %v2205 = vsel %vm575, %v1966, %v2036
  %v2209 = vsel %vm575, %v1968, %v2040
  %v2213 = vsel %vm575, %v1970, %v2044
  %v2217 = vsel %vm575, %v1972, %v2048
  %v2221 = vsel %vm575, %v1974, %v2052
  %v2225 = vsel %vm575, %v1976, %v2056
  %v2229 = vsel %vm575, %v1978, %v2060
  %v2233 = vsel %vm575, %v1980, %v2064
  %v2237 = vsel %vm434, %v2014, %v2098
  %v2241 = vsel %vm434, %v2018, %v2102
  %v2245 = vsel %vm434, %v2022, %v2106
  %v2249 = vsel %vm434, %v2026, %v2110
  %v2253 = vsel %vm434, %v2030, %v2114
  %v2257 = vsel %vm434, %v2034, %v2118
  %v2261 = vsel %vm434, %v2038, %v2122
  %v2265 = vsel %vm434, %v2042, %v2126
  %v2269 = vsel %vm434, %v2046, %v2130
  %v2273 = vsel %vm434, %v2050, %v2134
  %v2277 = vsel %vm434, %v2054, %v2138
  %v2281 = vsel %vm434, %v2058, %v2142
  %v2285 = vsel %vm434, %v2062, %v2146
  %v2289 = vsel %vm434, %v2066, %v2150
  %v2291 = vld [vmem:[%s3] sm:$0xf]
  %v2292 = vld [vmem:[%s3 + $0x4] sm:$0xf]
  %v2293 = vld [vmem:[%s3 + $0x8] sm:$0xf]
  %v2294 = vld [vmem:[%s3 + $0xc] sm:$0xf]
  %v2295 = vld [vmem:[%s3 + $0x10] sm:$0xf]
  %v2296 = vld [vmem:[%s3 + $0x14] sm:$0xf]
  %v2297 = vld [vmem:[%s3 + $0x18] sm:$0xf]
  %v2298 = vld [vmem:[%s3 + $0x1c] sm:$0xf]
  %v2299 = vld [vmem:[%s3 + $0x20] sm:$0xf]
  %v2300 = vld [vmem:[%s3 + $0x24] sm:$0xf]
  %v2301 = vld [vmem:[%s3 + $0x28] sm:$0xf]
  %v2302 = vld [vmem:[%s3 + $0x2c] sm:$0xf]
  %v2303 = vld [vmem:[%s3 + $0x30] sm:$0xf]
  %v2304 = vld [vmem:[%s3 + $0x34] sm:$0xf]
  %v2305 = vld [vmem:[%s3 + $0x38] sm:$0xf]
  %v2306 = vld [vmem:[%s3 + $0x3c] sm:$0xf]
  %v2307 = vld [vmem:[%s3 + $0x40] sm:$0xf]
  %v2308 = vld [vmem:[%s3 + $0x44] sm:$0xf]
  %v2309 = vld [vmem:[%s3 + $0x48] sm:$0xf]
  %v2310 = vld [vmem:[%s3 + $0x4c] sm:$0xf]
  %v2311 = vld [vmem:[%s3 + $0x50] sm:$0xf]
  %v2312 = vld [vmem:[%s3 + $0x54] sm:$0xf]
  %v2313 = vld [vmem:[%s3 + $0x58] sm:$0xf]
  %v2314 = vld [vmem:[%s3 + $0x5c] sm:$0xf]
  %v2315 = vld [vmem:[%s3 + $0x60] sm:$0xf]
  %v2316 = vld [vmem:[%s3 + $0x64] sm:$0xf]
  %v2317 = vld [vmem:[%s3 + $0x68] sm:$0xf]
  %v2318 = vld [vmem:[%s3 + $0x6c] sm:$0xf]
  %v2319 = vld [vmem:[%s3 + $0x70] sm:$0xf]
  %v2320 = vld [vmem:[%s3 + $0x74] sm:$0xf]
  %v2321 = vld [vmem:[%s3 + $0x78] sm:$0xf]
  %v2322 = vld [vmem:[%s3 + $0x7c] sm:$0xf]
  %v2323 = vld [vmem:[%s3 + $0x80] sm:$0xf]
  %v2324 = vld [vmem:[%s3 + $0x84] sm:$0xf]
  %v2325 = vld [vmem:[%s3 + $0x88] sm:$0xf]
  %v2326 = vld [vmem:[%s3 + $0x8c] sm:$0xf]
  %v2327 = vld [vmem:[%s3 + $0x90] sm:$0xf]
  %v2328 = vld [vmem:[%s3 + $0x94] sm:$0xf]
  %v2329 = vld [vmem:[%s3 + $0x98] sm:$0xf]
  %v2330 = vld [vmem:[%s3 + $0x9c] sm:$0xf]
  %v2331 = vld [vmem:[%s3 + $0xa0] sm:$0xf]
  %v2332 = vld [vmem:[%s3 + $0xa4] sm:$0xf]
  %v2333 = vld [vmem:[%s3 + $0xa8] sm:$0xf]
  %v2334 = vld [vmem:[%s3 + $0xac] sm:$0xf]
  %v2335 = vld [vmem:[%s3 + $0xb0] sm:$0xf]
  %v2336 = vld [vmem:[%s3 + $0xb4] sm:$0xf]
  %v2337 = vld [vmem:[%s3 + $0xb8] sm:$0xf]
  %v2338 = vld [vmem:[%s3 + $0xbc] sm:$0xf]
  %v2339 = vld [vmem:[%s3 + $0xc0] sm:$0xf]
  %v2340 = vld [vmem:[%s3 + $0xc4] sm:$0xf]
  %v2341 = vld [vmem:[%s3 + $0xc8] sm:$0xf]
  %v2342 = vld [vmem:[%s3 + $0xcc] sm:$0xf]
  %v2343 = vld [vmem:[%s3 + $0xd0] sm:$0xf]
  %v2344 = vld [vmem:[%s3 + $0xd4] sm:$0xf]
  %v2345 = vld [vmem:[%s3 + $0xd8] sm:$0xf]
  %v2346 = vld [vmem:[%s3 + $0xdc] sm:$0xf]
  %v2347 = vld [vmem:[%s3 + $0xe0] sm:$0xf]
  %v2348 = vld [vmem:[%s3 + $0xe4] sm:$0xf]
  %v2349 = vld [vmem:[%s3 + $0xe8] sm:$0xf]
  %v2350 = vld [vmem:[%s3 + $0xec] sm:$0xf]
  %v2351 = vld [vmem:[%s3 + $0xf0] sm:$0xf]
  %v2352 = vld [vmem:[%s3 + $0xf4] sm:$0xf]
  %v2353 = vld [vmem:[%s3 + $0xf8] sm:$0xf]
  %v2354 = vld [vmem:[%s3 + $0xfc] sm:$0xf]
  %v2355 = vld [vmem:[%s3 + $0x100] sm:$0xf]
  %v2356 = vld [vmem:[%s3 + $0x104] sm:$0xf]
  %v2357 = vld [vmem:[%s3 + $0x108] sm:$0xf]
  %v2358 = vld [vmem:[%s3 + $0x10c] sm:$0xf]
  %v2359 = vld [vmem:[%s3 + $0x110] sm:$0xf]
  %v2360 = vld [vmem:[%s3 + $0x114] sm:$0xf]
  %v2361 = vld [vmem:[%s3 + $0x118] sm:$0xf]
  %v2362 = vld [vmem:[%s3 + $0x11c] sm:$0xf]
  %v2363 = vld [vmem:[%s3 + $0x120] sm:$0xf]
  %v2364 = vld [vmem:[%s3 + $0x124] sm:$0xf]
  %v2365 = vld [vmem:[%s3 + $0x128] sm:$0xf]
  %v2366 = vld [vmem:[%s3 + $0x12c] sm:$0xf]
  %v2367 = vld [vmem:[%s3 + $0x130] sm:$0xf]
  %v2368 = vld [vmem:[%s3 + $0x134] sm:$0xf]
  %v2369 = vld [vmem:[%s3 + $0x138] sm:$0xf]
  %v2370 = vld [vmem:[%s3 + $0x13c] sm:$0xf]
  %v2371 = vld [vmem:[%s3 + $0x140] sm:$0xf]
  %v2372 = vld [vmem:[%s3 + $0x144] sm:$0xf]
  %v2373 = vld [vmem:[%s3 + $0x148] sm:$0xf]
  %v2374 = vld [vmem:[%s3 + $0x14c] sm:$0xf]
  %v2375 = vld [vmem:[%s4] sm:$0x1]
  %v2377 = vlaneseq
  %v2378 = vshrl.u32 %v2377, 7
  %v2379 = vsub.s32 0, %v2378
  %v2380 = vrot.slane %v2375, %v2379
  %v2466 = vunpack.c.l.b16 %v2291
  %v2467 = vunpack.c.l.b16 %v2292
  %v2468 = vunpack.c.l.b16 %v2293
  %v2469 = vunpack.c.l.b16 %v2294
  %v2470 = vunpack.c.l.b16 %v2295
  %v2471 = vunpack.c.l.b16 %v2296
  %v2472 = vunpack.c.l.b16 %v2297
  %v2473 = vunpack.c.l.b16 %v2298
  %v2474 = vunpack.c.l.b16 %v2299
  %v2475 = vunpack.c.l.b16 %v2300
  %v2476 = vunpack.c.l.b16 %v2301
  %v2477 = vunpack.c.l.b16 %v2302
  %v2478 = vunpack.c.l.b16 %v2303
  %v2479 = vunpack.c.l.b16 %v2304
  %v2480 = vunpack.c.l.b16 %v2305
  %v2481 = vunpack.c.l.b16 %v2306
  %v2482 = vunpack.c.l.b16 %v2307
  %v2483 = vunpack.c.l.b16 %v2308
  %v2484 = vunpack.c.l.b16 %v2309
  %v2485 = vunpack.c.l.b16 %v2310
  %v2486 = vunpack.c.l.b16 %v2311
  %v2487 = vunpack.c.l.b16 %v2312
  %v2488 = vunpack.c.l.b16 %v2313
  %v2489 = vunpack.c.l.b16 %v2314
  %v2490 = vunpack.c.l.b16 %v2315
  %v2491 = vunpack.c.l.b16 %v2316
  %v2492 = vunpack.c.l.b16 %v2317
  %v2493 = vunpack.c.l.b16 %v2318
  %v2494 = vunpack.c.l.b16 %v2319
  %v2495 = vunpack.c.l.b16 %v2320
  %v2496 = vunpack.c.l.b16 %v2321
  %v2497 = vunpack.c.l.b16 %v2322
  %v2498 = vunpack.c.l.b16 %v2323
  %v2499 = vunpack.c.l.b16 %v2324
  %v2500 = vunpack.c.l.b16 %v2325
  %v2501 = vunpack.c.l.b16 %v2326
  %v2502 = vunpack.c.l.b16 %v2327
  %v2503 = vunpack.c.l.b16 %v2328
  %v2504 = vunpack.c.l.b16 %v2329
  %v2505 = vunpack.c.l.b16 %v2330
  %v2506 = vunpack.c.l.b16 %v2331
  %v2507 = vunpack.c.l.b16 %v2332
  %v2508 = vunpack.c.l.b16 %v2333
  %v2509 = vunpack.c.l.b16 %v2334
  %v2510 = vunpack.c.l.b16 %v2335
  %v2511 = vunpack.c.l.b16 %v2336
  %v2512 = vunpack.c.l.b16 %v2337
  %v2513 = vunpack.c.l.b16 %v2338
  %v2514 = vunpack.c.l.b16 %v2339
  %v2515 = vunpack.c.l.b16 %v2340
  %v2516 = vunpack.c.l.b16 %v2341
  %v2517 = vunpack.c.l.b16 %v2342
  %v2518 = vunpack.c.l.b16 %v2343
  %v2519 = vunpack.c.l.b16 %v2344
  %v2520 = vunpack.c.l.b16 %v2345
  %v2521 = vunpack.c.l.b16 %v2346
  %v2522 = vunpack.c.l.b16 %v2347
  %v2523 = vunpack.c.l.b16 %v2348
  %v2524 = vunpack.c.l.b16 %v2349
  %v2525 = vunpack.c.l.b16 %v2350
  %v2526 = vunpack.c.l.b16 %v2351
  %v2527 = vunpack.c.l.b16 %v2352
  %v2528 = vunpack.c.l.b16 %v2353
  %v2529 = vunpack.c.l.b16 %v2354
  %v2530 = vunpack.c.l.b16 %v2355
  %v2531 = vunpack.c.l.b16 %v2356
  %v2532 = vunpack.c.l.b16 %v2357
  %v2533 = vunpack.c.l.b16 %v2358
  %v2534 = vunpack.c.l.b16 %v2359
  %v2535 = vunpack.c.l.b16 %v2360
  %v2536 = vunpack.c.l.b16 %v2361
  %v2537 = vunpack.c.l.b16 %v2362
  %v2538 = vunpack.c.l.b16 %v2363
  %v2539 = vunpack.c.l.b16 %v2364
  %v2540 = vunpack.c.l.b16 %v2365
  %v2541 = vunpack.c.l.b16 %v2366
  %v2542 = vunpack.c.l.b16 %v2367
  %v2543 = vunpack.c.l.b16 %v2368
  %v2544 = vunpack.c.l.b16 %v2369
  %v2545 = vunpack.c.l.b16 %v2370
  %v2546 = vunpack.c.l.b16 %v2371
  %v2547 = vunpack.c.l.b16 %v2372
  %v2548 = vunpack.c.l.b16 %v2373
  %v2549 = vunpack.c.l.b16 %v2374
  %v2550 = vpack.c.b16 %v2467, %v2466
  %v2551 = vpack.c.b16 %v2469, %v2468
  %v2552 = vpack.c.b16 %v2471, %v2470
  %v2553 = vpack.c.b16 %v2473, %v2472
  %v2554 = vpack.c.b16 %v2475, %v2474
  %v2555 = vpack.c.b16 %v2477, %v2476
  %v2556 = vpack.c.b16 %v2479, %v2478
  %v2557 = vpack.c.b16 %v2481, %v2480
  %v2558 = vpack.c.b16 %v2483, %v2482
  %v2559 = vpack.c.b16 %v2485, %v2484
  %v2560 = vpack.c.b16 %v2487, %v2486
  %v2561 = vpack.c.b16 %v2489, %v2488
  %v2562 = vpack.c.b16 %v2491, %v2490
  %v2563 = vpack.c.b16 %v2493, %v2492
  %v2564 = vpack.c.b16 %v2495, %v2494
  %v2565 = vpack.c.b16 %v2497, %v2496
  %v2566 = vpack.c.b16 %v2499, %v2498
  %v2567 = vpack.c.b16 %v2501, %v2500
  %v2568 = vpack.c.b16 %v2503, %v2502
  %v2569 = vpack.c.b16 %v2505, %v2504
  %v2570 = vpack.c.b16 %v2507, %v2506
  %v2571 = vpack.c.b16 %v2509, %v2508
  %v2572 = vpack.c.b16 %v2511, %v2510
  %v2573 = vpack.c.b16 %v2513, %v2512
  %v2574 = vpack.c.b16 %v2515, %v2514
  %v2575 = vpack.c.b16 %v2517, %v2516
  %v2576 = vpack.c.b16 %v2519, %v2518
  %v2577 = vpack.c.b16 %v2521, %v2520
  %v2578 = vpack.c.b16 %v2523, %v2522
  %v2579 = vpack.c.b16 %v2525, %v2524
  %v2580 = vpack.c.b16 %v2527, %v2526
  %v2581 = vpack.c.b16 %v2529, %v2528
  %v2582 = vpack.c.b16 %v2531, %v2530
  %v2583 = vpack.c.b16 %v2533, %v2532
  %v2584 = vpack.c.b16 %v2535, %v2534
  %v2585 = vpack.c.b16 %v2537, %v2536
  %v2586 = vpack.c.b16 %v2539, %v2538
  %v2587 = vpack.c.b16 %v2541, %v2540
  %v2588 = vpack.c.b16 %v2543, %v2542
  %v2589 = vpack.c.b16 %v2545, %v2544
  %v2590 = vpack.c.b16 %v2547, %v2546
  %v2591 = vpack.c.b16 %v2549, %v2548
  %v2635 = vsel %vm349, %v2100, 0
  %v2638 = vsel %vm349, %v2104, 0
  %v2641 = vsel %vm349, %v2108, 0
  %v2644 = vsel %vm349, %v2112, 0
  %v2647 = vsel %vm349, %v2116, 0
  %v2650 = vsel %vm349, %v2120, 0
  %v2653 = vsel %vm349, %v2124, 0
  %v2656 = vsel %vm349, %v2128, 0
  %v2659 = vsel %vm349, %v2132, 0
  %v2662 = vsel %vm349, %v2136, 0
  %v2665 = vsel %vm349, %v2140, 0
  %v2668 = vsel %vm349, %v2144, 0
  %v2671 = vsel %vm349, %v2148, 0
  %v2673 = vsel %vm349, %v2150, 0
  %2675 = vmatprep.subr.bf16.mxu0 0
  %2676 = vmatpush1.bf16.msra.mxu0 %v2557
  %2677 = vmatprep.subr.bf16.mxu0 0
  %2678 = vmatpush1.bf16.msra.mxu0 %v2556
  %2679 = vmatprep.subr.bf16.mxu0 0
  %2680 = vmatpush1.bf16.msra.mxu0 %v2555
  %2681 = vmatprep.subr.bf16.mxu0 0
  %2682 = vmatpush1.bf16.msra.mxu0 %v2554
  %2683 = vmatprep.subr.bf16.mxu0 0
  %2684 = vmatpush1.bf16.msra.mxu0 %v2553
  %2685 = vmatprep.subr.bf16.mxu0 0
  %2686 = vmatpush1.bf16.msra.mxu0 %v2552
  %2687 = vmatprep.subr.bf16.mxu0 0
  %2688 = vmatpush1.bf16.msra.mxu0 %v2551
  %2689 = vmatprep.subr.bf16.mxu0 0
  %2690 = vmatpush1.bf16.msra.mxu0 %v2550
  %2691 = vmatprep.subr.bf16.mxu0 0
  %2692 = vmatpush2.bf16.msra.mxu0 %v2565
  %2693 = vmatprep.subr.bf16.mxu0 0
  %2694 = vmatpush2.bf16.msra.mxu0 %v2564
  %2695 = vmatprep.subr.bf16.mxu0 0
  %2696 = vmatpush2.bf16.msra.mxu0 %v2563
  %2697 = vmatprep.subr.bf16.mxu0 0
  %2698 = vmatpush2.bf16.msra.mxu0 %v2562
  %2699 = vmatprep.subr.bf16.mxu0 0
  %2700 = vmatpush2.bf16.msra.mxu0 %v2561
  %2701 = vmatprep.subr.bf16.mxu0 0
  %2702 = vmatpush2.bf16.msra.mxu0 %v2560
  %2703 = vmatprep.subr.bf16.mxu0 0
  %2704 = vmatpush2.bf16.msra.mxu0 %v2559
  %2705 = vmatprep.subr.bf16.mxu0 0
  %2706 = vmatpush2.bf16.msra.mxu0 %v2558
  %2707 = vmatprep.mubr.bf16.mxu0 %v2181
  %2708 = vmatmul.mubr.bf16.gmra.mxu0 0
  %v2709 = vpop.f32.mrf.mxu0
  %v2710 = vadd.f32 %v2380, %v2709
  %v2711 = vpop.f32.mrf.mxu0
  %v2712 = vpop.f32.mrf.mxu0
  %v2713 = vadd.f32 %v2380, %v2712
  %v2714 = vpop.f32.mrf.mxu0
  %2715 = vmatprep.mubr.bf16.mxu0 %v2185
  %2716 = vmatmul.mubr.bf16.gmra.mxu0 %v1955
  %v2717 = vpop.f32.mrf.mxu0
  %v2718 = vadd.f32 %v2380, %v2717
  %v2719 = vpop.f32.mrf.mxu0
  %v2720 = vpop.f32.mrf.mxu0
  %v2721 = vadd.f32 %v2380, %v2720
  %v2722 = vpop.f32.mrf.mxu0
  %2723 = vmatprep.mubr.bf16.mxu0 %v2189
  %2724 = vmatmul.mubr.bf16.gmra.mxu0 %v1957
  %v2725 = vpop.f32.mrf.mxu0
  %v2726 = vadd.f32 %v2380, %v2725
  %v2727 = vpop.f32.mrf.mxu0
  %v2728 = vpop.f32.mrf.mxu0
  %v2729 = vadd.f32 %v2380, %v2728
  %v2730 = vpop.f32.mrf.mxu0
  %2731 = vmatprep.mubr.bf16.mxu0 %v2193
  %2732 = vmatmul.mubr.bf16.gmra.mxu0 %v1959
  %v2733 = vpop.f32.mrf.mxu0
  %v2734 = vadd.f32 %v2380, %v2733
  %v2735 = vpop.f32.mrf.mxu0
  %v2736 = vpop.f32.mrf.mxu0
  %v2737 = vadd.f32 %v2380, %v2736
  %v2738 = vpop.f32.mrf.mxu0
  %2739 = vmatprep.mubr.bf16.mxu0 %v2197
  %2740 = vmatmul.mubr.bf16.gmra.mxu0 %v1961
  %v2741 = vpop.f32.mrf.mxu0
  %v2742 = vadd.f32 %v2380, %v2741
  %v2743 = vpop.f32.mrf.mxu0
  %v2744 = vpop.f32.mrf.mxu0
  %v2745 = vadd.f32 %v2380, %v2744
  %v2746 = vpop.f32.mrf.mxu0
  %2747 = vmatprep.mubr.bf16.mxu0 %v2201
  %2748 = vmatmul.mubr.bf16.gmra.mxu0 %v1963
  %v2749 = vpop.f32.mrf.mxu0
  %v2750 = vadd.f32 %v2380, %v2749
  %v2751 = vpop.f32.mrf.mxu0
  %v2752 = vpop.f32.mrf.mxu0
  %v2753 = vadd.f32 %v2380, %v2752
  %v2754 = vpop.f32.mrf.mxu0
  %2755 = vmatprep.mubr.bf16.mxu0 %v2205
  %2756 = vmatmul.mubr.bf16.gmra.mxu0 %v1965
  %v2757 = vpop.f32.mrf.mxu0
  %v2758 = vadd.f32 %v2380, %v2757
  %v2759 = vpop.f32.mrf.mxu0
  %v2760 = vpop.f32.mrf.mxu0
  %v2761 = vadd.f32 %v2380, %v2760
  %v2762 = vpop.f32.mrf.mxu0
  %2763 = vmatprep.mubr.bf16.mxu0 %v2209
  %2764 = vmatmul.mubr.bf16.gmra.mxu0 %v1967
  %v2765 = vpop.f32.mrf.mxu0
  %v2766 = vadd.f32 %v2380, %v2765
  %v2767 = vpop.f32.mrf.mxu0
  %v2768 = vpop.f32.mrf.mxu0
  %v2769 = vadd.f32 %v2380, %v2768
  %v2770 = vpop.f32.mrf.mxu0
  %2771 = vmatprep.mubr.bf16.mxu0 %v2213
  %2772 = vmatmul.mubr.bf16.gmra.mxu0 %v1969
  %v2773 = vpop.f32.mrf.mxu0
  %v2774 = vadd.f32 %v2380, %v2773
  %v2775 = vpop.f32.mrf.mxu0
  %v2776 = vpop.f32.mrf.mxu0
  %v2777 = vadd.f32 %v2380, %v2776
  %v2778 = vpop.f32.mrf.mxu0
  %2779 = vmatprep.mubr.bf16.mxu0 %v2217
  %2780 = vmatmul.mubr.bf16.gmra.mxu0 %v1971
  %v2781 = vpop.f32.mrf.mxu0
  %v2782 = vadd.f32 %v2380, %v2781
  %v2783 = vpop.f32.mrf.mxu0
  %v2784 = vpop.f32.mrf.mxu0
  %v2785 = vadd.f32 %v2380, %v2784
  %v2786 = vpop.f32.mrf.mxu0
  %2787 = vmatprep.mubr.bf16.mxu0 %v2221
  %2788 = vmatmul.mubr.bf16.gmra.mxu0 %v1973
  %v2789 = vpop.f32.mrf.mxu0
  %v2790 = vadd.f32 %v2380, %v2789
  %v2791 = vpop.f32.mrf.mxu0
  %v2792 = vpop.f32.mrf.mxu0
  %v2793 = vadd.f32 %v2380, %v2792
  %v2794 = vpop.f32.mrf.mxu0
  %2795 = vmatprep.mubr.bf16.mxu0 %v2225
  %2796 = vmatmul.mubr.bf16.gmra.mxu0 %v1975
  %v2797 = vpop.f32.mrf.mxu0
  %v2798 = vadd.f32 %v2380, %v2797
  %v2799 = vpop.f32.mrf.mxu0
  %v2800 = vpop.f32.mrf.mxu0
  %v2801 = vadd.f32 %v2380, %v2800
  %v2802 = vpop.f32.mrf.mxu0
  %2803 = vmatprep.mubr.bf16.mxu0 %v2229
  %2804 = vmatmul.mubr.bf16.gmra.mxu0 %v1977
  %v2805 = vpop.f32.mrf.mxu0
  %v2806 = vadd.f32 %v2380, %v2805
  %v2807 = vpop.f32.mrf.mxu0
  %v2808 = vpop.f32.mrf.mxu0
  %v2809 = vadd.f32 %v2380, %v2808
  %v2810 = vpop.f32.mrf.mxu0
  %2811 = vmatprep.mubr.bf16.mxu0 %v2233
  %2812 = vmatmul.mubr.bf16.gmra.mxu0 %v1979
  %v2813 = vpop.f32.mrf.mxu0
  %v2814 = vadd.f32 %v2380, %v2813
  %v2815 = vpop.f32.mrf.mxu0
  %v2816 = vpop.f32.mrf.mxu0
  %v2817 = vadd.f32 %v2380, %v2816
  %v2818 = vpop.f32.mrf.mxu0
  %2819 = vdwg.mxu0
  %2820 = vmatprep.subr.bf16.mxu0 0
  %2821 = vmatpush1.bf16.msra.mxu0 %v2573
  %2822 = vmatprep.subr.bf16.mxu0 0
  %2823 = vmatpush1.bf16.msra.mxu0 %v2572
  %2824 = vmatprep.subr.bf16.mxu0 0
  %2825 = vmatpush1.bf16.msra.mxu0 %v2571
  %2826 = vmatprep.subr.bf16.mxu0 0
  %2827 = vmatpush1.bf16.msra.mxu0 %v2570
  %2828 = vmatprep.subr.bf16.mxu0 0
  %2829 = vmatpush1.bf16.msra.mxu0 %v2569
  %2830 = vmatprep.subr.bf16.mxu0 0
  %2831 = vmatpush1.bf16.msra.mxu0 %v2568
  %2832 = vmatprep.subr.bf16.mxu0 0
  %2833 = vmatpush1.bf16.msra.mxu0 %v2567
  %2834 = vmatprep.subr.bf16.mxu0 0
  %2835 = vmatpush1.bf16.msra.mxu0 %v2566
  %2836 = vmatprep.subr.bf16.mxu0 0
  %2837 = vmatpush2.bf16.msra.mxu0 %v2581
  %2838 = vmatprep.subr.bf16.mxu0 0
  %2839 = vmatpush2.bf16.msra.mxu0 %v2580
  %2840 = vmatprep.subr.bf16.mxu0 0
  %2841 = vmatpush2.bf16.msra.mxu0 %v2579
  %2842 = vmatprep.subr.bf16.mxu0 0
  %2843 = vmatpush2.bf16.msra.mxu0 %v2578
  %2844 = vmatprep.subr.bf16.mxu0 0
  %2845 = vmatpush2.bf16.msra.mxu0 %v2577
  %2846 = vmatprep.subr.bf16.mxu0 0
  %2847 = vmatpush2.bf16.msra.mxu0 %v2576
  %2848 = vmatprep.subr.bf16.mxu0 0
  %2849 = vmatpush2.bf16.msra.mxu0 %v2575
  %2850 = vmatprep.subr.bf16.mxu0 0
  %2851 = vmatpush2.bf16.msra.mxu0 %v2574
  %2852 = vmatprep.mubr.bf16.mxu0 %v2237
  %2853 = vmatmul.mubr.bf16.gmra.mxu0 %v2068
  %v2854 = vpop.f32.mrf.mxu0
  %v2855 = vadd.f32 %v2710, %v2854
  %v2856 = vpop.f32.mrf.mxu0
  %v2857 = vpop.f32.mrf.mxu0
  %v2858 = vadd.f32 %v2713, %v2857
  %v2859 = vpop.f32.mrf.mxu0
  %2860 = vmatprep.mubr.bf16.mxu0 %v2241
  %2861 = vmatmul.mubr.bf16.gmra.mxu0 %v2069
  %v2862 = vpop.f32.mrf.mxu0
  %v2863 = vadd.f32 %v2718, %v2862
  %v2864 = vpop.f32.mrf.mxu0
  %v2865 = vpop.f32.mrf.mxu0
  %v2866 = vadd.f32 %v2721, %v2865
  %v2867 = vpop.f32.mrf.mxu0
  %2868 = vmatprep.mubr.bf16.mxu0 %v2245
  %2869 = vmatmul.mubr.bf16.gmra.mxu0 %v2070
  %v2870 = vpop.f32.mrf.mxu0
  %v2871 = vadd.f32 %v2726, %v2870
  %v2872 = vpop.f32.mrf.mxu0
  %v2873 = vpop.f32.mrf.mxu0
  %v2874 = vadd.f32 %v2729, %v2873
  %v2875 = vpop.f32.mrf.mxu0
  %2876 = vmatprep.mubr.bf16.mxu0 %v2249
  %2877 = vmatmul.mubr.bf16.gmra.mxu0 %v2071
  %v2878 = vpop.f32.mrf.mxu0
  %v2879 = vadd.f32 %v2734, %v2878
  %v2880 = vpop.f32.mrf.mxu0
  %v2881 = vpop.f32.mrf.mxu0
  %v2882 = vadd.f32 %v2737, %v2881
  %v2883 = vpop.f32.mrf.mxu0
  %2884 = vmatprep.mubr.bf16.mxu0 %v2253
  %2885 = vmatmul.mubr.bf16.gmra.mxu0 %v2072
  %v2886 = vpop.f32.mrf.mxu0
  %v2887 = vadd.f32 %v2742, %v2886
  %v2888 = vpop.f32.mrf.mxu0
  %v2889 = vpop.f32.mrf.mxu0
  %v2890 = vadd.f32 %v2745, %v2889
  %v2891 = vpop.f32.mrf.mxu0
  %2892 = vmatprep.mubr.bf16.mxu0 %v2257
  %2893 = vmatmul.mubr.bf16.gmra.mxu0 %v2073
  %v2894 = vpop.f32.mrf.mxu0
  %v2895 = vadd.f32 %v2750, %v2894
  %v2896 = vpop.f32.mrf.mxu0
  %v2897 = vpop.f32.mrf.mxu0
  %v2898 = vadd.f32 %v2753, %v2897
  %v2899 = vpop.f32.mrf.mxu0
  %2900 = vmatprep.mubr.bf16.mxu0 %v2261
  %2901 = vmatmul.mubr.bf16.gmra.mxu0 %v2074
  %v2902 = vpop.f32.mrf.mxu0
  %v2903 = vadd.f32 %v2758, %v2902
  %v2904 = vpop.f32.mrf.mxu0
  %v2905 = vpop.f32.mrf.mxu0
  %v2906 = vadd.f32 %v2761, %v2905
  %v2907 = vpop.f32.mrf.mxu0
  %2908 = vmatprep.mubr.bf16.mxu0 %v2265
  %2909 = vmatmul.mubr.bf16.gmra.mxu0 %v2075
  %v2910 = vpop.f32.mrf.mxu0
  %v2911 = vadd.f32 %v2766, %v2910
  %v2912 = vpop.f32.mrf.mxu0
  %v2913 = vpop.f32.mrf.mxu0
  %v2914 = vadd.f32 %v2769, %v2913
  %v2915 = vpop.f32.mrf.mxu0
  %2916 = vmatprep.mubr.bf16.mxu0 %v2269
  %2917 = vmatmul.mubr.bf16.gmra.mxu0 %v2076
  %v2918 = vpop.f32.mrf.mxu0
  %v2919 = vadd.f32 %v2774, %v2918
  %v2920 = vpop.f32.mrf.mxu0
  %v2921 = vpop.f32.mrf.mxu0
  %v2922 = vadd.f32 %v2777, %v2921
  %v2923 = vpop.f32.mrf.mxu0
  %2924 = vmatprep.mubr.bf16.mxu0 %v2273
  %2925 = vmatmul.mubr.bf16.gmra.mxu0 %v2077
  %v2926 = vpop.f32.mrf.mxu0
  %v2927 = vadd.f32 %v2782, %v2926
  %v2928 = vpop.f32.mrf.mxu0
  %v2929 = vpop.f32.mrf.mxu0
  %v2930 = vadd.f32 %v2785, %v2929
  %v2931 = vpop.f32.mrf.mxu0
  %2932 = vmatprep.mubr.bf16.mxu0 %v2277
  %2933 = vmatmul.mubr.bf16.gmra.mxu0 %v2078
  %v2934 = vpop.f32.mrf.mxu0
  %v2935 = vadd.f32 %v2790, %v2934
  %v2936 = vpop.f32.mrf.mxu0
  %v2937 = vpop.f32.mrf.mxu0
  %v2938 = vadd.f32 %v2793, %v2937
  %v2939 = vpop.f32.mrf.mxu0
  %2940 = vmatprep.mubr.bf16.mxu0 %v2281
  %2941 = vmatmul.mubr.bf16.gmra.mxu0 %v2079
  %v2942 = vpop.f32.mrf.mxu0
  %v2943 = vadd.f32 %v2798, %v2942
  %v2944 = vpop.f32.mrf.mxu0
  %v2945 = vpop.f32.mrf.mxu0
  %v2946 = vadd.f32 %v2801, %v2945
  %v2947 = vpop.f32.mrf.mxu0
  %2948 = vmatprep.mubr.bf16.mxu0 %v2285
  %2949 = vmatmul.mubr.bf16.gmra.mxu0 %v2080
  %v2950 = vpop.f32.mrf.mxu0
  %v2951 = vadd.f32 %v2806, %v2950
  %v2952 = vpop.f32.mrf.mxu0
  %v2953 = vpop.f32.mrf.mxu0
  %v2954 = vadd.f32 %v2809, %v2953
  %v2955 = vpop.f32.mrf.mxu0
  %2956 = vmatprep.mubr.bf16.mxu0 %v2289
  %2957 = vmatmul.mubr.bf16.gmra.mxu0 %v2081
  %v2958 = vpop.f32.mrf.mxu0
  %v2959 = vadd.f32 %v2814, %v2958
  %v2960 = vpop.f32.mrf.mxu0
  %v2961 = vpop.f32.mrf.mxu0
  %v2962 = vadd.f32 %v2817, %v2961
  %v2963 = vpop.f32.mrf.mxu0
  %2964 = vdwg.mxu0
  %2965 = vmatprep.subr.bf16.mxu0 0
  %2966 = vmatpush1.bf16.msra.mxu0 %v2589
  %2967 = vmatprep.subr.bf16.mxu0 0
  %2968 = vmatpush1.bf16.msra.mxu0 %v2588
  %2969 = vmatprep.subr.bf16.mxu0 0
  %2970 = vmatpush1.bf16.msra.mxu0 %v2587
  %2971 = vmatprep.subr.bf16.mxu0 0
  %2972 = vmatpush1.bf16.msra.mxu0 %v2586
  %2973 = vmatprep.subr.bf16.mxu0 0
  %2974 = vmatpush1.bf16.msra.mxu0 %v2585
  %2975 = vmatprep.subr.bf16.mxu0 0
  %2976 = vmatpush1.bf16.msra.mxu0 %v2584
  %2977 = vmatprep.subr.bf16.mxu0 0
  %2978 = vmatpush1.bf16.msra.mxu0 %v2583
  %2979 = vmatprep.subr.bf16.mxu0 0
  %2980 = vmatpush1.bf16.msra.mxu0 %v2582
  %2981 = vmatprep.subr.bf16.mxu0 0
  %2982 = vmatpush2.bf16.msra.mxu0 0
  %2983 = vmatprep.subr.bf16.mxu0 0
  %2984 = vmatpush2.bf16.msra.mxu0 0
  %2985 = vmatprep.subr.bf16.mxu0 0
  %2986 = vmatpush2.bf16.msra.mxu0 0
  %2987 = vmatprep.subr.bf16.mxu0 0
  %2988 = vmatpush2.bf16.msra.mxu0 0
  %2989 = vmatprep.subr.bf16.mxu0 0
  %2990 = vmatpush2.bf16.msra.mxu0 0
  %2991 = vmatprep.subr.bf16.mxu0 0
  %2992 = vmatpush2.bf16.msra.mxu0 0
  %2993 = vmatprep.subr.bf16.mxu0 0
  %2994 = vmatpush2.bf16.msra.mxu0 %v2591
  %2995 = vmatprep.subr.bf16.mxu0 0
  %2996 = vmatpush2.bf16.msra.mxu0 %v2590
  %2997 = vmatprep.mubr.bf16.mxu0 %v2635
  %2998 = vmatmul.mubr.bf16.gmra.mxu0 %v2152
  %v2999 = vpop.f32.mrf.mxu0
  %v3000 = vadd.f32 %v2855, %v2999
  %v3001 = vpop.f32.mrf.mxu0
  %v3002 = vpop.f32.mrf.mxu0
  %v3003 = vadd.f32 %v2858, %v3002
  %v3004 = vpop.f32.mrf.mxu0
  %3005 = vmatprep.mubr.bf16.mxu0 %v2638
  %3006 = vmatmul.mubr.bf16.gmra.mxu0 %v2153
  %v3007 = vpop.f32.mrf.mxu0
  %v3008 = vadd.f32 %v2863, %v3007
  %v3009 = vpop.f32.mrf.mxu0
  %v3010 = vpop.f32.mrf.mxu0
  %v3011 = vadd.f32 %v2866, %v3010
  %v3012 = vpop.f32.mrf.mxu0
  %3013 = vmatprep.mubr.bf16.mxu0 %v2641
  %3014 = vmatmul.mubr.bf16.gmra.mxu0 %v2154
  %v3015 = vpop.f32.mrf.mxu0
  %v3016 = vadd.f32 %v2871, %v3015
  %v3017 = vpop.f32.mrf.mxu0
  %v3018 = vpop.f32.mrf.mxu0
  %v3019 = vadd.f32 %v2874, %v3018
  %v3020 = vpop.f32.mrf.mxu0
  %3021 = vmatprep.mubr.bf16.mxu0 %v2644
  %3022 = vmatmul.mubr.bf16.gmra.mxu0 %v2155
  %v3023 = vpop.f32.mrf.mxu0
  %v3024 = vadd.f32 %v2879, %v3023
  %v3025 = vpop.f32.mrf.mxu0
  %v3026 = vpop.f32.mrf.mxu0
  %v3027 = vadd.f32 %v2882, %v3026
  %v3028 = vpop.f32.mrf.mxu0
  %3029 = vmatprep.mubr.bf16.mxu0 %v2647
  %3030 = vmatmul.mubr.bf16.gmra.mxu0 %v2156
  %v3031 = vpop.f32.mrf.mxu0
  %v3032 = vadd.f32 %v2887, %v3031
  %v3033 = vpop.f32.mrf.mxu0
  %v3034 = vpop.f32.mrf.mxu0
  %v3035 = vadd.f32 %v2890, %v3034
  %v3036 = vpop.f32.mrf.mxu0
  %3037 = vmatprep.mubr.bf16.mxu0 %v2650
  %3038 = vmatmul.mubr.bf16.gmra.mxu0 %v2157
  %v3039 = vpop.f32.mrf.mxu0
  %v3040 = vadd.f32 %v2895, %v3039
  %v3041 = vpop.f32.mrf.mxu0
  %v3042 = vpop.f32.mrf.mxu0
  %v3043 = vadd.f32 %v2898, %v3042
  %v3044 = vpop.f32.mrf.mxu0
  %3045 = vmatprep.mubr.bf16.mxu0 %v2653
  %3046 = vmatmul.mubr.bf16.gmra.mxu0 %v2158
  %v3047 = vpop.f32.mrf.mxu0
  %v3048 = vadd.f32 %v2903, %v3047
  %v3049 = vpop.f32.mrf.mxu0
  %v3050 = vpop.f32.mrf.mxu0
  %v3051 = vadd.f32 %v2906, %v3050
  %v3052 = vpop.f32.mrf.mxu0
  %3053 = vmatprep.mubr.bf16.mxu0 %v2656
  %3054 = vmatmul.mubr.bf16.gmra.mxu0 %v2159
  %v3055 = vpop.f32.mrf.mxu0
  %v3056 = vadd.f32 %v2911, %v3055
  %v3057 = vpop.f32.mrf.mxu0
  %v3058 = vpop.f32.mrf.mxu0
  %v3059 = vadd.f32 %v2914, %v3058
  %v3060 = vpop.f32.mrf.mxu0
  %3061 = vmatprep.mubr.bf16.mxu0 %v2659
  %3062 = vmatmul.mubr.bf16.gmra.mxu0 %v2160
  %v3063 = vpop.f32.mrf.mxu0
  %v3064 = vadd.f32 %v2919, %v3063
  %v3065 = vpop.f32.mrf.mxu0
  %v3066 = vpop.f32.mrf.mxu0
  %v3067 = vadd.f32 %v2922, %v3066
  %v3068 = vpop.f32.mrf.mxu0
  %3069 = vmatprep.mubr.bf16.mxu0 %v2662
  %3070 = vmatmul.mubr.bf16.gmra.mxu0 %v2161
  %v3071 = vpop.f32.mrf.mxu0
  %v3072 = vadd.f32 %v2927, %v3071
  %v3073 = vpop.f32.mrf.mxu0
  %v3074 = vpop.f32.mrf.mxu0
  %v3075 = vadd.f32 %v2930, %v3074
  %v3076 = vpop.f32.mrf.mxu0
  %3077 = vmatprep.mubr.bf16.mxu0 %v2665
  %3078 = vmatmul.mubr.bf16.gmra.mxu0 %v2162
  %v3079 = vpop.f32.mrf.mxu0
  %v3080 = vadd.f32 %v2935, %v3079
  %v3081 = vpop.f32.mrf.mxu0
  %v3082 = vpop.f32.mrf.mxu0
  %v3083 = vadd.f32 %v2938, %v3082
  %v3084 = vpop.f32.mrf.mxu0
  %3085 = vmatprep.mubr.bf16.mxu0 %v2668
  %3086 = vmatmul.mubr.bf16.gmra.mxu0 %v2163
  %v3087 = vpop.f32.mrf.mxu0
  %v3088 = vadd.f32 %v2943, %v3087
  %v3089 = vpop.f32.mrf.mxu0
  %v3090 = vpop.f32.mrf.mxu0
  %v3091 = vadd.f32 %v2946, %v3090
  %v3092 = vpop.f32.mrf.mxu0
  %3093 = vmatprep.mubr.bf16.mxu0 %v2671
  %3094 = vmatmul.mubr.bf16.gmra.mxu0 %v2164
  %v3095 = vpop.f32.mrf.mxu0
  %v3096 = vadd.f32 %v2951, %v3095
  %v3097 = vpop.f32.mrf.mxu0
  %v3098 = vpop.f32.mrf.mxu0
  %v3099 = vadd.f32 %v2954, %v3098
  %v3100 = vpop.f32.mrf.mxu0
  %3101 = vmatprep.mubr.bf16.mxu0 %v2673
  %3102 = vmatmul.mubr.bf16.gmra.mxu0 %v2150
  %v3103 = vpop.f32.mrf.mxu0
  %v3104 = vadd.f32 %v2959, %v3103
  %v3105 = vpop.f32.mrf.mxu0
  %v3106 = vpop.f32.mrf.mxu0
  %v3107 = vadd.f32 %v2962, %v3106
  %v3108 = vpop.f32.mrf.mxu0
  %3109 = vdwg.mxu0
  %v3110 = vmax.f32 %v3000, 0.0
  %v3111 = vmax.f32 %v3003, 0.0
  %v3112 = vmax.f32 %v3008, 0.0
  %v3113 = vmax.f32 %v3011, 0.0
  %v3114 = vmax.f32 %v3016, 0.0
  %v3115 = vmax.f32 %v3019, 0.0
  %v3116 = vmax.f32 %v3024, 0.0
  %v3117 = vmax.f32 %v3027, 0.0
  %v3118 = vmax.f32 %v3032, 0.0
  %v3119 = vmax.f32 %v3035, 0.0
  %v3120 = vmax.f32 %v3040, 0.0
  %v3121 = vmax.f32 %v3043, 0.0
  %v3122 = vmax.f32 %v3048, 0.0
  %v3123 = vmax.f32 %v3051, 0.0
  %v3124 = vmax.f32 %v3056, 0.0
  %v3125 = vmax.f32 %v3059, 0.0
  %v3126 = vmax.f32 %v3064, 0.0
  %v3127 = vmax.f32 %v3067, 0.0
  %v3128 = vmax.f32 %v3072, 0.0
  %v3129 = vmax.f32 %v3075, 0.0
  %v3130 = vmax.f32 %v3080, 0.0
  %v3131 = vmax.f32 %v3083, 0.0
  %v3132 = vmax.f32 %v3088, 0.0
  %v3133 = vmax.f32 %v3091, 0.0
  %v3134 = vmax.f32 %v3096, 0.0
  %v3135 = vmax.f32 %v3099, 0.0
  %v3136 = vmax.f32 %v3104, 0.0
  %v3137 = vmax.f32 %v3107, 0.0
  %3166 = vrot.lane.b32.xlu0 %v3110, 120
  %v3167 = vpop.permute.xlu0 %3166
  %3168 = vrot.lane.b32.xlu0 %v3111, 120
  %v3169 = vpop.permute.xlu0 %3168
  %3170 = vrot.lane.b32.xlu0 %v3112, 120
  %v3171 = vpop.permute.xlu0 %3170
  %3172 = vrot.lane.b32.xlu0 %v3113, 120
  %v3173 = vpop.permute.xlu0 %3172
  %3174 = vrot.lane.b32.xlu0 %v3114, 120
  %v3175 = vpop.permute.xlu0 %3174
  %3176 = vrot.lane.b32.xlu0 %v3115, 120
  %v3177 = vpop.permute.xlu0 %3176
  %3178 = vrot.lane.b32.xlu0 %v3116, 120
  %v3179 = vpop.permute.xlu0 %3178
  %3180 = vrot.lane.b32.xlu0 %v3117, 120
  %v3181 = vpop.permute.xlu0 %3180
  %3182 = vrot.lane.b32.xlu0 %v3118, 120
  %v3183 = vpop.permute.xlu0 %3182
  %3184 = vrot.lane.b32.xlu0 %v3119, 120
  %v3185 = vpop.permute.xlu0 %3184
  %3186 = vrot.lane.b32.xlu0 %v3120, 120
  %v3187 = vpop.permute.xlu0 %3186
  %3188 = vrot.lane.b32.xlu0 %v3121, 120
  %v3189 = vpop.permute.xlu0 %3188
  %3190 = vrot.lane.b32.xlu0 %v3122, 120
  %v3191 = vpop.permute.xlu0 %3190
  %3192 = vrot.lane.b32.xlu0 %v3123, 120
  %v3193 = vpop.permute.xlu0 %3192
  %3194 = vrot.lane.b32.xlu0 %v3124, 120
  %v3195 = vpop.permute.xlu0 %3194
  %3196 = vrot.lane.b32.xlu0 %v3125, 120
  %v3197 = vpop.permute.xlu0 %3196
  %3198 = vrot.lane.b32.xlu0 %v3126, 120
  %v3199 = vpop.permute.xlu0 %3198
  %3200 = vrot.lane.b32.xlu0 %v3127, 120
  %v3201 = vpop.permute.xlu0 %3200
  %3202 = vrot.lane.b32.xlu0 %v3128, 120
  %v3203 = vpop.permute.xlu0 %3202
  %3204 = vrot.lane.b32.xlu0 %v3129, 120
  %v3205 = vpop.permute.xlu0 %3204
  %3206 = vrot.lane.b32.xlu0 %v3130, 120
  %v3207 = vpop.permute.xlu0 %3206
  %3208 = vrot.lane.b32.xlu0 %v3131, 120
  %v3209 = vpop.permute.xlu0 %3208
  %3210 = vrot.lane.b32.xlu0 %v3132, 120
  %v3211 = vpop.permute.xlu0 %3210
  %3212 = vrot.lane.b32.xlu0 %v3133, 120
  %v3213 = vpop.permute.xlu0 %3212
  %3214 = vrot.lane.b32.xlu0 %v3134, 120
  %v3215 = vpop.permute.xlu0 %3214
  %3216 = vrot.lane.b32.xlu0 %v3135, 120
  %v3217 = vpop.permute.xlu0 %3216
  %3218 = vrot.lane.b32.xlu0 %v3136, 120
  %v3219 = vpop.permute.xlu0 %3218
  %3220 = vrot.lane.b32.xlu0 %v3137, 120
  %v3221 = vpop.permute.xlu0 %3220
  %3250 = vrot.lane.b32.xlu0 %v3110, 104
  %v3251 = vpop.permute.xlu0 %3250
  %3252 = vrot.lane.b32.xlu0 %v3111, 104
  %v3253 = vpop.permute.xlu0 %3252
  %3254 = vrot.lane.b32.xlu0 %v3112, 104
  %v3255 = vpop.permute.xlu0 %3254
  %3256 = vrot.lane.b32.xlu0 %v3113, 104
  %v3257 = vpop.permute.xlu0 %3256
  %3258 = vrot.lane.b32.xlu0 %v3114, 104
  %v3259 = vpop.permute.xlu0 %3258
  %3260 = vrot.lane.b32.xlu0 %v3115, 104
  %v3261 = vpop.permute.xlu0 %3260
  %3262 = vrot.lane.b32.xlu0 %v3116, 104
  %v3263 = vpop.permute.xlu0 %3262
  %3264 = vrot.lane.b32.xlu0 %v3117, 104
  %v3265 = vpop.permute.xlu0 %3264
  %3266 = vrot.lane.b32.xlu0 %v3118, 104
  %v3267 = vpop.permute.xlu0 %3266
  %3268 = vrot.lane.b32.xlu0 %v3119, 104
  %v3269 = vpop.permute.xlu0 %3268
  %3270 = vrot.lane.b32.xlu0 %v3120, 104
  %v3271 = vpop.permute.xlu0 %3270
  %3272 = vrot.lane.b32.xlu0 %v3121, 104
  %v3273 = vpop.permute.xlu0 %3272
  %3274 = vrot.lane.b32.xlu0 %v3122, 104
  %v3275 = vpop.permute.xlu0 %3274
  %3276 = vrot.lane.b32.xlu0 %v3123, 104
  %v3277 = vpop.permute.xlu0 %3276
  %3278 = vrot.lane.b32.xlu0 %v3124, 104
  %v3279 = vpop.permute.xlu0 %3278
  %3280 = vrot.lane.b32.xlu0 %v3125, 104
  %v3281 = vpop.permute.xlu0 %3280
  %3282 = vrot.lane.b32.xlu0 %v3126, 104
  %v3283 = vpop.permute.xlu0 %3282
  %3284 = vrot.lane.b32.xlu0 %v3127, 104
  %v3285 = vpop.permute.xlu0 %3284
  %3286 = vrot.lane.b32.xlu0 %v3128, 104
  %v3287 = vpop.permute.xlu0 %3286
  %3288 = vrot.lane.b32.xlu0 %v3129, 104
  %v3289 = vpop.permute.xlu0 %3288
  %3290 = vrot.lane.b32.xlu0 %v3130, 104
  %v3291 = vpop.permute.xlu0 %3290
  %3292 = vrot.lane.b32.xlu0 %v3131, 104
  %v3293 = vpop.permute.xlu0 %3292
  %3294 = vrot.lane.b32.xlu0 %v3132, 104
  %v3295 = vpop.permute.xlu0 %3294
  %3296 = vrot.lane.b32.xlu0 %v3133, 104
  %v3297 = vpop.permute.xlu0 %3296
  %3298 = vrot.lane.b32.xlu0 %v3134, 104
  %v3299 = vpop.permute.xlu0 %3298
  %3300 = vrot.lane.b32.xlu0 %v3135, 104
  %v3301 = vpop.permute.xlu0 %3300
  %3302 = vrot.lane.b32.xlu0 %v3136, 104
  %v3303 = vpop.permute.xlu0 %3302
  %3304 = vrot.lane.b32.xlu0 %v3137, 104
  %v3305 = vpop.permute.xlu0 %3304
  %vm3334 = vcmask 850944
  %v3335 = vsel %vm3334, %v3167, %v3251
  %v3336 = vsel %vm3334, %v3169, %v3253
  %v3337 = vsel %vm3334, %v3171, %v3255
  %v3338 = vsel %vm3334, %v3173, %v3257
  %v3339 = vsel %vm3334, %v3175, %v3259
  %v3340 = vsel %vm3334, %v3177, %v3261
  %v3341 = vsel %vm3334, %v3179, %v3263
  %v3342 = vsel %vm3334, %v3181, %v3265
  %v3343 = vsel %vm3334, %v3183, %v3267
  %v3344 = vsel %vm3334, %v3185, %v3269
  %v3345 = vsel %vm3334, %v3187, %v3271
  %v3346 = vsel %vm3334, %v3189, %v3273
  %v3347 = vsel %vm3334, %v3191, %v3275
  %v3348 = vsel %vm3334, %v3193, %v3277
  %v3349 = vsel %vm3334, %v3195, %v3279
  %v3350 = vsel %vm3334, %v3197, %v3281
  %v3351 = vsel %vm3334, %v3199, %v3283
  %v3352 = vsel %vm3334, %v3201, %v3285
  %v3353 = vsel %vm3334, %v3203, %v3287
  %v3354 = vsel %vm3334, %v3205, %v3289
  %v3355 = vsel %vm3334, %v3207, %v3291
  %v3356 = vsel %vm3334, %v3209, %v3293
  %v3357 = vsel %vm3334, %v3211, %v3295
  %v3358 = vsel %vm3334, %v3213, %v3297
  %v3359 = vsel %vm3334, %v3215, %v3299
  %v3360 = vsel %vm3334, %v3217, %v3301
  %v3361 = vsel %vm3334, %v3219, %v3303
  %v3362 = vsel %vm3334, %v3221, %v3305
  %v3363 = vmax.f32 %v3110, %v3335
  %v3364 = vmax.f32 %v3111, %v3336
  %v3365 = vmax.f32 %v3112, %v3337
  %v3366 = vmax.f32 %v3113, %v3338
  %v3367 = vmax.f32 %v3114, %v3339
  %v3368 = vmax.f32 %v3115, %v3340
  %v3369 = vmax.f32 %v3116, %v3341
  %v3370 = vmax.f32 %v3117, %v3342
  %v3371 = vmax.f32 %v3118, %v3343
  %v3372 = vmax.f32 %v3119, %v3344
  %v3373 = vmax.f32 %v3120, %v3345
  %v3374 = vmax.f32 %v3121, %v3346
  %v3375 = vmax.f32 %v3122, %v3347
  %v3376 = vmax.f32 %v3123, %v3348
  %v3377 = vmax.f32 %v3124, %v3349
  %v3378 = vmax.f32 %v3125, %v3350
  %v3379 = vmax.f32 %v3126, %v3351
  %v3380 = vmax.f32 %v3127, %v3352
  %v3381 = vmax.f32 %v3128, %v3353
  %v3382 = vmax.f32 %v3129, %v3354
  %v3383 = vmax.f32 %v3130, %v3355
  %v3384 = vmax.f32 %v3131, %v3356
  %v3385 = vmax.f32 %v3132, %v3357
  %v3386 = vmax.f32 %v3133, %v3358
  %v3387 = vmax.f32 %v3134, %v3359
  %v3388 = vmax.f32 %v3135, %v3360
  %v3389 = vmax.f32 %v3136, %v3361
  %v3390 = vmax.f32 %v3137, %v3362
  %v3391 = vmax.f32 %v3363, %v3365
  %v3392 = vmax.f32 %v3364, %v3366
  %v3393 = vmax.f32 %v3367, %v3369
  %v3394 = vmax.f32 %v3368, %v3370
  %v3395 = vmax.f32 %v3371, %v3373
  %v3396 = vmax.f32 %v3372, %v3374
  %v3397 = vmax.f32 %v3375, %v3377
  %v3398 = vmax.f32 %v3376, %v3378
  %v3399 = vmax.f32 %v3379, %v3381
  %v3400 = vmax.f32 %v3380, %v3382
  %v3401 = vmax.f32 %v3383, %v3385
  %v3402 = vmax.f32 %v3384, %v3386
  %v3403 = vmax.f32 %v3387, %v3389
  %v3404 = vmax.f32 %v3388, %v3390
  %v3405 = vpack.c.bf16 %v3392, %v3391
  %v3406 = vpack.c.bf16 %v3394, %v3393
  %v3407 = vpack.c.bf16 %v3396, %v3395
  %v3408 = vpack.c.bf16 %v3398, %v3397
  %v3409 = vpack.c.bf16 %v3400, %v3399
  %v3410 = vpack.c.bf16 %v3402, %v3401
  %v3411 = vpack.c.bf16 %v3404, %v3403
  %3413 = vrot.lane.b32.xlu0 %v3406, 112
  %v3414 = vpop.permute.xlu0 %3413
  %3416 = vrot.lane.b32.xlu0 %v3407, 96
  %v3417 = vpop.permute.xlu0 %3416
  %3419 = vrot.lane.b32.xlu0 %v3408, 80
  %v3420 = vpop.permute.xlu0 %3419
  %3422 = vrot.lane.b32.xlu0 %v3409, 64
  %v3423 = vpop.permute.xlu0 %3422
  %3425 = vrot.lane.b32.xlu0 %v3410, 48
  %v3426 = vpop.permute.xlu0 %3425
  %3428 = vrot.lane.b32.xlu0 %v3411, 32
  %v3429 = vpop.permute.xlu0 %3428
  %vm3430 = vcmask 916480
  %v3433 = vsel %vm3430, %v3405, %v3414
  %v3436 = vsel %vm575, %v3414, %v3417
  %vm3438 = vcmask 654336
  %v3440 = vsel %vm3438, %v3417, %v3420
  %v3443 = vsel %vm434, %v3420, %v3423
  %vm3445 = vcmask 392192
  %v3447 = vsel %vm3445, %v3423, %v3426
  %v3450 = vsel %vm349, %v3426, %v3429
  %v3452 = vld [vmem:[%s5] sm:$0xf]
  %v3453 = vld [vmem:[%s5 + $0x4] sm:$0xf]
  %v3454 = vld [vmem:[%s5 + $0x8] sm:$0xf]
  %v3455 = vld [vmem:[%s5 + $0xc] sm:$0xf]
  %v3456 = vld [vmem:[%s5 + $0x10] sm:$0xf]
  %v3457 = vld [vmem:[%s5 + $0x14] sm:$0xf]
  %v3458 = vld [vmem:[%s5 + $0x18] sm:$0xf]
  %v3459 = vld [vmem:[%s5 + $0x1c] sm:$0xf]
  %v3460 = vld [vmem:[%s5 + $0x20] sm:$0xf]
  %v3461 = vld [vmem:[%s5 + $0x24] sm:$0xf]
  %v3462 = vld [vmem:[%s5 + $0x28] sm:$0xf]
  %v3463 = vld [vmem:[%s5 + $0x2c] sm:$0xf]
  %v3464 = vld [vmem:[%s5 + $0x30] sm:$0xf]
  %v3465 = vld [vmem:[%s5 + $0x34] sm:$0xf]
  %v3466 = vld [vmem:[%s5 + $0x38] sm:$0xf]
  %v3467 = vld [vmem:[%s5 + $0x3c] sm:$0xf]
  %v3468 = vld [vmem:[%s5 + $0x40] sm:$0xf]
  %v3469 = vld [vmem:[%s5 + $0x44] sm:$0xf]
  %v3470 = vld [vmem:[%s5 + $0x48] sm:$0xf]
  %v3471 = vld [vmem:[%s5 + $0x4c] sm:$0xf]
  %v3472 = vld [vmem:[%s5 + $0x50] sm:$0xf]
  %v3473 = vld [vmem:[%s5 + $0x54] sm:$0xf]
  %v3474 = vld [vmem:[%s5 + $0x58] sm:$0xf]
  %v3475 = vld [vmem:[%s5 + $0x5c] sm:$0xf]
  %v3476 = vld [vmem:[%s5 + $0x60] sm:$0xf]
  %v3477 = vld [vmem:[%s5 + $0x64] sm:$0xf]
  %v3478 = vld [vmem:[%s5 + $0x68] sm:$0xf]
  %v3479 = vld [vmem:[%s5 + $0x6c] sm:$0xf]
  %v3480 = vld [vmem:[%s5 + $0x70] sm:$0xf]
  %v3481 = vld [vmem:[%s5 + $0x74] sm:$0xf]
  %v3482 = vld [vmem:[%s5 + $0x78] sm:$0xf]
  %v3483 = vld [vmem:[%s5 + $0x7c] sm:$0xf]
  %v3484 = vld [vmem:[%s5 + $0x80] sm:$0xf]
  %v3485 = vld [vmem:[%s5 + $0x84] sm:$0xf]
  %v3486 = vld [vmem:[%s5 + $0x88] sm:$0xf]
  %v3487 = vld [vmem:[%s5 + $0x8c] sm:$0xf]
  %v3488 = vld [vmem:[%s5 + $0x90] sm:$0xf]
  %v3489 = vld [vmem:[%s5 + $0x94] sm:$0xf]
  %v3490 = vld [vmem:[%s5 + $0x98] sm:$0xf]
  %v3491 = vld [vmem:[%s5 + $0x9c] sm:$0xf]
  %v3492 = vld [vmem:[%s5 + $0xa0] sm:$0xf]
  %v3493 = vld [vmem:[%s5 + $0xa4] sm:$0xf]
  %v3494 = vld [vmem:[%s5 + $0xa8] sm:$0xf]
  %v3495 = vld [vmem:[%s5 + $0xac] sm:$0xf]
  %v3496 = vld [vmem:[%s5 + $0xb0] sm:$0xf]
  %v3497 = vld [vmem:[%s5 + $0xb4] sm:$0xf]
  %v3498 = vld [vmem:[%s5 + $0xb8] sm:$0xf]
  %v3499 = vld [vmem:[%s5 + $0xbc] sm:$0xf]
  %v3500 = vld [vmem:[%s5 + $0xc0] sm:$0xf]
  %v3501 = vld [vmem:[%s5 + $0xc4] sm:$0xf]
  %v3502 = vld [vmem:[%s5 + $0xc8] sm:$0xf]
  %v3503 = vld [vmem:[%s5 + $0xcc] sm:$0xf]
  %v3504 = vld [vmem:[%s5 + $0xd0] sm:$0xf]
  %v3505 = vld [vmem:[%s5 + $0xd4] sm:$0xf]
  %v3506 = vld [vmem:[%s5 + $0xd8] sm:$0xf]
  %v3507 = vld [vmem:[%s5 + $0xdc] sm:$0xf]
  %v3508 = vld [vmem:[%s5 + $0xe0] sm:$0xf]
  %v3509 = vld [vmem:[%s5 + $0xe4] sm:$0xf]
  %v3510 = vld [vmem:[%s5 + $0xe8] sm:$0xf]
  %v3511 = vld [vmem:[%s5 + $0xec] sm:$0xf]
  %v3512 = vld [vmem:[%s5 + $0xf0] sm:$0xf]
  %v3513 = vld [vmem:[%s5 + $0xf4] sm:$0xf]
  %v3514 = vld [vmem:[%s5 + $0xf8] sm:$0xf]
  %v3515 = vld [vmem:[%s5 + $0xfc] sm:$0xf]
  %v3516 = vld [vmem:[%s5 + $0x100] sm:$0xf]
  %v3517 = vld [vmem:[%s5 + $0x104] sm:$0xf]
  %v3518 = vld [vmem:[%s5 + $0x108] sm:$0xf]
  %v3519 = vld [vmem:[%s5 + $0x10c] sm:$0xf]
  %v3520 = vld [vmem:[%s5 + $0x110] sm:$0xf]
  %v3521 = vld [vmem:[%s5 + $0x114] sm:$0xf]
  %v3522 = vld [vmem:[%s5 + $0x118] sm:$0xf]
  %v3523 = vld [vmem:[%s5 + $0x11c] sm:$0xf]
  %v3524 = vld [vmem:[%s5 + $0x120] sm:$0xf]
  %v3525 = vld [vmem:[%s5 + $0x124] sm:$0xf]
  %v3526 = vld [vmem:[%s5 + $0x128] sm:$0xf]
  %v3527 = vld [vmem:[%s5 + $0x12c] sm:$0xf]
  %v3528 = vld [vmem:[%s5 + $0x130] sm:$0xf]
  %v3529 = vld [vmem:[%s5 + $0x134] sm:$0xf]
  %v3530 = vld [vmem:[%s5 + $0x138] sm:$0xf]
  %v3531 = vld [vmem:[%s5 + $0x13c] sm:$0xf]
  %v3532 = vld [vmem:[%s5 + $0x140] sm:$0xf]
  %v3533 = vld [vmem:[%s5 + $0x144] sm:$0xf]
  %v3534 = vld [vmem:[%s5 + $0x148] sm:$0xf]
  %v3535 = vld [vmem:[%s5 + $0x14c] sm:$0xf]
  %v3536 = vld [vmem:[%s5 + $0x150] sm:$0xf]
  %v3537 = vld [vmem:[%s5 + $0x154] sm:$0xf]
  %v3538 = vld [vmem:[%s5 + $0x158] sm:$0xf]
  %v3539 = vld [vmem:[%s5 + $0x15c] sm:$0xf]
  %v3540 = vld [vmem:[%s5 + $0x160] sm:$0xf]
  %v3541 = vld [vmem:[%s5 + $0x164] sm:$0xf]
  %v3542 = vld [vmem:[%s5 + $0x168] sm:$0xf]
  %v3543 = vld [vmem:[%s5 + $0x16c] sm:$0xf]
  %v3544 = vld [vmem:[%s5 + $0x170] sm:$0xf]
  %v3545 = vld [vmem:[%s5 + $0x174] sm:$0xf]
  %v3546 = vld [vmem:[%s5 + $0x178] sm:$0xf]
  %v3547 = vld [vmem:[%s5 + $0x17c] sm:$0xf]
  %v3548 = vld [vmem:[%s5 + $0x180] sm:$0xf]
  %v3549 = vld [vmem:[%s5 + $0x184] sm:$0xf]
  %v3550 = vld [vmem:[%s6] sm:$0x1]
  %v3552 = vlaneseq
  %v3553 = vshrl.u32 %v3552, 7
  %v3554 = vsub.s32 0, %v3553
  %v3555 = vrot.slane %v3550, %v3554
  %v3655 = vunpack.c.l.b16 %v3452
  %v3656 = vunpack.c.l.b16 %v3453
  %v3657 = vunpack.c.l.b16 %v3454
  %v3658 = vunpack.c.l.b16 %v3455
  %v3659 = vunpack.c.l.b16 %v3456
  %v3660 = vunpack.c.l.b16 %v3457
  %v3661 = vunpack.c.l.b16 %v3458
  %v3662 = vunpack.c.l.b16 %v3459
  %v3663 = vunpack.c.l.b16 %v3460
  %v3664 = vunpack.c.l.b16 %v3461
  %v3665 = vunpack.c.l.b16 %v3462
  %v3666 = vunpack.c.l.b16 %v3463
  %v3667 = vunpack.c.l.b16 %v3464
  %v3668 = vunpack.c.l.b16 %v3465
  %v3669 = vunpack.c.l.b16 %v3466
  %v3670 = vunpack.c.l.b16 %v3467
  %v3671 = vunpack.c.l.b16 %v3468
  %v3672 = vunpack.c.l.b16 %v3469
  %v3673 = vunpack.c.l.b16 %v3470
  %v3674 = vunpack.c.l.b16 %v3471
  %v3675 = vunpack.c.l.b16 %v3472
  %v3676 = vunpack.c.l.b16 %v3473
  %v3677 = vunpack.c.l.b16 %v3474
  %v3678 = vunpack.c.l.b16 %v3475
  %v3679 = vunpack.c.l.b16 %v3476
  %v3680 = vunpack.c.l.b16 %v3477
  %v3681 = vunpack.c.l.b16 %v3478
  %v3682 = vunpack.c.l.b16 %v3479
  %v3683 = vunpack.c.l.b16 %v3480
  %v3684 = vunpack.c.l.b16 %v3481
  %v3685 = vunpack.c.l.b16 %v3482
  %v3686 = vunpack.c.l.b16 %v3483
  %v3687 = vunpack.c.l.b16 %v3484
  %v3688 = vunpack.c.l.b16 %v3485
  %v3689 = vunpack.c.l.b16 %v3486
  %v3690 = vunpack.c.l.b16 %v3487
  %v3691 = vunpack.c.l.b16 %v3488
  %v3692 = vunpack.c.l.b16 %v3489
  %v3693 = vunpack.c.l.b16 %v3490
  %v3694 = vunpack.c.l.b16 %v3491
  %v3695 = vunpack.c.l.b16 %v3492
  %v3696 = vunpack.c.l.b16 %v3493
  %v3697 = vunpack.c.l.b16 %v3494
  %v3698 = vunpack.c.l.b16 %v3495
  %v3699 = vunpack.c.l.b16 %v3496
  %v3700 = vunpack.c.l.b16 %v3497
  %v3701 = vunpack.c.l.b16 %v3498
  %v3702 = vunpack.c.l.b16 %v3499
  %v3703 = vunpack.c.l.b16 %v3500
  %v3704 = vunpack.c.l.b16 %v3501
  %v3705 = vunpack.c.l.b16 %v3502
  %v3706 = vunpack.c.l.b16 %v3503
  %v3707 = vunpack.c.l.b16 %v3504
  %v3708 = vunpack.c.l.b16 %v3505
  %v3709 = vunpack.c.l.b16 %v3506
  %v3710 = vunpack.c.l.b16 %v3507
  %v3711 = vunpack.c.l.b16 %v3508
  %v3712 = vunpack.c.l.b16 %v3509
  %v3713 = vunpack.c.l.b16 %v3510
  %v3714 = vunpack.c.l.b16 %v3511
  %v3715 = vunpack.c.l.b16 %v3512
  %v3716 = vunpack.c.l.b16 %v3513
  %v3717 = vunpack.c.l.b16 %v3514
  %v3718 = vunpack.c.l.b16 %v3515
  %v3719 = vunpack.c.l.b16 %v3516
  %v3720 = vunpack.c.l.b16 %v3517
  %v3721 = vunpack.c.l.b16 %v3518
  %v3722 = vunpack.c.l.b16 %v3519
  %v3723 = vunpack.c.l.b16 %v3520
  %v3724 = vunpack.c.l.b16 %v3521
  %v3725 = vunpack.c.l.b16 %v3522
  %v3726 = vunpack.c.l.b16 %v3523
  %v3727 = vunpack.c.l.b16 %v3524
  %v3728 = vunpack.c.l.b16 %v3525
  %v3729 = vunpack.c.l.b16 %v3526
  %v3730 = vunpack.c.l.b16 %v3527
  %v3731 = vunpack.c.l.b16 %v3528
  %v3732 = vunpack.c.l.b16 %v3529
  %v3733 = vunpack.c.l.b16 %v3530
  %v3734 = vunpack.c.l.b16 %v3531
  %v3735 = vunpack.c.l.b16 %v3532
  %v3736 = vunpack.c.l.b16 %v3533
  %v3737 = vunpack.c.l.b16 %v3534
  %v3738 = vunpack.c.l.b16 %v3535
  %v3739 = vunpack.c.l.b16 %v3536
  %v3740 = vunpack.c.l.b16 %v3537
  %v3741 = vunpack.c.l.b16 %v3538
  %v3742 = vunpack.c.l.b16 %v3539
  %v3743 = vunpack.c.l.b16 %v3540
  %v3744 = vunpack.c.l.b16 %v3541
  %v3745 = vunpack.c.l.b16 %v3542
  %v3746 = vunpack.c.l.b16 %v3543
  %v3747 = vunpack.c.l.b16 %v3544
  %v3748 = vunpack.c.l.b16 %v3545
  %v3749 = vunpack.c.l.b16 %v3546
  %v3750 = vunpack.c.l.b16 %v3547
  %v3751 = vunpack.c.l.b16 %v3548
  %v3752 = vunpack.c.l.b16 %v3549
  %v3753 = vpack.c.b16 %v3656, %v3655
  %v3754 = vpack.c.b16 %v3658, %v3657
  %v3755 = vpack.c.b16 %v3660, %v3659
  %v3756 = vpack.c.b16 %v3662, %v3661
  %v3757 = vpack.c.b16 %v3664, %v3663
  %v3758 = vpack.c.b16 %v3666, %v3665
  %v3759 = vpack.c.b16 %v3668, %v3667
  %v3760 = vpack.c.b16 %v3670, %v3669
  %v3761 = vpack.c.b16 %v3672, %v3671
  %v3762 = vpack.c.b16 %v3674, %v3673
  %v3763 = vpack.c.b16 %v3676, %v3675
  %v3764 = vpack.c.b16 %v3678, %v3677
  %v3765 = vpack.c.b16 %v3680, %v3679
  %v3766 = vpack.c.b16 %v3682, %v3681
  %v3767 = vpack.c.b16 %v3684, %v3683
  %v3768 = vpack.c.b16 %v3686, %v3685
  %v3769 = vpack.c.b16 %v3688, %v3687
  %v3770 = vpack.c.b16 %v3690, %v3689
  %v3771 = vpack.c.b16 %v3692, %v3691
  %v3772 = vpack.c.b16 %v3694, %v3693
  %v3773 = vpack.c.b16 %v3696, %v3695
  %v3774 = vpack.c.b16 %v3698, %v3697
  %v3775 = vpack.c.b16 %v3700, %v3699
  %v3776 = vpack.c.b16 %v3702, %v3701
  %v3777 = vpack.c.b16 %v3704, %v3703
  %v3778 = vpack.c.b16 %v3706, %v3705
  %v3779 = vpack.c.b16 %v3708, %v3707
  %v3780 = vpack.c.b16 %v3710, %v3709
  %v3781 = vpack.c.b16 %v3712, %v3711
  %v3782 = vpack.c.b16 %v3714, %v3713
  %v3783 = vpack.c.b16 %v3716, %v3715
  %v3784 = vpack.c.b16 %v3718, %v3717
  %v3785 = vpack.c.b16 %v3720, %v3719
  %v3786 = vpack.c.b16 %v3722, %v3721
  %v3787 = vpack.c.b16 %v3724, %v3723
  %v3788 = vpack.c.b16 %v3726, %v3725
  %v3789 = vpack.c.b16 %v3728, %v3727
  %v3790 = vpack.c.b16 %v3730, %v3729
  %v3791 = vpack.c.b16 %v3732, %v3731
  %v3792 = vpack.c.b16 %v3734, %v3733
  %v3793 = vpack.c.b16 %v3736, %v3735
  %v3794 = vpack.c.b16 %v3738, %v3737
  %v3795 = vpack.c.b16 %v3740, %v3739
  %v3796 = vpack.c.b16 %v3742, %v3741
  %v3797 = vpack.c.b16 %v3744, %v3743
  %v3798 = vpack.c.b16 %v3746, %v3745
  %v3799 = vpack.c.b16 %v3748, %v3747
  %v3800 = vpack.c.b16 %v3750, %v3749
  %v3801 = vpack.c.b16 %v3752, %v3751
  %vm3851 = vcmask 130048
  %v3852 = vsel %vm3851, %v3429, 0
  %3854 = vmatprep.subr.bf16.mxu0 0
  %3855 = vmatpush1.bf16.msra.mxu0 %v3760
  %3856 = vmatprep.subr.bf16.mxu0 0
  %3857 = vmatpush1.bf16.msra.mxu0 %v3759
  %3858 = vmatprep.subr.bf16.mxu0 0
  %3859 = vmatpush1.bf16.msra.mxu0 %v3758
  %3860 = vmatprep.subr.bf16.mxu0 0
  %3861 = vmatpush1.bf16.msra.mxu0 %v3757
  %3862 = vmatprep.subr.bf16.mxu0 0
  %3863 = vmatpush1.bf16.msra.mxu0 %v3756
  %3864 = vmatprep.subr.bf16.mxu0 0
  %3865 = vmatpush1.bf16.msra.mxu0 %v3755
  %3866 = vmatprep.subr.bf16.mxu0 0
  %3867 = vmatpush1.bf16.msra.mxu0 %v3754
  %3868 = vmatprep.subr.bf16.mxu0 0
  %3869 = vmatpush1.bf16.msra.mxu0 %v3753
  %3870 = vmatprep.subr.bf16.mxu0 0
  %3871 = vmatpush2.bf16.msra.mxu0 %v3768
  %3872 = vmatprep.subr.bf16.mxu0 0
  %3873 = vmatpush2.bf16.msra.mxu0 %v3767
  %3874 = vmatprep.subr.bf16.mxu0 0
  %3875 = vmatpush2.bf16.msra.mxu0 %v3766
  %3876 = vmatprep.subr.bf16.mxu0 0
  %3877 = vmatpush2.bf16.msra.mxu0 %v3765
  %3878 = vmatprep.subr.bf16.mxu0 0
  %3879 = vmatpush2.bf16.msra.mxu0 %v3764
  %3880 = vmatprep.subr.bf16.mxu0 0
  %3881 = vmatpush2.bf16.msra.mxu0 %v3763
  %3882 = vmatprep.subr.bf16.mxu0 0
  %3883 = vmatpush2.bf16.msra.mxu0 %v3762
  %3884 = vmatprep.subr.bf16.mxu0 0
  %3885 = vmatpush2.bf16.msra.mxu0 %v3761
  %3886 = vmatprep.mubr.bf16.mxu0 %v3436
  %3887 = vmatmul.mubr.bf16.gmra.mxu0 %v3433
  %v3888 = vpop.f32.mrf.mxu0
  %v3889 = vadd.f32 %v3555, %v3888
  %v3890 = vpop.f32.mrf.mxu0
  %v3891 = vpop.f32.mrf.mxu0
  %v3892 = vadd.f32 %v3555, %v3891
  %v3893 = vpop.f32.mrf.mxu0
  %3894 = vdwg.mxu0
  %3895 = vmatprep.subr.bf16.mxu0 0
  %3896 = vmatpush1.bf16.msra.mxu0 %v3776
  %3897 = vmatprep.subr.bf16.mxu0 0
  %3898 = vmatpush1.bf16.msra.mxu0 %v3775
  %3899 = vmatprep.subr.bf16.mxu0 0
  %3900 = vmatpush1.bf16.msra.mxu0 %v3774
  %3901 = vmatprep.subr.bf16.mxu0 0
  %3902 = vmatpush1.bf16.msra.mxu0 %v3773
  %3903 = vmatprep.subr.bf16.mxu0 0
  %3904 = vmatpush1.bf16.msra.mxu0 %v3772
  %3905 = vmatprep.subr.bf16.mxu0 0
  %3906 = vmatpush1.bf16.msra.mxu0 %v3771
  %3907 = vmatprep.subr.bf16.mxu0 0
  %3908 = vmatpush1.bf16.msra.mxu0 %v3770
  %3909 = vmatprep.subr.bf16.mxu0 0
  %3910 = vmatpush1.bf16.msra.mxu0 %v3769
  %3911 = vmatprep.subr.bf16.mxu0 0
  %3912 = vmatpush2.bf16.msra.mxu0 %v3784
  %3913 = vmatprep.subr.bf16.mxu0 0
  %3914 = vmatpush2.bf16.msra.mxu0 %v3783
  %3915 = vmatprep.subr.bf16.mxu0 0
  %3916 = vmatpush2.bf16.msra.mxu0 %v3782
  %3917 = vmatprep.subr.bf16.mxu0 0
  %3918 = vmatpush2.bf16.msra.mxu0 %v3781
  %3919 = vmatprep.subr.bf16.mxu0 0
  %3920 = vmatpush2.bf16.msra.mxu0 %v3780
  %3921 = vmatprep.subr.bf16.mxu0 0
  %3922 = vmatpush2.bf16.msra.mxu0 %v3779
  %3923 = vmatprep.subr.bf16.mxu0 0
  %3924 = vmatpush2.bf16.msra.mxu0 %v3778
  %3925 = vmatprep.subr.bf16.mxu0 0
  %3926 = vmatpush2.bf16.msra.mxu0 %v3777
  %3927 = vmatprep.mubr.bf16.mxu0 %v3443
  %3928 = vmatmul.mubr.bf16.gmra.mxu0 %v3440
  %v3929 = vpop.f32.mrf.mxu0
  %v3930 = vadd.f32 %v3889, %v3929
  %v3931 = vpop.f32.mrf.mxu0
  %v3932 = vpop.f32.mrf.mxu0
  %v3933 = vadd.f32 %v3892, %v3932
  %v3934 = vpop.f32.mrf.mxu0
  %3935 = vdwg.mxu0
  %3936 = vmatprep.subr.bf16.mxu0 0
  %3937 = vmatpush1.bf16.msra.mxu0 %v3792
  %3938 = vmatprep.subr.bf16.mxu0 0
  %3939 = vmatpush1.bf16.msra.mxu0 %v3791
  %3940 = vmatprep.subr.bf16.mxu0 0
  %3941 = vmatpush1.bf16.msra.mxu0 %v3790
  %3942 = vmatprep.subr.bf16.mxu0 0
  %3943 = vmatpush1.bf16.msra.mxu0 %v3789
  %3944 = vmatprep.subr.bf16.mxu0 0
  %3945 = vmatpush1.bf16.msra.mxu0 %v3788
  %3946 = vmatprep.subr.bf16.mxu0 0
  %3947 = vmatpush1.bf16.msra.mxu0 %v3787
  %3948 = vmatprep.subr.bf16.mxu0 0
  %3949 = vmatpush1.bf16.msra.mxu0 %v3786
  %3950 = vmatprep.subr.bf16.mxu0 0
  %3951 = vmatpush1.bf16.msra.mxu0 %v3785
  %3952 = vmatprep.subr.bf16.mxu0 0
  %3953 = vmatpush2.bf16.msra.mxu0 %v3800
  %3954 = vmatprep.subr.bf16.mxu0 0
  %3955 = vmatpush2.bf16.msra.mxu0 %v3799
  %3956 = vmatprep.subr.bf16.mxu0 0
  %3957 = vmatpush2.bf16.msra.mxu0 %v3798
  %3958 = vmatprep.subr.bf16.mxu0 0
  %3959 = vmatpush2.bf16.msra.mxu0 %v3797
  %3960 = vmatprep.subr.bf16.mxu0 0
  %3961 = vmatpush2.bf16.msra.mxu0 %v3796
  %3962 = vmatprep.subr.bf16.mxu0 0
  %3963 = vmatpush2.bf16.msra.mxu0 %v3795
  %3964 = vmatprep.subr.bf16.mxu0 0
  %3965 = vmatpush2.bf16.msra.mxu0 %v3794
  %3966 = vmatprep.subr.bf16.mxu0 0
  %3967 = vmatpush2.bf16.msra.mxu0 %v3793
  %3968 = vmatprep.mubr.bf16.mxu0 %v3450
  %3969 = vmatmul.mubr.bf16.gmra.mxu0 %v3447
  %v3970 = vpop.f32.mrf.mxu0
  %v3971 = vadd.f32 %v3930, %v3970
  %v3972 = vpop.f32.mrf.mxu0
  %v3973 = vpop.f32.mrf.mxu0
  %v3974 = vadd.f32 %v3933, %v3973
  %v3975 = vpop.f32.mrf.mxu0
  %3976 = vdwg.mxu0
  %3977 = vmatprep.subr.bf16.mxu0 0
  %3978 = vmatpush1.bf16.msra.mxu0 0
  %3979 = vmatprep.subr.bf16.mxu0 0
  %3980 = vmatpush1.bf16.msra.mxu0 0
  %3981 = vmatprep.subr.bf16.mxu0 0
  %3982 = vmatpush1.bf16.msra.mxu0 0
  %3983 = vmatprep.subr.bf16.mxu0 0
  %3984 = vmatpush1.bf16.msra.mxu0 0
  %3985 = vmatprep.subr.bf16.mxu0 0
  %3986 = vmatpush1.bf16.msra.mxu0 0
  %3987 = vmatprep.subr.bf16.mxu0 0
  %3988 = vmatpush1.bf16.msra.mxu0 0
  %3989 = vmatprep.subr.bf16.mxu0 0
  %3990 = vmatpush1.bf16.msra.mxu0 0
  %3991 = vmatprep.subr.bf16.mxu0 0
  %3992 = vmatpush1.bf16.msra.mxu0 %v3801
  %3993 = vmatprep.subr.bf16.mxu0 0
  %3994 = vmatpush2.bf16.msra.mxu0 0
  %3995 = vmatprep.subr.bf16.mxu0 0
  %3996 = vmatpush2.bf16.msra.mxu0 0
  %3997 = vmatprep.subr.bf16.mxu0 0
  %3998 = vmatpush2.bf16.msra.mxu0 0
  %3999 = vmatprep.subr.bf16.mxu0 0
  %4000 = vmatpush2.bf16.msra.mxu0 0
  %4001 = vmatprep.subr.bf16.mxu0 0
  %4002 = vmatpush2.bf16.msra.mxu0 0
  %4003 = vmatprep.subr.bf16.mxu0 0
  %4004 = vmatpush2.bf16.msra.mxu0 0
  %4005 = vmatprep.subr.bf16.mxu0 0
  %4006 = vmatpush2.bf16.msra.mxu0 0
  %4007 = vmatprep.subr.bf16.mxu0 0
  %4008 = vmatpush2.bf16.msra.mxu0 0
  %4009 = vmatprep.mubr.bf16.mxu0 0
  %4010 = vmatmul.mubr.bf16.gmra.mxu0 %v3852
  %v4011 = vpop.f32.mrf.mxu0
  %v4012 = vadd.f32 %v3971, %v4011
  %v4013 = vpop.f32.mrf.mxu0
  %v4014 = vpop.f32.mrf.mxu0
  %v4015 = vadd.f32 %v3974, %v4014
  %v4016 = vpop.f32.mrf.mxu0
  %4017 = vdwg.mxu0
  %4018 = vst [vmem:[%s7] sm:$0xff] %v4012
  %4019 = vst [vmem:[%s7 + $0x8] sm:$0xff] %v4015
  // Predicated region
  $region30: #{simple_cnn_forward.1} parent=0 // pred_check
    _
  $region31: #{simple_cnn_forward.1} parent=0 // pred_check_branch
    %4021 = sbr.rel (0) target = $region33
  $region32: #{simple_cnn_forward.1} parent=0 // pred_region
    _
  $region33: #{simple_cnn_forward.1} parent=0 // pred_fallthru
    _
  // Predicated region
  $region34: #{simple_cnn_forward.1} parent=0 // pred_check
    _
  $region35: #{simple_cnn_forward.1} parent=0 // pred_check_branch
    %4023 = sbr.rel (0) target = $region37
  $region36: #{simple_cnn_forward.1} parent=0 // pred_region
    _
  $region37: #{simple_cnn_forward.1} parent=0 // pred_fallthru
    _

</llo_original>
